<compile_context>
chip_gen: v5e
topology: v5e:2x2
jax: 0.10.0
libtpu: 0.0.40
codegen_flags: <defaults>
</compile_context>

<pallas_src>
import functools
import math

import jax
import jax.numpy as jnp
from jax.experimental import pallas as pl
from jax.experimental.pallas import tpu as pltpu

_EPS = 1e-12
_NEG_INF = -1e30


def _pick_chunk(total: int, preferred: int) -> int:
    """Largest divisor of `total` that is <= `preferred` (falls back to `total`)."""
    if total <= preferred:
        return total
    for c in range(preferred, 0, -1):
        if total % c == 0:
            return c
    return total


def _encoder_layer_kernel(x_ref, mask_ref,
                          wqkv_ref, bqkv_ref,          # (H, D, 3dk) bf16, (H, 1, 3dk) f32
                          wo_ref, bo_ref,              # (H, dk, D) bf16,  (1, D)     f32
                          g1_ref, be1_ref, g2_ref, be2_ref,
                          w1_ref, bf1_ref, w2_ref, bf2_ref,
                          out_ref, cache_ref,          # (T, D), (H, T, 2dk)
                          qkv_scr,                     # VMEM (H, T, 3dk) f32 scratch
                          *, num_heads: int, d_k: int,
                          key_tile: int, ffn_chunk: int):
    f32, bf16 = jnp.float32, jnp.bfloat16
    H, dk = num_heads, d_k
    T, D = x_ref.shape
    Dff = w1_ref.shape[1]
    n_kt = T // key_tile
    n_fc = Dff // ffn_chunk

    x = x_ref[...].astype(f32)                              # (T, D)

    def layer_norm(v, g, b):
        mu = jnp.mean(v, axis=-1, keepdims=True)
        var = jnp.mean((v - mu) ** 2, axis=-1, keepdims=True)
        return (v - mu) * jax.lax.rsqrt(var + _EPS) * g + b

    # ---- mask handling, hoisted once (additive bias + numerator-path zeroing) ----
    keep = mask_ref[...].astype(f32) > 0.0                  # (1, T): keys kept
    neg = jnp.where(keep, 0.0, _NEG_INF).astype(f32)[None]  # (1, 1, T) additive bias
    keep_f = keep.astype(f32)[None]                         # (1, 1, T) multiplicative

    # ---- pre-norm + QKV projection (per-head 2-D MXU dots, no y broadcast) -------
    y_bf = layer_norm(x, g1_ref[...], be1_ref[...]).astype(bf16)      # (T, D)
    for h in range(H):   # H small & static; each iter is a plain 2-D MXU matmul
        qkv_scr[h] = (jnp.dot(y_bf, wqkv_ref[h], preferred_element_type=f32)
                      + bqkv_ref[h])                                   # (T, 3dk) f32
    qkv = qkv_scr[...]                                                 # (H, T, 3dk) f32

    # single lane-dense (H, T, 2dk) cache store straight from the fused slab
    cache_ref[...] = qkv[:, :, dk:].astype(cache_ref.dtype)

    scale = 1.0 / math.sqrt(dk)
    q_bf = (qkv[:, :, 0:dk] * scale).astype(bf16)                      # scale folded into q
    k_bf = qkv[:, :, dk:2 * dk].astype(bf16)
    v_bf = qkv[:, :, 2 * dk:3 * dk].astype(bf16)

    # ---- attention: key-tiled online softmax (all heads batched per tile) --------
    m_i = jnp.full((H, T, 1), _NEG_INF, f32)
    l_i = jnp.zeros((H, T, 1), f32)
    acc = jnp.zeros((H, T, dk), f32)
    for t in range(n_kt):
        lo, hi = t * key_tile, (t + 1) * key_tile
        s = jnp.einsum('htd,hsd->hts', q_bf, k_bf[:, lo:hi, :],
                       preferred_element_type=f32) + neg[:, :, lo:hi]   # (H, T, KT)
        m_new = jnp.maximum(m_i, jnp.max(s, axis=-1, keepdims=True))
        alpha = jnp.exp(m_i - m_new)
        p = jnp.exp(s - m_new)
        # denominator accumulates un-masked exp sums (masked terms underflow to 0
        # except for fully-masked rows, matching the reference's softmax-then-zero);
        # the keep multiply stays on the numerator path (load-bearing for those rows).
        l_i = alpha * l_i + jnp.sum(p, axis=-1, keepdims=True)
        pk = (p * keep_f[:, :, lo:hi]).astype(bf16)
        acc = alpha * acc + jnp.einsum('hts,hsd->htd', pk, v_bf[:, lo:hi, :],
                                       preferred_element_type=f32)
        m_i = m_new
    att = acc * pl.reciprocal(l_i, approx=True)                        # (H, T, dk) f32

    # ---- output projection: head-sum fused into an accumulating contraction ------
    x_att = None
    for h in range(H):
        c = jnp.dot(att[h].astype(bf16), wo_ref[h], preferred_element_type=f32)
        x_att = c if x_att is None else x_att + c                      # (T, D) f32
    x1 = x + x_att + bo_ref[...]                                       # residual (dropout == id)

    # ---- pre-norm + position-wise feed forward (Dff-chunked) ---------------------
    z_bf = layer_norm(x1, g2_ref[...], be2_ref[...]).astype(bf16)
    ff = None
    for j in range(n_fc):
        lo, hi = j * ffn_chunk, (j + 1) * ffn_chunk
        h1 = jnp.dot(z_bf, w1_ref[:, lo:hi],
                     preferred_element_type=f32) + bf1_ref[:, lo:hi]
        h1 = jnp.maximum(h1, 0.0).astype(bf16)
        c = jnp.dot(h1, w2_ref[lo:hi, :], preferred_element_type=f32)
        ff = c if ff is None else ff + c
    out_ref[...] = (x1 + ff + bf2_ref[...]).astype(out_ref.dtype)


def prepack_encoder_params(params, num_heads, *, compute_dtype=jnp.bfloat16):
    """One-time weight repack (head-major fused QKV, per-head Wo, bf16 matmul weights).

    Call once at load time so the reshuffle is NOT re-executed per layer call.
    """
    D = params["wq"].shape[0]
    H = num_heads
    dk = D // H
    Dff = params["w1"].shape[1]
    f32 = jnp.float32

    def per_head_cols(w):                       # (D, D) -> (H, D, dk)
        return jnp.transpose(w.reshape(D, H, dk), (1, 0, 2))

    wqkv = jnp.concatenate([per_head_cols(params["wq"]),
                            per_head_cols(params["wk"]),
                            per_head_cols(params["wv"])], axis=-1).astype(compute_dtype)
    bqkv = jnp.concatenate([params["bq"].reshape(H, 1, dk),
                            params["bk"].reshape(H, 1, dk),
                            params["bv"].reshape(H, 1, dk)], axis=-1).astype(f32)
    return dict(
        wqkv=wqkv, bqkv=bqkv,
        wo=params["wo"].reshape(H, dk, D).astype(compute_dtype),
        bo=params["bo"].reshape(1, D).astype(f32),
        ln1_g=params["ln1_g"].reshape(1, D).astype(f32),
        ln1_b=params["ln1_b"].reshape(1, D).astype(f32),
        ln2_g=params["ln2_g"].reshape(1, D).astype(f32),
        ln2_b=params["ln2_b"].reshape(1, D).astype(f32),
        w1=params["w1"].astype(compute_dtype),
        b1=params["b1"].reshape(1, Dff).astype(f32),
        w2=params["w2"].astype(compute_dtype),
        b2=params["b2"].reshape(1, D).astype(f32),
    )


def transformer_encoder_layer(x, mask, pos_emb, packed, *, num_heads,
                              cache_dtype=jnp.bfloat16,
                              key_tile=None, ffn_chunk=None):
    """x: (B, T, D) f32, mask: (B, 1, T) f32 (1.0 = keep), pos_emb: unused.

    `packed` is the output of prepack_encoder_params (weights repacked once).
    Returns (out, mask, new_att_cache, fake_cnn_cache) like the PyTorch module.
    """
    del pos_emb  # standard MultiHeadedAttention ignores pos_emb
    B, T, D = x.shape
    H = num_heads
    assert D % H == 0
    dk = D // H
    Dff = packed["w1"].shape[1]

    if key_tile is None:
        key_tile = _pick_chunk(T, 256)
    if ffn_chunk is None:
        ffn_chunk = _pick_chunk(Dff, 2048)

    args = (
        x, mask,
        packed["wqkv"], packed["bqkv"],
        packed["wo"], packed["bo"],
        packed["ln1_g"], packed["ln1_b"], packed["ln2_g"], packed["ln2_b"],
        packed["w1"], packed["b1"], packed["w2"], packed["b2"],
    )
    weight_args = args[2:]

    kern = functools.partial(_encoder_layer_kernel, num_heads=H, d_k=dk,
                             key_tile=key_tile, ffn_chunk=ffn_chunk)

    def run(buffered_weights: bool):
        # grid-invariant weight blocks: single-buffer them when supported.
        wmode = pl.Buffered(1) if buffered_weights else None

        def wspec(shape):
            n = len(shape)
            idx = lambda b, _n=n: (0,) * _n
            if wmode is None:
                return pl.BlockSpec(shape, idx)
            return pl.BlockSpec(shape, idx, pipeline_mode=wmode)

        in_specs = [
            pl.BlockSpec((None, T, D), lambda b: (b, 0, 0)),       # x      -> (T, D)
            pl.BlockSpec((None, 1, T), lambda b: (b, 0, 0)),       # mask   -> (1, T)
            wspec((H, D, 3 * dk)), wspec((H, 1, 3 * dk)),          # Wqkv, bqkv
            wspec((H, dk, D)), wspec((1, D)),                      # Wo, bo
            wspec((1, D)), wspec((1, D)),                          # ln1 gamma, beta
            wspec((1, D)), wspec((1, D)),                          # ln2 gamma, beta
            wspec((D, Dff)), wspec((1, Dff)),                      # W1, b1
            wspec((Dff, D)), wspec((1, D)),                        # W2, b2
        ]
        out_specs = [
            pl.BlockSpec((None, T, D), lambda b: (b, 0, 0)),               # out   -> (T, D)
            pl.BlockSpec((None, H, T, 2 * dk), lambda b: (b, 0, 0, 0)),    # cache -> (H, T, 2dk)
        ]
        out_shape = (
            jax.ShapeDtypeStruct((B, T, D), x.dtype),
            jax.ShapeDtypeStruct((B, H, T, 2 * dk), cache_dtype),
        )

        # VMEM budget: weights (1x if single-buffered, else 2x) + per-block
        # activations + headroom, clamped to 85% of physical per-TC VMEM
        # (~54 MiB on v7x, ~108 MiB on v5e/v6e).
        weight_bytes = sum(int(a.size) * a.dtype.itemsize for a in weight_args)
        wb = weight_bytes * (1 if buffered_weights else 2)
        act_bytes = 4 * (8 * T * D + 3 * H * T * 3 * dk + 3 * H * T * key_tile
                         + 2 * H * T * dk + 3 * T * ffn_chunk) + 2 * 2 * H * T * 2 * dk
        try:
            cap = int(pltpu.get_tpu_info().vmem_capacity_bytes)
        except Exception:
            cap = 128 * (1 << 20)
        vmem_limit = int(min(int(0.85 * cap),
                             max(32 * (1 << 20), wb + act_bytes + (4 << 20))))

        return pl.pallas_call(
            kern,
            grid_spec=pltpu.PrefetchScalarGridSpec(
                num_scalar_prefetch=0,
                grid=(B,),
                in_specs=in_specs,
                out_specs=out_specs,
                scratch_shapes=[pltpu.VMEM((H, T, 3 * dk), jnp.float32)],
            ),
            out_shape=out_shape,
            compiler_params=pltpu.CompilerParams(
                dimension_semantics=("parallel",),
                vmem_limit_bytes=vmem_limit),
        )(*args)

    try:
        out, new_att_cache = run(True)
    except Exception:
        # Installed JAX rejected pipeline_mode / Buffered(1); fall back to the
        # default double-buffered weight blocks (correctness identical).
        out, new_att_cache = run(False)

    fake_cnn_cache = jnp.zeros((0, 0, 0), dtype=out.dtype)
    # module returns (x, mask, new_att_cache, fake_cnn_cache)
    return out, mask, new_att_cache, fake_cnn_cache


# ------------------------------ pure-JAX references ------------------------------
def _split_heads(t, H, dk):
    B, T, _ = t.shape
    return t.reshape(B, T, H, dk).transpose(0, 2, 1, 3)            # (B, H, T, dk)


def _reference_f32(x, mask, params, num_heads):
    """Faithful f32 reference of the PyTorch module."""
    D = x.shape[-1]
    dk = D // num_heads

    def ln(v, g, b):
        mu = v.mean(-1, keepdims=True)
        var = ((v - mu) ** 2).mean(-1, keepdims=True)
        return (v - mu) / jnp.sqrt(var + _EPS) * g + b

    y = ln(x, params["ln1_g"], params["ln1_b"])
    q = y @ params["wq"] + params["bq"]
    k = y @ params["wk"] + params["bk"]
    v = y @ params["wv"] + params["bv"]
    qh, kh, vh = (_split_heads(t, num_heads, dk) for t in (q, k, v))
    s = jnp.einsum("bhqd,bhkd->bhqk", qh, kh) / math.sqrt(dk)
    keep = mask[:, None, :, :] > 0
    s = jnp.where(keep, s, _NEG_INF)
    p = jax.nn.softmax(s, axis=-1)
    p = jnp.where(keep, p, 0.0)
    att = jnp.einsum("bhqk,bhkd->bhqd", p, vh).transpose(0, 2, 1, 3).reshape(x.shape)
    x1 = x + att @ params["wo"] + params["bo"]
    z = ln(x1, params["ln2_g"], params["ln2_b"])
    ff = jnp.maximum(z @ params["w1"] + params["b1"], 0.0) @ params["w2"] + params["b2"]
    return x1 + ff, jnp.concatenate([kh, vh], axis=-1)


def _reference_mixed(x, mask, params, num_heads):
    """Mirror of the kernel's bf16-matmul / f32-accumulate precision policy."""
    bf16, f32 = jnp.bfloat16, jnp.float32
    D = x.shape[-1]
    dk = D // num_heads

    def mm(a, w):
        return jnp.matmul(a.astype(bf16), w.astype(bf16), preferred_element_type=f32)

    def ln(v, g, b):
        mu = v.mean(-1, keepdims=True)
        var = ((v - mu) ** 2).mean(-1, keepdims=True)
        return (v - mu) * jax.lax.rsqrt(var + _EPS) * g + b

    y = ln(x, params["ln1_g"], params["ln1_b"])
    q = mm(y, params["wq"]) + params["bq"]
    k = mm(y, params["wk"]) + params["bk"]
    v = mm(y, params["wv"]) + params["bv"]
    qh, kh, vh = (_split_heads(t, num_heads, dk) for t in (q, k, v))
    cache = jnp.concatenate([kh, vh], axis=-1)
    s = jnp.einsum("bhqd,bhkd->bhqk",
                   (qh / math.sqrt(dk)).astype(bf16), kh.astype(bf16),
                   preferred_element_type=f32)
    keep = mask[:, None, :, :] > 0
    s = s + jnp.where(keep, 0.0, _NEG_INF)
    e = jnp.exp(s - s.max(-1, keepdims=True))
    l = e.sum(-1, keepdims=True)
    num = jnp.einsum("bhqk,bhkd->bhqd", (e * keep).astype(bf16), vh.astype(bf16),
                     preferred_element_type=f32)
    att = (num / l).transpose(0, 2, 1, 3).reshape(x.shape)
    x1 = x + mm(att, params["wo"]) + params["bo"]
    z = ln(x1, params["ln2_g"], params["ln2_b"])
    h1 = jnp.maximum(mm(z, params["w1"]) + params["b1"], 0.0)
    ff = mm(h1, params["w2"]) + params["b2"]
    return x1 + ff, cache


if __name__ == "__main__":
    B, T, D, H, Dff = 2, 8, 32, 4, 64

    key = jax.random.PRNGKey(0)
    ks = jax.random.split(key, 16)
    scale = 0.1
    params = {
        "wq": scale * jax.random.normal(ks[0], (D, D), jnp.float32),
        "bq": scale * jax.random.normal(ks[1], (D,), jnp.float32),
        "wk": scale * jax.random.normal(ks[2], (D, D), jnp.float32),
        "bk": scale * jax.random.normal(ks[3], (D,), jnp.float32),
        "wv": scale * jax.random.normal(ks[4], (D, D), jnp.float32),
        "bv": scale * jax.random.normal(ks[5], (D,), jnp.float32),
        "wo": scale * jax.random.normal(ks[6], (D, D), jnp.float32),
        "bo": scale * jax.random.normal(ks[7], (D,), jnp.float32),
        "ln1_g": jnp.ones((D,), jnp.float32),
        "ln1_b": jnp.zeros((D,), jnp.float32),
        "ln2_g": jnp.ones((D,), jnp.float32),
        "ln2_b": jnp.zeros((D,), jnp.float32),
        "w1": scale * jax.random.normal(ks[8], (D, Dff), jnp.float32),
        "b1": scale * jax.random.normal(ks[9], (Dff,), jnp.float32),
        "w2": scale * jax.random.normal(ks[10], (Dff, D), jnp.float32),
        "b2": scale * jax.random.normal(ks[11], (D,), jnp.float32),
    }

    x = jax.random.normal(ks[12], (B, T, D), jnp.float32)
    pos_emb = jax.random.normal(ks[13], (1, T, D), jnp.float32)   # accepted, unused
    lengths = jnp.array([T, T - 2])
    mask = (jnp.arange(T)[None, None, :] < lengths[:, None, None]).astype(jnp.float32)  # (B,1,T)

    # one-time weight prepack (hoisted out of the per-call path)
    packed = jax.tree_util.tree_map(jnp.asarray,
                                    prepack_encoder_params(params, num_heads=H))

    out, mask_out, new_att_cache, cnn_cache = transformer_encoder_layer(
        x, mask, pos_emb, packed, num_heads=H)
    jax.block_until_ready((out, new_att_cache))

    mix_out, mix_cache = _reference_mixed(x, mask, params, H)
    ref_out, ref_cache = _reference_f32(x, mask, params, H)

    cache_f32 = new_att_cache.astype(jnp.float32)
    assert jnp.allclose(out, mix_out, atol=1e-2, rtol=1e-2), "output mismatch (mixed-precision ref)"
    assert jnp.allclose(cache_f32, mix_cache, atol=1.5e-2, rtol=1.5e-2), "cache mismatch (mixed ref)"
    assert jnp.allclose(out, ref_out, atol=5e-2, rtol=5e-2), "output mismatch (f32 ref)"
    assert jnp.allclose(cache_f32, ref_cache, atol=3e-2, rtol=3e-2), "cache mismatch (f32 ref)"
    assert cnn_cache.shape == (0, 0, 0)
    assert mask_out.shape == mask.shape

    print("KERNEL_OK")
</pallas_src>

<mosaic_0001>
module attributes {stable_mosaic.version = 11 : i64} {
  func.func @_encoder_layer_kernel(%arg0: i32, %arg1: memref<1x8x32xf32, #tpu.memory_space<vmem>>, %arg2: memref<1x1x8xf32, #tpu.memory_space<vmem>>, %arg3: memref<4x32x24xbf16, #tpu.memory_space<vmem>>, %arg4: memref<4x1x24xf32, #tpu.memory_space<vmem>>, %arg5: memref<4x8x32xbf16, #tpu.memory_space<vmem>>, %arg6: memref<1x32xf32, #tpu.memory_space<vmem>>, %arg7: memref<1x32xf32, #tpu.memory_space<vmem>>, %arg8: memref<1x32xf32, #tpu.memory_space<vmem>>, %arg9: memref<1x32xf32, #tpu.memory_space<vmem>>, %arg10: memref<1x32xf32, #tpu.memory_space<vmem>>, %arg11: memref<32x64xbf16, #tpu.memory_space<vmem>>, %arg12: memref<1x64xf32, #tpu.memory_space<vmem>>, %arg13: memref<64x32xbf16, #tpu.memory_space<vmem>>, %arg14: memref<1x32xf32, #tpu.memory_space<vmem>>, %arg15: memref<1x8x32xf32, #tpu.memory_space<vmem>>, %arg16: memref<1x4x8x16xbf16, #tpu.memory_space<vmem>>, %arg17: memref<4x8x24xf32, #tpu.memory_space<vmem>>) attributes {dimension_semantics = [#tpu.dimension_semantics<parallel>], iteration_bounds = array<i64: 2>, scalar_prefetch = 0 : i64, scratch_operands = 1 : i64, tpu.core_type = #tpu.core_type<tc>, window_params = [{transform_indices = @transform_0, window_bounds = array<i64: 1, 8, 32>}, {transform_indices = @transform_1, window_bounds = array<i64: 1, 1, 8>}, {pipeline_mode = #tpu.pipeline_mode<synchronous>, transform_indices = @transform_2, window_bounds = array<i64: 4, 32, 24>}, {pipeline_mode = #tpu.pipeline_mode<synchronous>, transform_indices = @transform_3, window_bounds = array<i64: 4, 1, 24>}, {pipeline_mode = #tpu.pipeline_mode<synchronous>, transform_indices = @transform_4, window_bounds = array<i64: 4, 8, 32>}, {pipeline_mode = #tpu.pipeline_mode<synchronous>, transform_indices = @transform_5, window_bounds = array<i64: 1, 32>}, {pipeline_mode = #tpu.pipeline_mode<synchronous>, transform_indices = @transform_6, window_bounds = array<i64: 1, 32>}, {pipeline_mode = #tpu.pipeline_mode<synchronous>, transform_indices = @transform_7, window_bounds = array<i64: 1, 32>}, {pipeline_mode = #tpu.pipeline_mode<synchronous>, transform_indices = @transform_8, window_bounds = array<i64: 1, 32>}, {pipeline_mode = #tpu.pipeline_mode<synchronous>, transform_indices = @transform_9, window_bounds = array<i64: 1, 32>}, {pipeline_mode = #tpu.pipeline_mode<synchronous>, transform_indices = @transform_10, window_bounds = array<i64: 32, 64>}, {pipeline_mode = #tpu.pipeline_mode<synchronous>, transform_indices = @transform_11, window_bounds = array<i64: 1, 64>}, {pipeline_mode = #tpu.pipeline_mode<synchronous>, transform_indices = @transform_12, window_bounds = array<i64: 64, 32>}, {pipeline_mode = #tpu.pipeline_mode<synchronous>, transform_indices = @transform_13, window_bounds = array<i64: 1, 32>}, {transform_indices = @transform_14, window_bounds = array<i64: 1, 8, 32>}, {transform_indices = @transform_15, window_bounds = array<i64: 1, 4, 8, 16>}]} {
    %c0 = arith.constant 0 : index
    %c0_0 = arith.constant 0 : index
    %c0_1 = arith.constant 0 : index
    %0 = vector.load %arg1[%c0, %c0_0, %c0_1] : memref<1x8x32xf32, #tpu.memory_space<vmem>>, vector<1x8x32xf32>
    %1 = vector.shape_cast %0 : vector<1x8x32xf32> to vector<8x32xf32>
    %c0_2 = arith.constant 0 : index
    %c0_3 = arith.constant 0 : index
    %c0_4 = arith.constant 0 : index
    %2 = vector.load %arg2[%c0_2, %c0_3, %c0_4] : memref<1x1x8xf32, #tpu.memory_space<vmem>>, vector<1x1x8xf32>
    %3 = vector.shape_cast %2 : vector<1x1x8xf32> to vector<1x8xf32>
    %cst = arith.constant 0.000000e+00 : f32
    %4 = vector.broadcast %cst : f32 to vector<1x8xf32>
    %5 = arith.cmpf ogt, %3, %4 : vector<1x8xf32>
    %cst_5 = arith.constant 0.000000e+00 : f32
    %cst_6 = arith.constant -1.000000e+30 : f32
    %6 = vector.broadcast %cst_5 : f32 to vector<1x8xf32>
    %7 = vector.broadcast %cst_6 : f32 to vector<1x8xf32>
    %8 = arith.select %5, %6, %7 : vector<1x8xi1>, vector<1x8xf32>
    %9 = vector.shape_cast %8 : vector<1x8xf32> to vector<1x1x8xf32>
    %10 = arith.extui %5 : vector<1x8xi1> to vector<1x8xi32>
    %11 = arith.sitofp %10 : vector<1x8xi32> to vector<1x8xf32>
    %12 = vector.shape_cast %11 : vector<1x8xf32> to vector<1x1x8xf32>
    %c0_7 = arith.constant 0 : index
    %c0_8 = arith.constant 0 : index
    %13 = vector.load %arg7[%c0_7, %c0_8] : memref<1x32xf32, #tpu.memory_space<vmem>>, vector<1x32xf32>
    %c0_9 = arith.constant 0 : index
    %c0_10 = arith.constant 0 : index
    %14 = vector.load %arg8[%c0_9, %c0_10] : memref<1x32xf32, #tpu.memory_space<vmem>>, vector<1x32xf32>
    %cst_11 = arith.constant dense<0.000000e+00> : vector<8xf32>
    %15 = vector.multi_reduction <add>, %1, %cst_11 [1] : vector<8x32xf32> to vector<8xf32>
    %16 = vector.shape_cast %15 : vector<8xf32> to vector<8x1xf32>
    %cst_12 = arith.constant 3.200000e+01 : f32
    %17 = vector.broadcast %cst_12 : f32 to vector<8x1xf32>
    %18 = arith.divf %16, %17 : vector<8x1xf32>
    %19 = vector.broadcast %18 : vector<8x1xf32> to vector<8x32xf32>
    %20 = arith.subf %1, %19 : vector<8x32xf32>
    %21 = arith.mulf %20, %20 : vector<8x32xf32>
    %cst_13 = arith.constant dense<0.000000e+00> : vector<8xf32>
    %22 = vector.multi_reduction <add>, %21, %cst_13 [1] : vector<8x32xf32> to vector<8xf32>
    %23 = vector.shape_cast %22 : vector<8xf32> to vector<8x1xf32>
    %cst_14 = arith.constant 3.200000e+01 : f32
    %24 = vector.broadcast %cst_14 : f32 to vector<8x1xf32>
    %25 = arith.divf %23, %24 : vector<8x1xf32>
    %26 = vector.broadcast %18 : vector<8x1xf32> to vector<8x32xf32>
    %27 = arith.subf %1, %26 : vector<8x32xf32>
    %cst_15 = arith.constant 9.99999996E-13 : f32
    %28 = vector.broadcast %cst_15 : f32 to vector<8x1xf32>
    %29 = arith.addf %25, %28 : vector<8x1xf32>
    %30 = math.rsqrt %29 : vector<8x1xf32>
    %31 = vector.broadcast %30 : vector<8x1xf32> to vector<8x32xf32>
    %32 = arith.mulf %27, %31 : vector<8x32xf32>
    %33 = vector.broadcast %13 : vector<1x32xf32> to vector<8x32xf32>
    %34 = arith.mulf %32, %33 : vector<8x32xf32>
    %35 = vector.broadcast %14 : vector<1x32xf32> to vector<8x32xf32>
    %36 = arith.addf %34, %35 : vector<8x32xf32>
    %37 = arith.truncf %36 : vector<8x32xf32> to vector<8x32xbf16>
    %c0_16 = arith.constant 0 : index
    %c0_17 = arith.constant 0 : index
    %c0_18 = arith.constant 0 : index
    %38 = vector.load %arg3[%c0_16, %c0_17, %c0_18] : memref<4x32x24xbf16, #tpu.memory_space<vmem>>, vector<1x32x24xbf16>
    %39 = vector.shape_cast %38 : vector<1x32x24xbf16> to vector<32x24xbf16>
    %cst_19 = arith.constant dense<0.000000e+00> : vector<8x24xf32>
    %40 = tpu.matmul %37, %39, %cst_19 {dimension_numbers = #tpu.dot_dimension_numbers<[1], [0], [0], [1], [0, 0, 1, 1], [], []>} : vector<8x32xbf16>, vector<32x24xbf16>, vector<8x24xf32> -> vector<8x24xf32>
    %c0_20 = arith.constant 0 : index
    %c0_21 = arith.constant 0 : index
    %c0_22 = arith.constant 0 : index
    %41 = vector.load %arg4[%c0_20, %c0_21, %c0_22] : memref<4x1x24xf32, #tpu.memory_space<vmem>>, vector<1x1x24xf32>
    %42 = vector.shape_cast %41 : vector<1x1x24xf32> to vector<1x24xf32>
    %43 = vector.broadcast %42 : vector<1x24xf32> to vector<8x24xf32>
    %44 = arith.addf %40, %43 : vector<8x24xf32>
    %c0_23 = arith.constant 0 : index
    %c0_24 = arith.constant 0 : index
    %c0_25 = arith.constant 0 : index
    %45 = vector.load %arg17[%c0_23, %c0_24, %c0_25] : memref<4x8x24xf32, #tpu.memory_space<vmem>>, vector<1x8x24xf32>
    %46 = vector.shape_cast %45 : vector<1x8x24xf32> to vector<8x24xf32>
    %47 = vector.shape_cast %44 : vector<8x24xf32> to vector<1x8x24xf32>
    tpu.vector_store %arg17[%c0_23, %c0_24, %c0_25], %47 {strides = array<i32>} : memref<4x8x24xf32, #tpu.memory_space<vmem>>, vector<1x8x24xf32>,
    %c1 = arith.constant 1 : index
    %c0_26 = arith.constant 0 : index
    %c0_27 = arith.constant 0 : index
    %48 = vector.load %arg3[%c1, %c0_26, %c0_27] : memref<4x32x24xbf16, #tpu.memory_space<vmem>>, vector<1x32x24xbf16>
    %49 = vector.shape_cast %48 : vector<1x32x24xbf16> to vector<32x24xbf16>
    %cst_28 = arith.constant dense<0.000000e+00> : vector<8x24xf32>
    %50 = tpu.matmul %37, %49, %cst_28 {dimension_numbers = #tpu.dot_dimension_numbers<[1], [0], [0], [1], [0, 0, 1, 1], [], []>} : vector<8x32xbf16>, vector<32x24xbf16>, vector<8x24xf32> -> vector<8x24xf32>
    %c1_29 = arith.constant 1 : index
    %c0_30 = arith.constant 0 : index
    %c0_31 = arith.constant 0 : index
    %51 = vector.load %arg4[%c1_29, %c0_30, %c0_31] : memref<4x1x24xf32, #tpu.memory_space<vmem>>, vector<1x1x24xf32>
    %52 = vector.shape_cast %51 : vector<1x1x24xf32> to vector<1x24xf32>
    %53 = vector.broadcast %52 : vector<1x24xf32> to vector<8x24xf32>
    %54 = arith.addf %50, %53 : vector<8x24xf32>
    %c1_32 = arith.constant 1 : index
    %c0_33 = arith.constant 0 : index
    %c0_34 = arith.constant 0 : index
    %55 = vector.load %arg17[%c1_32, %c0_33, %c0_34] : memref<4x8x24xf32, #tpu.memory_space<vmem>>, vector<1x8x24xf32>
    %56 = vector.shape_cast %55 : vector<1x8x24xf32> to vector<8x24xf32>
    %57 = vector.shape_cast %54 : vector<8x24xf32> to vector<1x8x24xf32>
    tpu.vector_store %arg17[%c1_32, %c0_33, %c0_34], %57 {strides = array<i32>} : memref<4x8x24xf32, #tpu.memory_space<vmem>>, vector<1x8x24xf32>,
    %c2 = arith.constant 2 : index
    %c0_35 = arith.constant 0 : index
    %c0_36 = arith.constant 0 : index
    %58 = vector.load %arg3[%c2, %c0_35, %c0_36] : memref<4x32x24xbf16, #tpu.memory_space<vmem>>, vector<1x32x24xbf16>
    %59 = vector.shape_cast %58 : vector<1x32x24xbf16> to vector<32x24xbf16>
    %cst_37 = arith.constant dense<0.000000e+00> : vector<8x24xf32>
    %60 = tpu.matmul %37, %59, %cst_37 {dimension_numbers = #tpu.dot_dimension_numbers<[1], [0], [0], [1], [0, 0, 1, 1], [], []>} : vector<8x32xbf16>, vector<32x24xbf16>, vector<8x24xf32> -> vector<8x24xf32>
    %c2_38 = arith.constant 2 : index
    %c0_39 = arith.constant 0 : index
    %c0_40 = arith.constant 0 : index
    %61 = vector.load %arg4[%c2_38, %c0_39, %c0_40] : memref<4x1x24xf32, #tpu.memory_space<vmem>>, vector<1x1x24xf32>
    %62 = vector.shape_cast %61 : vector<1x1x24xf32> to vector<1x24xf32>
    %63 = vector.broadcast %62 : vector<1x24xf32> to vector<8x24xf32>
    %64 = arith.addf %60, %63 : vector<8x24xf32>
    %c2_41 = arith.constant 2 : index
    %c0_42 = arith.constant 0 : index
    %c0_43 = arith.constant 0 : index
    %65 = vector.load %arg17[%c2_41, %c0_42, %c0_43] : memref<4x8x24xf32, #tpu.memory_space<vmem>>, vector<1x8x24xf32>
    %66 = vector.shape_cast %65 : vector<1x8x24xf32> to vector<8x24xf32>
    %67 = vector.shape_cast %64 : vector<8x24xf32> to vector<1x8x24xf32>
    tpu.vector_store %arg17[%c2_41, %c0_42, %c0_43], %67 {strides = array<i32>} : memref<4x8x24xf32, #tpu.memory_space<vmem>>, vector<1x8x24xf32>,
    %c3 = arith.constant 3 : index
    %c0_44 = arith.constant 0 : index
    %c0_45 = arith.constant 0 : index
    %68 = vector.load %arg3[%c3, %c0_44, %c0_45] : memref<4x32x24xbf16, #tpu.memory_space<vmem>>, vector<1x32x24xbf16>
    %69 = vector.shape_cast %68 : vector<1x32x24xbf16> to vector<32x24xbf16>
    %cst_46 = arith.constant dense<0.000000e+00> : vector<8x24xf32>
    %70 = tpu.matmul %37, %69, %cst_46 {dimension_numbers = #tpu.dot_dimension_numbers<[1], [0], [0], [1], [0, 0, 1, 1], [], []>} : vector<8x32xbf16>, vector<32x24xbf16>, vector<8x24xf32> -> vector<8x24xf32>
    %c3_47 = arith.constant 3 : index
    %c0_48 = arith.constant 0 : index
    %c0_49 = arith.constant 0 : index
    %71 = vector.load %arg4[%c3_47, %c0_48, %c0_49] : memref<4x1x24xf32, #tpu.memory_space<vmem>>, vector<1x1x24xf32>
    %72 = vector.shape_cast %71 : vector<1x1x24xf32> to vector<1x24xf32>
    %73 = vector.broadcast %72 : vector<1x24xf32> to vector<8x24xf32>
    %74 = arith.addf %70, %73 : vector<8x24xf32>
    %c3_50 = arith.constant 3 : index
    %c0_51 = arith.constant 0 : index
    %c0_52 = arith.constant 0 : index
    %75 = vector.load %arg17[%c3_50, %c0_51, %c0_52] : memref<4x8x24xf32, #tpu.memory_space<vmem>>, vector<1x8x24xf32>
    %76 = vector.shape_cast %75 : vector<1x8x24xf32> to vector<8x24xf32>
    %77 = vector.shape_cast %74 : vector<8x24xf32> to vector<1x8x24xf32>
    tpu.vector_store %arg17[%c3_50, %c0_51, %c0_52], %77 {strides = array<i32>} : memref<4x8x24xf32, #tpu.memory_space<vmem>>, vector<1x8x24xf32>,
    %c0_53 = arith.constant 0 : index
    %c0_54 = arith.constant 0 : index
    %c0_55 = arith.constant 0 : index
    %78 = vector.load %arg17[%c0_53, %c0_54, %c0_55] : memref<4x8x24xf32, #tpu.memory_space<vmem>>, vector<4x8x24xf32>
    %79 = vector.extract_strided_slice %78 {offsets = [0, 0, 8], sizes = [4, 8, 16], strides = [1, 1, 1]} : vector<4x8x24xf32> to vector<4x8x16xf32>
    %80 = arith.truncf %79 : vector<4x8x16xf32> to vector<4x8x16xbf16>
    %c0_56 = arith.constant 0 : index
    %c0_57 = arith.constant 0 : index
    %c0_58 = arith.constant 0 : index
    %c0_59 = arith.constant 0 : index
    %81 = vector.load %arg16[%c0_56, %c0_57, %c0_58, %c0_59] : memref<1x4x8x16xbf16, #tpu.memory_space<vmem>>, vector<1x4x8x16xbf16>
    %82 = vector.shape_cast %81 : vector<1x4x8x16xbf16> to vector<4x8x16xbf16>
    %83 = vector.shape_cast %80 : vector<4x8x16xbf16> to vector<1x4x8x16xbf16>
    tpu.vector_store %arg16[%c0_56, %c0_57, %c0_58, %c0_59], %83 {strides = array<i32>} : memref<1x4x8x16xbf16, #tpu.memory_space<vmem>>, vector<1x4x8x16xbf16>,
    %84 = vector.extract_strided_slice %78 {offsets = [0, 0, 0], sizes = [4, 8, 8], strides = [1, 1, 1]} : vector<4x8x24xf32> to vector<4x8x8xf32>
    %cst_60 = arith.constant 0.353553385 : f32
    %85 = vector.broadcast %cst_60 : f32 to vector<4x8x8xf32>
    %86 = arith.mulf %84, %85 : vector<4x8x8xf32>
    %87 = arith.truncf %86 : vector<4x8x8xf32> to vector<4x8x8xbf16>
    %88 = vector.extract_strided_slice %78 {offsets = [0, 0, 8], sizes = [4, 8, 8], strides = [1, 1, 1]} : vector<4x8x24xf32> to vector<4x8x8xf32>
    %89 = arith.truncf %88 : vector<4x8x8xf32> to vector<4x8x8xbf16>
    %90 = vector.extract_strided_slice %78 {offsets = [0, 0, 16], sizes = [4, 8, 8], strides = [1, 1, 1]} : vector<4x8x24xf32> to vector<4x8x8xf32>
    %91 = arith.truncf %90 : vector<4x8x8xf32> to vector<4x8x8xbf16>
    %cst_61 = arith.constant -1.000000e+30 : f32
    %92 = vector.broadcast %cst_61 : f32 to vector<4x8x1xf32>
    %cst_62 = arith.constant 0.000000e+00 : f32
    %93 = vector.broadcast %cst_62 : f32 to vector<4x8x1xf32>
    %cst_63 = arith.constant 0.000000e+00 : f32
    %94 = vector.broadcast %cst_63 : f32 to vector<4x8x8xf32>
    "tpu.trace_start"() <{level = 10 : i32, message = "htd,hsd->hts"}> : () -> ()
    %cst_64 = arith.constant dense<0.000000e+00> : vector<4x8x8xf32>
    %95 = tpu.matmul %87, %89, %cst_64 {dimension_numbers = #tpu.dot_dimension_numbers<[2], [2], [1], [1], [0, 0, 0, 1, 1, 1], [0], [0]>} : vector<4x8x8xbf16>, vector<4x8x8xbf16>, vector<4x8x8xf32> -> vector<4x8x8xf32>
    "tpu.trace_stop"() : () -> ()
    %96 = vector.broadcast %9 : vector<1x1x8xf32> to vector<4x8x8xf32>
    %97 = arith.addf %95, %96 : vector<4x8x8xf32>
    %cst_65 = arith.constant dense<0xFF800000> : vector<4x8xf32>
    %98 = vector.multi_reduction <maximumf>, %97, %cst_65 [2] : vector<4x8x8xf32> to vector<4x8xf32>
    %99 = vector.shape_cast %98 : vector<4x8xf32> to vector<4x8x1xf32>
    %100 = arith.maximumf %92, %99 : vector<4x8x1xf32>
    %101 = arith.subf %92, %100 : vector<4x8x1xf32>
    %102 = math.exp %101 : vector<4x8x1xf32>
    %103 = vector.broadcast %100 : vector<4x8x1xf32> to vector<4x8x8xf32>
    %104 = arith.subf %97, %103 : vector<4x8x8xf32>
    %105 = math.exp %104 : vector<4x8x8xf32>
    %106 = arith.mulf %102, %93 : vector<4x8x1xf32>
    %cst_66 = arith.constant dense<0.000000e+00> : vector<4x8xf32>
    %107 = vector.multi_reduction <add>, %105, %cst_66 [2] : vector<4x8x8xf32> to vector<4x8xf32>
    %108 = vector.shape_cast %107 : vector<4x8xf32> to vector<4x8x1xf32>
    %109 = arith.addf %106, %108 : vector<4x8x1xf32>
    %110 = vector.broadcast %12 : vector<1x1x8xf32> to vector<4x8x8xf32>
    %111 = arith.mulf %105, %110 : vector<4x8x8xf32>
    %112 = arith.truncf %111 : vector<4x8x8xf32> to vector<4x8x8xbf16>
    %113 = vector.broadcast %102 : vector<4x8x1xf32> to vector<4x8x8xf32>
    %114 = arith.mulf %113, %94 : vector<4x8x8xf32>
    "tpu.trace_start"() <{level = 10 : i32, message = "hts,hsd->htd"}> : () -> ()
    %cst_67 = arith.constant dense<0.000000e+00> : vector<4x8x8xf32>
    %115 = tpu.matmul %112, %91, %cst_67 {dimension_numbers = #tpu.dot_dimension_numbers<[2], [1], [1], [2], [0, 0, 0, 1, 1, 2], [0], [0]>} : vector<4x8x8xbf16>, vector<4x8x8xbf16>, vector<4x8x8xf32> -> vector<4x8x8xf32>
    "tpu.trace_stop"() : () -> ()
    %116 = arith.addf %114, %115 : vector<4x8x8xf32>
    %117 = tpu.reciprocal %109 {approx = true} : vector<4x8x1xf32> -> vector<4x8x1xf32>
    %118 = vector.broadcast %117 : vector<4x8x1xf32> to vector<4x8x8xf32>
    %119 = arith.mulf %116, %118 : vector<4x8x8xf32>
    %120 = vector.extract_strided_slice %119 {offsets = [0, 0, 0], sizes = [1, 8, 8], strides = [1, 1, 1]} : vector<4x8x8xf32> to vector<1x8x8xf32>
    %121 = vector.shape_cast %120 : vector<1x8x8xf32> to vector<8x8xf32>
    %122 = arith.truncf %121 : vector<8x8xf32> to vector<8x8xbf16>
    %c0_68 = arith.constant 0 : index
    %c0_69 = arith.constant 0 : index
    %c0_70 = arith.constant 0 : index
    %123 = vector.load %arg5[%c0_68, %c0_69, %c0_70] : memref<4x8x32xbf16, #tpu.memory_space<vmem>>, vector<1x8x32xbf16>
    %124 = vector.shape_cast %123 : vector<1x8x32xbf16> to vector<8x32xbf16>
    %cst_71 = arith.constant dense<0.000000e+00> : vector<8x32xf32>
    %125 = tpu.matmul %122, %124, %cst_71 {dimension_numbers = #tpu.dot_dimension_numbers<[1], [0], [0], [1], [0, 0, 1, 1], [], []>} : vector<8x8xbf16>, vector<8x32xbf16>, vector<8x32xf32> -> vector<8x32xf32>
    %126 = vector.extract_strided_slice %119 {offsets = [1, 0, 0], sizes = [1, 8, 8], strides = [1, 1, 1]} : vector<4x8x8xf32> to vector<1x8x8xf32>
    %127 = vector.shape_cast %126 : vector<1x8x8xf32> to vector<8x8xf32>
    %128 = arith.truncf %127 : vector<8x8xf32> to vector<8x8xbf16>
    %c1_72 = arith.constant 1 : index
    %c0_73 = arith.constant 0 : index
    %c0_74 = arith.constant 0 : index
    %129 = vector.load %arg5[%c1_72, %c0_73, %c0_74] : memref<4x8x32xbf16, #tpu.memory_space<vmem>>, vector<1x8x32xbf16>
    %130 = vector.shape_cast %129 : vector<1x8x32xbf16> to vector<8x32xbf16>
    %cst_75 = arith.constant dense<0.000000e+00> : vector<8x32xf32>
    %131 = tpu.matmul %128, %130, %cst_75 {dimension_numbers = #tpu.dot_dimension_numbers<[1], [0], [0], [1], [0, 0, 1, 1], [], []>} : vector<8x8xbf16>, vector<8x32xbf16>, vector<8x32xf32> -> vector<8x32xf32>
    %132 = arith.addf %125, %131 : vector<8x32xf32>
    %133 = vector.extract_strided_slice %119 {offsets = [2, 0, 0], sizes = [1, 8, 8], strides = [1, 1, 1]} : vector<4x8x8xf32> to vector<1x8x8xf32>
    %134 = vector.shape_cast %133 : vector<1x8x8xf32> to vector<8x8xf32>
    %135 = arith.truncf %134 : vector<8x8xf32> to vector<8x8xbf16>
    %c2_76 = arith.constant 2 : index
    %c0_77 = arith.constant 0 : index
    %c0_78 = arith.constant 0 : index
    %136 = vector.load %arg5[%c2_76, %c0_77, %c0_78] : memref<4x8x32xbf16, #tpu.memory_space<vmem>>, vector<1x8x32xbf16>
    %137 = vector.shape_cast %136 : vector<1x8x32xbf16> to vector<8x32xbf16>
    %cst_79 = arith.constant dense<0.000000e+00> : vector<8x32xf32>
    %138 = tpu.matmul %135, %137, %cst_79 {dimension_numbers = #tpu.dot_dimension_numbers<[1], [0], [0], [1], [0, 0, 1, 1], [], []>} : vector<8x8xbf16>, vector<8x32xbf16>, vector<8x32xf32> -> vector<8x32xf32>
    %139 = arith.addf %132, %138 : vector<8x32xf32>
    %140 = vector.extract_strided_slice %119 {offsets = [3, 0, 0], sizes = [1, 8, 8], strides = [1, 1, 1]} : vector<4x8x8xf32> to vector<1x8x8xf32>
    %141 = vector.shape_cast %140 : vector<1x8x8xf32> to vector<8x8xf32>
    %142 = arith.truncf %141 : vector<8x8xf32> to vector<8x8xbf16>
    %c3_80 = arith.constant 3 : index
    %c0_81 = arith.constant 0 : index
    %c0_82 = arith.constant 0 : index
    %143 = vector.load %arg5[%c3_80, %c0_81, %c0_82] : memref<4x8x32xbf16, #tpu.memory_space<vmem>>, vector<1x8x32xbf16>
    %144 = vector.shape_cast %143 : vector<1x8x32xbf16> to vector<8x32xbf16>
    %cst_83 = arith.constant dense<0.000000e+00> : vector<8x32xf32>
    %145 = tpu.matmul %142, %144, %cst_83 {dimension_numbers = #tpu.dot_dimension_numbers<[1], [0], [0], [1], [0, 0, 1, 1], [], []>} : vector<8x8xbf16>, vector<8x32xbf16>, vector<8x32xf32> -> vector<8x32xf32>
    %146 = arith.addf %139, %145 : vector<8x32xf32>
    %147 = arith.addf %1, %146 : vector<8x32xf32>
    %c0_84 = arith.constant 0 : index
    %c0_85 = arith.constant 0 : index
    %148 = vector.load %arg6[%c0_84, %c0_85] : memref<1x32xf32, #tpu.memory_space<vmem>>, vector<1x32xf32>
    %149 = vector.broadcast %148 : vector<1x32xf32> to vector<8x32xf32>
    %150 = arith.addf %147, %149 : vector<8x32xf32>
    %c0_86 = arith.constant 0 : index
    %c0_87 = arith.constant 0 : index
    %151 = vector.load %arg9[%c0_86, %c0_87] : memref<1x32xf32, #tpu.memory_space<vmem>>, vector<1x32xf32>
    %c0_88 = arith.constant 0 : index
    %c0_89 = arith.constant 0 : index
    %152 = vector.load %arg10[%c0_88, %c0_89] : memref<1x32xf32, #tpu.memory_space<vmem>>, vector<1x32xf32>
    %cst_90 = arith.constant dense<0.000000e+00> : vector<8xf32>
    %153 = vector.multi_reduction <add>, %150, %cst_90 [1] : vector<8x32xf32> to vector<8xf32>
    %154 = vector.shape_cast %153 : vector<8xf32> to vector<8x1xf32>
    %cst_91 = arith.constant 3.200000e+01 : f32
    %155 = vector.broadcast %cst_91 : f32 to vector<8x1xf32>
    %156 = arith.divf %154, %155 : vector<8x1xf32>
    %157 = vector.broadcast %156 : vector<8x1xf32> to vector<8x32xf32>
    %158 = arith.subf %150, %157 : vector<8x32xf32>
    %159 = arith.mulf %158, %158 : vector<8x32xf32>
    %cst_92 = arith.constant dense<0.000000e+00> : vector<8xf32>
    %160 = vector.multi_reduction <add>, %159, %cst_92 [1] : vector<8x32xf32> to vector<8xf32>
    %161 = vector.shape_cast %160 : vector<8xf32> to vector<8x1xf32>
    %cst_93 = arith.constant 3.200000e+01 : f32
    %162 = vector.broadcast %cst_93 : f32 to vector<8x1xf32>
    %163 = arith.divf %161, %162 : vector<8x1xf32>
    %164 = vector.broadcast %156 : vector<8x1xf32> to vector<8x32xf32>
    %165 = arith.subf %150, %164 : vector<8x32xf32>
    %cst_94 = arith.constant 9.99999996E-13 : f32
    %166 = vector.broadcast %cst_94 : f32 to vector<8x1xf32>
    %167 = arith.addf %163, %166 : vector<8x1xf32>
    %168 = math.rsqrt %167 : vector<8x1xf32>
    %169 = vector.broadcast %168 : vector<8x1xf32> to vector<8x32xf32>
    %170 = arith.mulf %165, %169 : vector<8x32xf32>
    %171 = vector.broadcast %151 : vector<1x32xf32> to vector<8x32xf32>
    %172 = arith.mulf %170, %171 : vector<8x32xf32>
    %173 = vector.broadcast %152 : vector<1x32xf32> to vector<8x32xf32>
    %174 = arith.addf %172, %173 : vector<8x32xf32>
    %175 = arith.truncf %174 : vector<8x32xf32> to vector<8x32xbf16>
    %c0_95 = arith.constant 0 : index
    %c0_96 = arith.constant 0 : index
    %176 = vector.load %arg11[%c0_95, %c0_96] : memref<32x64xbf16, #tpu.memory_space<vmem>>, vector<32x64xbf16>
    %cst_97 = arith.constant dense<0.000000e+00> : vector<8x64xf32>
    %177 = tpu.matmul %175, %176, %cst_97 {dimension_numbers = #tpu.dot_dimension_numbers<[1], [0], [0], [1], [0, 0, 1, 1], [], []>} : vector<8x32xbf16>, vector<32x64xbf16>, vector<8x64xf32> -> vector<8x64xf32>
    %c0_98 = arith.constant 0 : index
    %c0_99 = arith.constant 0 : index
    %178 = vector.load %arg12[%c0_98, %c0_99] : memref<1x64xf32, #tpu.memory_space<vmem>>, vector<1x64xf32>
    %179 = vector.broadcast %178 : vector<1x64xf32> to vector<8x64xf32>
    %180 = arith.addf %177, %179 : vector<8x64xf32>
    %cst_100 = arith.constant 0.000000e+00 : f32
    %181 = vector.broadcast %cst_100 : f32 to vector<8x64xf32>
    %182 = arith.maximumf %180, %181 : vector<8x64xf32>
    %183 = arith.truncf %182 : vector<8x64xf32> to vector<8x64xbf16>
    %c0_101 = arith.constant 0 : index
    %c0_102 = arith.constant 0 : index
    %184 = vector.load %arg13[%c0_101, %c0_102] : memref<64x32xbf16, #tpu.memory_space<vmem>>, vector<64x32xbf16>
    %cst_103 = arith.constant dense<0.000000e+00> : vector<8x32xf32>
    %185 = tpu.matmul %183, %184, %cst_103 {dimension_numbers = #tpu.dot_dimension_numbers<[1], [0], [0], [1], [0, 0, 1, 1], [], []>} : vector<8x64xbf16>, vector<64x32xbf16>, vector<8x32xf32> -> vector<8x32xf32>
    %186 = arith.addf %150, %185 : vector<8x32xf32>
    %c0_104 = arith.constant 0 : index
    %c0_105 = arith.constant 0 : index
    %187 = vector.load %arg14[%c0_104, %c0_105] : memref<1x32xf32, #tpu.memory_space<vmem>>, vector<1x32xf32>
    %188 = vector.broadcast %187 : vector<1x32xf32> to vector<8x32xf32>
    %189 = arith.addf %186, %188 : vector<8x32xf32>
    %c0_106 = arith.constant 0 : index
    %c0_107 = arith.constant 0 : index
    %c0_108 = arith.constant 0 : index
    %190 = vector.load %arg15[%c0_106, %c0_107, %c0_108] : memref<1x8x32xf32, #tpu.memory_space<vmem>>, vector<1x8x32xf32>
    %191 = vector.shape_cast %190 : vector<1x8x32xf32> to vector<8x32xf32>
    %192 = vector.shape_cast %189 : vector<8x32xf32> to vector<1x8x32xf32>
    tpu.vector_store %arg15[%c0_106, %c0_107, %c0_108], %192 {strides = array<i32>} : memref<1x8x32xf32, #tpu.memory_space<vmem>>, vector<1x8x32xf32>,
    return
  }
  func.func @transform_0(%arg0: i32) -> (i32, i32, i32) {
    %c0_i32 = arith.constant 0 : i32
    %c0_i32_0 = arith.constant 0 : i32
    %c0_i32_1 = arith.constant 0 : i32
    return %arg0, %c0_i32, %c0_i32_0 : i32, i32, i32
  }
  func.func @transform_1(%arg0: i32) -> (i32, i32, i32) {
    %c0_i32 = arith.constant 0 : i32
    %c0_i32_0 = arith.constant 0 : i32
    %c0_i32_1 = arith.constant 0 : i32
    return %arg0, %c0_i32, %c0_i32_0 : i32, i32, i32
  }
  func.func @transform_2(%arg0: i32) -> (i32, i32, i32) {
    %c0_i32 = arith.constant 0 : i32
    %c0_i32_0 = arith.constant 0 : i32
    %c0_i32_1 = arith.constant 0 : i32
    %c0_i32_2 = arith.constant 0 : i32
    return %c0_i32, %c0_i32_0, %c0_i32_1 : i32, i32, i32
  }
  func.func @transform_3(%arg0: i32) -> (i32, i32, i32) {
    %c0_i32 = arith.constant 0 : i32
    %c0_i32_0 = arith.constant 0 : i32
    %c0_i32_1 = arith.constant 0 : i32
    %c0_i32_2 = arith.constant 0 : i32
    return %c0_i32, %c0_i32_0, %c0_i32_1 : i32, i32, i32
  }
  func.func @transform_4(%arg0: i32) -> (i32, i32, i32) {
    %c0_i32 = arith.constant 0 : i32
    %c0_i32_0 = arith.constant 0 : i32
    %c0_i32_1 = arith.constant 0 : i32
    %c0_i32_2 = arith.constant 0 : i32
    return %c0_i32, %c0_i32_0, %c0_i32_1 : i32, i32, i32
  }
  func.func @transform_5(%arg0: i32) -> (i32, i32) {
    %c0_i32 = arith.constant 0 : i32
    %c0_i32_0 = arith.constant 0 : i32
    %c0_i32_1 = arith.constant 0 : i32
    return %c0_i32, %c0_i32_0 : i32, i32
  }
  func.func @transform_6(%arg0: i32) -> (i32, i32) {
    %c0_i32 = arith.constant 0 : i32
    %c0_i32_0 = arith.constant 0 : i32
    %c0_i32_1 = arith.constant 0 : i32
    return %c0_i32, %c0_i32_0 : i32, i32
  }
  func.func @transform_7(%arg0: i32) -> (i32, i32) {
    %c0_i32 = arith.constant 0 : i32
    %c0_i32_0 = arith.constant 0 : i32
    %c0_i32_1 = arith.constant 0 : i32
    return %c0_i32, %c0_i32_0 : i32, i32
  }
  func.func @transform_8(%arg0: i32) -> (i32, i32) {
    %c0_i32 = arith.constant 0 : i32
    %c0_i32_0 = arith.constant 0 : i32
    %c0_i32_1 = arith.constant 0 : i32
    return %c0_i32, %c0_i32_0 : i32, i32
  }
  func.func @transform_9(%arg0: i32) -> (i32, i32) {
    %c0_i32 = arith.constant 0 : i32
    %c0_i32_0 = arith.constant 0 : i32
    %c0_i32_1 = arith.constant 0 : i32
    return %c0_i32, %c0_i32_0 : i32, i32
  }
  func.func @transform_10(%arg0: i32) -> (i32, i32) {
    %c0_i32 = arith.constant 0 : i32
    %c0_i32_0 = arith.constant 0 : i32
    %c0_i32_1 = arith.constant 0 : i32
    return %c0_i32, %c0_i32_0 : i32, i32
  }
  func.func @transform_11(%arg0: i32) -> (i32, i32) {
    %c0_i32 = arith.constant 0 : i32
    %c0_i32_0 = arith.constant 0 : i32
    %c0_i32_1 = arith.constant 0 : i32
    return %c0_i32, %c0_i32_0 : i32, i32
  }
  func.func @transform_12(%arg0: i32) -> (i32, i32) {
    %c0_i32 = arith.constant 0 : i32
    %c0_i32_0 = arith.constant 0 : i32
    %c0_i32_1 = arith.constant 0 : i32
    return %c0_i32, %c0_i32_0 : i32, i32
  }
  func.func @transform_13(%arg0: i32) -> (i32, i32) {
    %c0_i32 = arith.constant 0 : i32
    %c0_i32_0 = arith.constant 0 : i32
    %c0_i32_1 = arith.constant 0 : i32
    return %c0_i32, %c0_i32_0 : i32, i32
  }
  func.func @transform_14(%arg0: i32) -> (i32, i32, i32) {
    %c0_i32 = arith.constant 0 : i32
    %c0_i32_0 = arith.constant 0 : i32
    %c0_i32_1 = arith.constant 0 : i32
    return %arg0, %c0_i32, %c0_i32_0 : i32, i32, i32
  }
  func.func @transform_15(%arg0: i32) -> (i32, i32, i32, i32) {
    %c0_i32 = arith.constant 0 : i32
    %c0_i32_0 = arith.constant 0 : i32
    %c0_i32_1 = arith.constant 0 : i32
    %c0_i32_2 = arith.constant 0 : i32
    return %arg0, %c0_i32, %c0_i32_0, %c0_i32_1 : i32, i32, i32, i32
  }
}

module attributes {stable_mosaic.version = 11 : i64} {
  func.func @_encoder_layer_kernel(%arg0: i32, %arg1: memref<1x8x32xf32, #tpu.memory_space<vmem>>, %arg2: memref<1x1x8xf32, #tpu.memory_space<vmem>>, %arg3: memref<4x32x24xbf16, #tpu.memory_space<vmem>>, %arg4: memref<4x1x24xf32, #tpu.memory_space<vmem>>, %arg5: memref<4x8x32xbf16, #tpu.memory_space<vmem>>, %arg6: memref<1x32xf32, #tpu.memory_space<vmem>>, %arg7: memref<1x32xf32, #tpu.memory_space<vmem>>, %arg8: memref<1x32xf32, #tpu.memory_space<vmem>>, %arg9: memref<1x32xf32, #tpu.memory_space<vmem>>, %arg10: memref<1x32xf32, #tpu.memory_space<vmem>>, %arg11: memref<32x64xbf16, #tpu.memory_space<vmem>>, %arg12: memref<1x64xf32, #tpu.memory_space<vmem>>, %arg13: memref<64x32xbf16, #tpu.memory_space<vmem>>, %arg14: memref<1x32xf32, #tpu.memory_space<vmem>>, %arg15: memref<1x8x32xf32, #tpu.memory_space<vmem>>, %arg16: memref<1x4x8x16xbf16, #tpu.memory_space<vmem>>, %arg17: memref<4x8x24xf32, #tpu.memory_space<vmem>>) attributes {dimension_semantics = [#tpu.dimension_semantics<parallel>], iteration_bounds = array<i64: 2>, scalar_prefetch = 0 : i64, scratch_operands = 1 : i64, tpu.core_type = #tpu.core_type<tc>, window_params = [{transform_indices = @transform_0, window_bounds = array<i64: 1, 8, 32>}, {transform_indices = @transform_1, window_bounds = array<i64: 1, 1, 8>}, {pipeline_mode = #tpu.pipeline_mode<synchronous>, transform_indices = @transform_2, window_bounds = array<i64: 4, 32, 24>}, {pipeline_mode = #tpu.pipeline_mode<synchronous>, transform_indices = @transform_3, window_bounds = array<i64: 4, 1, 24>}, {pipeline_mode = #tpu.pipeline_mode<synchronous>, transform_indices = @transform_4, window_bounds = array<i64: 4, 8, 32>}, {pipeline_mode = #tpu.pipeline_mode<synchronous>, transform_indices = @transform_5, window_bounds = array<i64: 1, 32>}, {pipeline_mode = #tpu.pipeline_mode<synchronous>, transform_indices = @transform_6, window_bounds = array<i64: 1, 32>}, {pipeline_mode = #tpu.pipeline_mode<synchronous>, transform_indices = @transform_7, window_bounds = array<i64: 1, 32>}, {pipeline_mode = #tpu.pipeline_mode<synchronous>, transform_indices = @transform_8, window_bounds = array<i64: 1, 32>}, {pipeline_mode = #tpu.pipeline_mode<synchronous>, transform_indices = @transform_9, window_bounds = array<i64: 1, 32>}, {pipeline_mode = #tpu.pipeline_mode<synchronous>, transform_indices = @transform_10, window_bounds = array<i64: 32, 64>}, {pipeline_mode = #tpu.pipeline_mode<synchronous>, transform_indices = @transform_11, window_bounds = array<i64: 1, 64>}, {pipeline_mode = #tpu.pipeline_mode<synchronous>, transform_indices = @transform_12, window_bounds = array<i64: 64, 32>}, {pipeline_mode = #tpu.pipeline_mode<synchronous>, transform_indices = @transform_13, window_bounds = array<i64: 1, 32>}, {transform_indices = @transform_14, window_bounds = array<i64: 1, 8, 32>}, {transform_indices = @transform_15, window_bounds = array<i64: 1, 4, 8, 16>}]} {
    %c0 = arith.constant 0 : index
    %c0_0 = arith.constant 0 : index
    %c0_1 = arith.constant 0 : index
    %0 = vector.load %arg1[%c0, %c0_0, %c0_1] : memref<1x8x32xf32, #tpu.memory_space<vmem>>, vector<1x8x32xf32>
    %1 = vector.shape_cast %0 : vector<1x8x32xf32> to vector<8x32xf32>
    %c0_2 = arith.constant 0 : index
    %c0_3 = arith.constant 0 : index
    %c0_4 = arith.constant 0 : index
    %2 = vector.load %arg2[%c0_2, %c0_3, %c0_4] : memref<1x1x8xf32, #tpu.memory_space<vmem>>, vector<1x1x8xf32>
    %3 = vector.shape_cast %2 : vector<1x1x8xf32> to vector<1x8xf32>
    %cst = arith.constant 0.000000e+00 : f32
    %4 = vector.broadcast %cst : f32 to vector<1x8xf32>
    %5 = arith.cmpf ogt, %3, %4 : vector<1x8xf32>
    %cst_5 = arith.constant 0.000000e+00 : f32
    %cst_6 = arith.constant -1.000000e+30 : f32
    %6 = vector.broadcast %cst_5 : f32 to vector<1x8xf32>
    %7 = vector.broadcast %cst_6 : f32 to vector<1x8xf32>
    %8 = arith.select %5, %6, %7 : vector<1x8xi1>, vector<1x8xf32>
    %9 = vector.shape_cast %8 : vector<1x8xf32> to vector<1x1x8xf32>
    %10 = arith.extui %5 : vector<1x8xi1> to vector<1x8xi32>
    %11 = arith.sitofp %10 : vector<1x8xi32> to vector<1x8xf32>
    %12 = vector.shape_cast %11 : vector<1x8xf32> to vector<1x1x8xf32>
    %c0_7 = arith.constant 0 : index
    %c0_8 = arith.constant 0 : index
    %13 = vector.load %arg7[%c0_7, %c0_8] : memref<1x32xf32, #tpu.memory_space<vmem>>, vector<1x32xf32>
    %c0_9 = arith.constant 0 : index
    %c0_10 = arith.constant 0 : index
    %14 = vector.load %arg8[%c0_9, %c0_10] : memref<1x32xf32, #tpu.memory_space<vmem>>, vector<1x32xf32>
    %cst_11 = arith.constant dense<0.000000e+00> : vector<8xf32>
    %15 = vector.multi_reduction <add>, %1, %cst_11 [1] : vector<8x32xf32> to vector<8xf32>
    %16 = vector.shape_cast %15 : vector<8xf32> to vector<8x1xf32>
    %cst_12 = arith.constant 3.200000e+01 : f32
    %17 = vector.broadcast %cst_12 : f32 to vector<8x1xf32>
    %18 = arith.divf %16, %17 : vector<8x1xf32>
    %19 = vector.broadcast %18 : vector<8x1xf32> to vector<8x32xf32>
    %20 = arith.subf %1, %19 : vector<8x32xf32>
    %21 = arith.mulf %20, %20 : vector<8x32xf32>
    %cst_13 = arith.constant dense<0.000000e+00> : vector<8xf32>
    %22 = vector.multi_reduction <add>, %21, %cst_13 [1] : vector<8x32xf32> to vector<8xf32>
    %23 = vector.shape_cast %22 : vector<8xf32> to vector<8x1xf32>
    %cst_14 = arith.constant 3.200000e+01 : f32
    %24 = vector.broadcast %cst_14 : f32 to vector<8x1xf32>
    %25 = arith.divf %23, %24 : vector<8x1xf32>
    %26 = vector.broadcast %18 : vector<8x1xf32> to vector<8x32xf32>
    %27 = arith.subf %1, %26 : vector<8x32xf32>
    %cst_15 = arith.constant 9.99999996E-13 : f32
    %28 = vector.broadcast %cst_15 : f32 to vector<8x1xf32>
    %29 = arith.addf %25, %28 : vector<8x1xf32>
    %30 = math.rsqrt %29 : vector<8x1xf32>
    %31 = vector.broadcast %30 : vector<8x1xf32> to vector<8x32xf32>
    %32 = arith.mulf %27, %31 : vector<8x32xf32>
    %33 = vector.broadcast %13 : vector<1x32xf32> to vector<8x32xf32>
    %34 = arith.mulf %32, %33 : vector<8x32xf32>
    %35 = vector.broadcast %14 : vector<1x32xf32> to vector<8x32xf32>
    %36 = arith.addf %34, %35 : vector<8x32xf32>
    %37 = arith.truncf %36 : vector<8x32xf32> to vector<8x32xbf16>
    %c0_16 = arith.constant 0 : index
    %c0_17 = arith.constant 0 : index
    %c0_18 = arith.constant 0 : index
    %38 = vector.load %arg3[%c0_16, %c0_17, %c0_18] : memref<4x32x24xbf16, #tpu.memory_space<vmem>>, vector<1x32x24xbf16>
    %39 = vector.shape_cast %38 : vector<1x32x24xbf16> to vector<32x24xbf16>
    %cst_19 = arith.constant dense<0.000000e+00> : vector<8x24xf32>
    %40 = tpu.matmul %37, %39, %cst_19 {dimension_numbers = #tpu.dot_dimension_numbers<[1], [0], [0], [1], [0, 0, 1, 1], [], []>} : vector<8x32xbf16>, vector<32x24xbf16>, vector<8x24xf32> -> vector<8x24xf32>
    %c0_20 = arith.constant 0 : index
    %c0_21 = arith.constant 0 : index
    %c0_22 = arith.constant 0 : index
    %41 = vector.load %arg4[%c0_20, %c0_21, %c0_22] : memref<4x1x24xf32, #tpu.memory_space<vmem>>, vector<1x1x24xf32>
    %42 = vector.shape_cast %41 : vector<1x1x24xf32> to vector<1x24xf32>
    %43 = vector.broadcast %42 : vector<1x24xf32> to vector<8x24xf32>
    %44 = arith.addf %40, %43 : vector<8x24xf32>
    %c0_23 = arith.constant 0 : index
    %c0_24 = arith.constant 0 : index
    %c0_25 = arith.constant 0 : index
    %45 = vector.load %arg17[%c0_23, %c0_24, %c0_25] : memref<4x8x24xf32, #tpu.memory_space<vmem>>, vector<1x8x24xf32>
    %46 = vector.shape_cast %45 : vector<1x8x24xf32> to vector<8x24xf32>
    %47 = vector.shape_cast %44 : vector<8x24xf32> to vector<1x8x24xf32>
    tpu.vector_store %arg17[%c0_23, %c0_24, %c0_25], %47 {strides = array<i32>} : memref<4x8x24xf32, #tpu.memory_space<vmem>>, vector<1x8x24xf32>,
    %c1 = arith.constant 1 : index
    %c0_26 = arith.constant 0 : index
    %c0_27 = arith.constant 0 : index
    %48 = vector.load %arg3[%c1, %c0_26, %c0_27] : memref<4x32x24xbf16, #tpu.memory_space<vmem>>, vector<1x32x24xbf16>
    %49 = vector.shape_cast %48 : vector<1x32x24xbf16> to vector<32x24xbf16>
    %cst_28 = arith.constant dense<0.000000e+00> : vector<8x24xf32>
    %50 = tpu.matmul %37, %49, %cst_28 {dimension_numbers = #tpu.dot_dimension_numbers<[1], [0], [0], [1], [0, 0, 1, 1], [], []>} : vector<8x32xbf16>, vector<32x24xbf16>, vector<8x24xf32> -> vector<8x24xf32>
    %c1_29 = arith.constant 1 : index
    %c0_30 = arith.constant 0 : index
    %c0_31 = arith.constant 0 : index
    %51 = vector.load %arg4[%c1_29, %c0_30, %c0_31] : memref<4x1x24xf32, #tpu.memory_space<vmem>>, vector<1x1x24xf32>
    %52 = vector.shape_cast %51 : vector<1x1x24xf32> to vector<1x24xf32>
    %53 = vector.broadcast %52 : vector<1x24xf32> to vector<8x24xf32>
    %54 = arith.addf %50, %53 : vector<8x24xf32>
    %c1_32 = arith.constant 1 : index
    %c0_33 = arith.constant 0 : index
    %c0_34 = arith.constant 0 : index
    %55 = vector.load %arg17[%c1_32, %c0_33, %c0_34] : memref<4x8x24xf32, #tpu.memory_space<vmem>>, vector<1x8x24xf32>
    %56 = vector.shape_cast %55 : vector<1x8x24xf32> to vector<8x24xf32>
    %57 = vector.shape_cast %54 : vector<8x24xf32> to vector<1x8x24xf32>
    tpu.vector_store %arg17[%c1_32, %c0_33, %c0_34], %57 {strides = array<i32>} : memref<4x8x24xf32, #tpu.memory_space<vmem>>, vector<1x8x24xf32>,
    %c2 = arith.constant 2 : index
    %c0_35 = arith.constant 0 : index
    %c0_36 = arith.constant 0 : index
    %58 = vector.load %arg3[%c2, %c0_35, %c0_36] : memref<4x32x24xbf16, #tpu.memory_space<vmem>>, vector<1x32x24xbf16>
    %59 = vector.shape_cast %58 : vector<1x32x24xbf16> to vector<32x24xbf16>
    %cst_37 = arith.constant dense<0.000000e+00> : vector<8x24xf32>
    %60 = tpu.matmul %37, %59, %cst_37 {dimension_numbers = #tpu.dot_dimension_numbers<[1], [0], [0], [1], [0, 0, 1, 1], [], []>} : vector<8x32xbf16>, vector<32x24xbf16>, vector<8x24xf32> -> vector<8x24xf32>
    %c2_38 = arith.constant 2 : index
    %c0_39 = arith.constant 0 : index
    %c0_40 = arith.constant 0 : index
    %61 = vector.load %arg4[%c2_38, %c0_39, %c0_40] : memref<4x1x24xf32, #tpu.memory_space<vmem>>, vector<1x1x24xf32>
    %62 = vector.shape_cast %61 : vector<1x1x24xf32> to vector<1x24xf32>
    %63 = vector.broadcast %62 : vector<1x24xf32> to vector<8x24xf32>
    %64 = arith.addf %60, %63 : vector<8x24xf32>
    %c2_41 = arith.constant 2 : index
    %c0_42 = arith.constant 0 : index
    %c0_43 = arith.constant 0 : index
    %65 = vector.load %arg17[%c2_41, %c0_42, %c0_43] : memref<4x8x24xf32, #tpu.memory_space<vmem>>, vector<1x8x24xf32>
    %66 = vector.shape_cast %65 : vector<1x8x24xf32> to vector<8x24xf32>
    %67 = vector.shape_cast %64 : vector<8x24xf32> to vector<1x8x24xf32>
    tpu.vector_store %arg17[%c2_41, %c0_42, %c0_43], %67 {strides = array<i32>} : memref<4x8x24xf32, #tpu.memory_space<vmem>>, vector<1x8x24xf32>,
    %c3 = arith.constant 3 : index
    %c0_44 = arith.constant 0 : index
    %c0_45 = arith.constant 0 : index
    %68 = vector.load %arg3[%c3, %c0_44, %c0_45] : memref<4x32x24xbf16, #tpu.memory_space<vmem>>, vector<1x32x24xbf16>
    %69 = vector.shape_cast %68 : vector<1x32x24xbf16> to vector<32x24xbf16>
    %cst_46 = arith.constant dense<0.000000e+00> : vector<8x24xf32>
    %70 = tpu.matmul %37, %69, %cst_46 {dimension_numbers = #tpu.dot_dimension_numbers<[1], [0], [0], [1], [0, 0, 1, 1], [], []>} : vector<8x32xbf16>, vector<32x24xbf16>, vector<8x24xf32> -> vector<8x24xf32>
    %c3_47 = arith.constant 3 : index
    %c0_48 = arith.constant 0 : index
    %c0_49 = arith.constant 0 : index
    %71 = vector.load %arg4[%c3_47, %c0_48, %c0_49] : memref<4x1x24xf32, #tpu.memory_space<vmem>>, vector<1x1x24xf32>
    %72 = vector.shape_cast %71 : vector<1x1x24xf32> to vector<1x24xf32>
    %73 = vector.broadcast %72 : vector<1x24xf32> to vector<8x24xf32>
    %74 = arith.addf %70, %73 : vector<8x24xf32>
    %c3_50 = arith.constant 3 : index
    %c0_51 = arith.constant 0 : index
    %c0_52 = arith.constant 0 : index
    %75 = vector.load %arg17[%c3_50, %c0_51, %c0_52] : memref<4x8x24xf32, #tpu.memory_space<vmem>>, vector<1x8x24xf32>
    %76 = vector.shape_cast %75 : vector<1x8x24xf32> to vector<8x24xf32>
    %77 = vector.shape_cast %74 : vector<8x24xf32> to vector<1x8x24xf32>
    tpu.vector_store %arg17[%c3_50, %c0_51, %c0_52], %77 {strides = array<i32>} : memref<4x8x24xf32, #tpu.memory_space<vmem>>, vector<1x8x24xf32>,
    %c0_53 = arith.constant 0 : index
    %c0_54 = arith.constant 0 : index
    %c0_55 = arith.constant 0 : index
    %78 = vector.load %arg17[%c0_53, %c0_54, %c0_55] : memref<4x8x24xf32, #tpu.memory_space<vmem>>, vector<4x8x24xf32>
    %79 = vector.extract_strided_slice %78 {offsets = [0, 0, 8], sizes = [4, 8, 16], strides = [1, 1, 1]} : vector<4x8x24xf32> to vector<4x8x16xf32>
    %80 = arith.truncf %79 : vector<4x8x16xf32> to vector<4x8x16xbf16>
    %c0_56 = arith.constant 0 : index
    %c0_57 = arith.constant 0 : index
    %c0_58 = arith.constant 0 : index
    %c0_59 = arith.constant 0 : index
    %81 = vector.load %arg16[%c0_56, %c0_57, %c0_58, %c0_59] : memref<1x4x8x16xbf16, #tpu.memory_space<vmem>>, vector<1x4x8x16xbf16>
    %82 = vector.shape_cast %81 : vector<1x4x8x16xbf16> to vector<4x8x16xbf16>
    %83 = vector.shape_cast %80 : vector<4x8x16xbf16> to vector<1x4x8x16xbf16>
    tpu.vector_store %arg16[%c0_56, %c0_57, %c0_58, %c0_59], %83 {strides = array<i32>} : memref<1x4x8x16xbf16, #tpu.memory_space<vmem>>, vector<1x4x8x16xbf16>,
    %84 = vector.extract_strided_slice %78 {offsets = [0, 0, 0], sizes = [4, 8, 8], strides = [1, 1, 1]} : vector<4x8x24xf32> to vector<4x8x8xf32>
    %cst_60 = arith.constant 0.353553385 : f32
    %85 = vector.broadcast %cst_60 : f32 to vector<4x8x8xf32>
    %86 = arith.mulf %84, %85 : vector<4x8x8xf32>
    %87 = arith.truncf %86 : vector<4x8x8xf32> to vector<4x8x8xbf16>
    %88 = vector.extract_strided_slice %78 {offsets = [0, 0, 8], sizes = [4, 8, 8], strides = [1, 1, 1]} : vector<4x8x24xf32> to vector<4x8x8xf32>
    %89 = arith.truncf %88 : vector<4x8x8xf32> to vector<4x8x8xbf16>
    %90 = vector.extract_strided_slice %78 {offsets = [0, 0, 16], sizes = [4, 8, 8], strides = [1, 1, 1]} : vector<4x8x24xf32> to vector<4x8x8xf32>
    %91 = arith.truncf %90 : vector<4x8x8xf32> to vector<4x8x8xbf16>
    %cst_61 = arith.constant -1.000000e+30 : f32
    %92 = vector.broadcast %cst_61 : f32 to vector<4x8x1xf32>
    %cst_62 = arith.constant 0.000000e+00 : f32
    %93 = vector.broadcast %cst_62 : f32 to vector<4x8x1xf32>
    %cst_63 = arith.constant 0.000000e+00 : f32
    %94 = vector.broadcast %cst_63 : f32 to vector<4x8x8xf32>
    "tpu.trace_start"() <{level = 10 : i32, message = "htd,hsd->hts"}> : () -> ()
    %cst_64 = arith.constant dense<0.000000e+00> : vector<4x8x8xf32>
    %95 = tpu.matmul %87, %89, %cst_64 {dimension_numbers = #tpu.dot_dimension_numbers<[2], [2], [1], [1], [0, 0, 0, 1, 1, 1], [0], [0]>} : vector<4x8x8xbf16>, vector<4x8x8xbf16>, vector<4x8x8xf32> -> vector<4x8x8xf32>
    "tpu.trace_stop"() : () -> ()
    %96 = vector.broadcast %9 : vector<1x1x8xf32> to vector<4x8x8xf32>
    %97 = arith.addf %95, %96 : vector<4x8x8xf32>
    %cst_65 = arith.constant dense<0xFF800000> : vector<4x8xf32>
    %98 = vector.multi_reduction <maximumf>, %97, %cst_65 [2] : vector<4x8x8xf32> to vector<4x8xf32>
    %99 = vector.shape_cast %98 : vector<4x8xf32> to vector<4x8x1xf32>
    %100 = arith.maximumf %92, %99 : vector<4x8x1xf32>
    %101 = arith.subf %92, %100 : vector<4x8x1xf32>
    %102 = math.exp %101 : vector<4x8x1xf32>
    %103 = vector.broadcast %100 : vector<4x8x1xf32> to vector<4x8x8xf32>
    %104 = arith.subf %97, %103 : vector<4x8x8xf32>
    %105 = math.exp %104 : vector<4x8x8xf32>
    %106 = arith.mulf %102, %93 : vector<4x8x1xf32>
    %cst_66 = arith.constant dense<0.000000e+00> : vector<4x8xf32>
    %107 = vector.multi_reduction <add>, %105, %cst_66 [2] : vector<4x8x8xf32> to vector<4x8xf32>
    %108 = vector.shape_cast %107 : vector<4x8xf32> to vector<4x8x1xf32>
    %109 = arith.addf %106, %108 : vector<4x8x1xf32>
    %110 = vector.broadcast %12 : vector<1x1x8xf32> to vector<4x8x8xf32>
    %111 = arith.mulf %105, %110 : vector<4x8x8xf32>
    %112 = arith.truncf %111 : vector<4x8x8xf32> to vector<4x8x8xbf16>
    %113 = vector.broadcast %102 : vector<4x8x1xf32> to vector<4x8x8xf32>
    %114 = arith.mulf %113, %94 : vector<4x8x8xf32>
    "tpu.trace_start"() <{level = 10 : i32, message = "hts,hsd->htd"}> : () -> ()
    %cst_67 = arith.constant dense<0.000000e+00> : vector<4x8x8xf32>
    %115 = tpu.matmul %112, %91, %cst_67 {dimension_numbers = #tpu.dot_dimension_numbers<[2], [1], [1], [2], [0, 0, 0, 1, 1, 2], [0], [0]>} : vector<4x8x8xbf16>, vector<4x8x8xbf16>, vector<4x8x8xf32> -> vector<4x8x8xf32>
    "tpu.trace_stop"() : () -> ()
    %116 = arith.addf %114, %115 : vector<4x8x8xf32>
    %117 = tpu.reciprocal %109 {approx = true} : vector<4x8x1xf32> -> vector<4x8x1xf32>
    %118 = vector.broadcast %117 : vector<4x8x1xf32> to vector<4x8x8xf32>
    %119 = arith.mulf %116, %118 : vector<4x8x8xf32>
    %120 = vector.extract_strided_slice %119 {offsets = [0, 0, 0], sizes = [1, 8, 8], strides = [1, 1, 1]} : vector<4x8x8xf32> to vector<1x8x8xf32>
    %121 = vector.shape_cast %120 : vector<1x8x8xf32> to vector<8x8xf32>
    %122 = arith.truncf %121 : vector<8x8xf32> to vector<8x8xbf16>
    %c0_68 = arith.constant 0 : index
    %c0_69 = arith.constant 0 : index
    %c0_70 = arith.constant 0 : index
    %123 = vector.load %arg5[%c0_68, %c0_69, %c0_70] : memref<4x8x32xbf16, #tpu.memory_space<vmem>>, vector<1x8x32xbf16>
    %124 = vector.shape_cast %123 : vector<1x8x32xbf16> to vector<8x32xbf16>
    %cst_71 = arith.constant dense<0.000000e+00> : vector<8x32xf32>
    %125 = tpu.matmul %122, %124, %cst_71 {dimension_numbers = #tpu.dot_dimension_numbers<[1], [0], [0], [1], [0, 0, 1, 1], [], []>} : vector<8x8xbf16>, vector<8x32xbf16>, vector<8x32xf32> -> vector<8x32xf32>
    %126 = vector.extract_strided_slice %119 {offsets = [1, 0, 0], sizes = [1, 8, 8], strides = [1, 1, 1]} : vector<4x8x8xf32> to vector<1x8x8xf32>
    %127 = vector.shape_cast %126 : vector<1x8x8xf32> to vector<8x8xf32>
    %128 = arith.truncf %127 : vector<8x8xf32> to vector<8x8xbf16>
    %c1_72 = arith.constant 1 : index
    %c0_73 = arith.constant 0 : index
    %c0_74 = arith.constant 0 : index
    %129 = vector.load %arg5[%c1_72, %c0_73, %c0_74] : memref<4x8x32xbf16, #tpu.memory_space<vmem>>, vector<1x8x32xbf16>
    %130 = vector.shape_cast %129 : vector<1x8x32xbf16> to vector<8x32xbf16>
    %cst_75 = arith.constant dense<0.000000e+00> : vector<8x32xf32>
    %131 = tpu.matmul %128, %130, %cst_75 {dimension_numbers = #tpu.dot_dimension_numbers<[1], [0], [0], [1], [0, 0, 1, 1], [], []>} : vector<8x8xbf16>, vector<8x32xbf16>, vector<8x32xf32> -> vector<8x32xf32>
    %132 = arith.addf %125, %131 : vector<8x32xf32>
    %133 = vector.extract_strided_slice %119 {offsets = [2, 0, 0], sizes = [1, 8, 8], strides = [1, 1, 1]} : vector<4x8x8xf32> to vector<1x8x8xf32>
    %134 = vector.shape_cast %133 : vector<1x8x8xf32> to vector<8x8xf32>
    %135 = arith.truncf %134 : vector<8x8xf32> to vector<8x8xbf16>
    %c2_76 = arith.constant 2 : index
    %c0_77 = arith.constant 0 : index
    %c0_78 = arith.constant 0 : index
    %136 = vector.load %arg5[%c2_76, %c0_77, %c0_78] : memref<4x8x32xbf16, #tpu.memory_space<vmem>>, vector<1x8x32xbf16>
    %137 = vector.shape_cast %136 : vector<1x8x32xbf16> to vector<8x32xbf16>
    %cst_79 = arith.constant dense<0.000000e+00> : vector<8x32xf32>
    %138 = tpu.matmul %135, %137, %cst_79 {dimension_numbers = #tpu.dot_dimension_numbers<[1], [0], [0], [1], [0, 0, 1, 1], [], []>} : vector<8x8xbf16>, vector<8x32xbf16>, vector<8x32xf32> -> vector<8x32xf32>
    %139 = arith.addf %132, %138 : vector<8x32xf32>
    %140 = vector.extract_strided_slice %119 {offsets = [3, 0, 0], sizes = [1, 8, 8], strides = [1, 1, 1]} : vector<4x8x8xf32> to vector<1x8x8xf32>
    %141 = vector.shape_cast %140 : vector<1x8x8xf32> to vector<8x8xf32>
    %142 = arith.truncf %141 : vector<8x8xf32> to vector<8x8xbf16>
    %c3_80 = arith.constant 3 : index
    %c0_81 = arith.constant 0 : index
    %c0_82 = arith.constant 0 : index
    %143 = vector.load %arg5[%c3_80, %c0_81, %c0_82] : memref<4x8x32xbf16, #tpu.memory_space<vmem>>, vector<1x8x32xbf16>
    %144 = vector.shape_cast %143 : vector<1x8x32xbf16> to vector<8x32xbf16>
    %cst_83 = arith.constant dense<0.000000e+00> : vector<8x32xf32>
    %145 = tpu.matmul %142, %144, %cst_83 {dimension_numbers = #tpu.dot_dimension_numbers<[1], [0], [0], [1], [0, 0, 1, 1], [], []>} : vector<8x8xbf16>, vector<8x32xbf16>, vector<8x32xf32> -> vector<8x32xf32>
    %146 = arith.addf %139, %145 : vector<8x32xf32>
    %147 = arith.addf %1, %146 : vector<8x32xf32>
    %c0_84 = arith.constant 0 : index
    %c0_85 = arith.constant 0 : index
    %148 = vector.load %arg6[%c0_84, %c0_85] : memref<1x32xf32, #tpu.memory_space<vmem>>, vector<1x32xf32>
    %149 = vector.broadcast %148 : vector<1x32xf32> to vector<8x32xf32>
    %150 = arith.addf %147, %149 : vector<8x32xf32>
    %c0_86 = arith.constant 0 : index
    %c0_87 = arith.constant 0 : index
    %151 = vector.load %arg9[%c0_86, %c0_87] : memref<1x32xf32, #tpu.memory_space<vmem>>, vector<1x32xf32>
    %c0_88 = arith.constant 0 : index
    %c0_89 = arith.constant 0 : index
    %152 = vector.load %arg10[%c0_88, %c0_89] : memref<1x32xf32, #tpu.memory_space<vmem>>, vector<1x32xf32>
    %cst_90 = arith.constant dense<0.000000e+00> : vector<8xf32>
    %153 = vector.multi_reduction <add>, %150, %cst_90 [1] : vector<8x32xf32> to vector<8xf32>
    %154 = vector.shape_cast %153 : vector<8xf32> to vector<8x1xf32>
    %cst_91 = arith.constant 3.200000e+01 : f32
    %155 = vector.broadcast %cst_91 : f32 to vector<8x1xf32>
    %156 = arith.divf %154, %155 : vector<8x1xf32>
    %157 = vector.broadcast %156 : vector<8x1xf32> to vector<8x32xf32>
    %158 = arith.subf %150, %157 : vector<8x32xf32>
    %159 = arith.mulf %158, %158 : vector<8x32xf32>
    %cst_92 = arith.constant dense<0.000000e+00> : vector<8xf32>
    %160 = vector.multi_reduction <add>, %159, %cst_92 [1] : vector<8x32xf32> to vector<8xf32>
    %161 = vector.shape_cast %160 : vector<8xf32> to vector<8x1xf32>
    %cst_93 = arith.constant 3.200000e+01 : f32
    %162 = vector.broadcast %cst_93 : f32 to vector<8x1xf32>
    %163 = arith.divf %161, %162 : vector<8x1xf32>
    %164 = vector.broadcast %156 : vector<8x1xf32> to vector<8x32xf32>
    %165 = arith.subf %150, %164 : vector<8x32xf32>
    %cst_94 = arith.constant 9.99999996E-13 : f32
    %166 = vector.broadcast %cst_94 : f32 to vector<8x1xf32>
    %167 = arith.addf %163, %166 : vector<8x1xf32>
    %168 = math.rsqrt %167 : vector<8x1xf32>
    %169 = vector.broadcast %168 : vector<8x1xf32> to vector<8x32xf32>
    %170 = arith.mulf %165, %169 : vector<8x32xf32>
    %171 = vector.broadcast %151 : vector<1x32xf32> to vector<8x32xf32>
    %172 = arith.mulf %170, %171 : vector<8x32xf32>
    %173 = vector.broadcast %152 : vector<1x32xf32> to vector<8x32xf32>
    %174 = arith.addf %172, %173 : vector<8x32xf32>
    %175 = arith.truncf %174 : vector<8x32xf32> to vector<8x32xbf16>
    %c0_95 = arith.constant 0 : index
    %c0_96 = arith.constant 0 : index
    %176 = vector.load %arg11[%c0_95, %c0_96] : memref<32x64xbf16, #tpu.memory_space<vmem>>, vector<32x64xbf16>
    %cst_97 = arith.constant dense<0.000000e+00> : vector<8x64xf32>
    %177 = tpu.matmul %175, %176, %cst_97 {dimension_numbers = #tpu.dot_dimension_numbers<[1], [0], [0], [1], [0, 0, 1, 1], [], []>} : vector<8x32xbf16>, vector<32x64xbf16>, vector<8x64xf32> -> vector<8x64xf32>
    %c0_98 = arith.constant 0 : index
    %c0_99 = arith.constant 0 : index
    %178 = vector.load %arg12[%c0_98, %c0_99] : memref<1x64xf32, #tpu.memory_space<vmem>>, vector<1x64xf32>
    %179 = vector.broadcast %178 : vector<1x64xf32> to vector<8x64xf32>
    %180 = arith.addf %177, %179 : vector<8x64xf32>
    %cst_100 = arith.constant 0.000000e+00 : f32
    %181 = vector.broadcast %cst_100 : f32 to vector<8x64xf32>
    %182 = arith.maximumf %180, %181 : vector<8x64xf32>
    %183 = arith.truncf %182 : vector<8x64xf32> to vector<8x64xbf16>
    %c0_101 = arith.constant 0 : index
    %c0_102 = arith.constant 0 : index
    %184 = vector.load %arg13[%c0_101, %c0_102] : memref<64x32xbf16, #tpu.memory_space<vmem>>, vector<64x32xbf16>
    %cst_103 = arith.constant dense<0.000000e+00> : vector<8x32xf32>
    %185 = tpu.matmul %183, %184, %cst_103 {dimension_numbers = #tpu.dot_dimension_numbers<[1], [0], [0], [1], [0, 0, 1, 1], [], []>} : vector<8x64xbf16>, vector<64x32xbf16>, vector<8x32xf32> -> vector<8x32xf32>
    %186 = arith.addf %150, %185 : vector<8x32xf32>
    %c0_104 = arith.constant 0 : index
    %c0_105 = arith.constant 0 : index
    %187 = vector.load %arg14[%c0_104, %c0_105] : memref<1x32xf32, #tpu.memory_space<vmem>>, vector<1x32xf32>
    %188 = vector.broadcast %187 : vector<1x32xf32> to vector<8x32xf32>
    %189 = arith.addf %186, %188 : vector<8x32xf32>
    %c0_106 = arith.constant 0 : index
    %c0_107 = arith.constant 0 : index
    %c0_108 = arith.constant 0 : index
    %190 = vector.load %arg15[%c0_106, %c0_107, %c0_108] : memref<1x8x32xf32, #tpu.memory_space<vmem>>, vector<1x8x32xf32>
    %191 = vector.shape_cast %190 : vector<1x8x32xf32> to vector<8x32xf32>
    %192 = vector.shape_cast %189 : vector<8x32xf32> to vector<1x8x32xf32>
    tpu.vector_store %arg15[%c0_106, %c0_107, %c0_108], %192 {strides = array<i32>} : memref<1x8x32xf32, #tpu.memory_space<vmem>>, vector<1x8x32xf32>,
    return
  }
  func.func @transform_0(%arg0: i32) -> (i32, i32, i32) {
    %c0_i32 = arith.constant 0 : i32
    %c0_i32_0 = arith.constant 0 : i32
    %c0_i32_1 = arith.constant 0 : i32
    return %arg0, %c0_i32, %c0_i32_0 : i32, i32, i32
  }
  func.func @transform_1(%arg0: i32) -> (i32, i32, i32) {
    %c0_i32 = arith.constant 0 : i32
    %c0_i32_0 = arith.constant 0 : i32
    %c0_i32_1 = arith.constant 0 : i32
    return %arg0, %c0_i32, %c0_i32_0 : i32, i32, i32
  }
  func.func @transform_2(%arg0: i32) -> (i32, i32, i32) {
    %c0_i32 = arith.constant 0 : i32
    %c0_i32_0 = arith.constant 0 : i32
    %c0_i32_1 = arith.constant 0 : i32
    %c0_i32_2 = arith.constant 0 : i32
    return %c0_i32, %c0_i32_0, %c0_i32_1 : i32, i32, i32
  }
  func.func @transform_3(%arg0: i32) -> (i32, i32, i32) {
    %c0_i32 = arith.constant 0 : i32
    %c0_i32_0 = arith.constant 0 : i32
    %c0_i32_1 = arith.constant 0 : i32
    %c0_i32_2 = arith.constant 0 : i32
    return %c0_i32, %c0_i32_0, %c0_i32_1 : i32, i32, i32
  }
  func.func @transform_4(%arg0: i32) -> (i32, i32, i32) {
    %c0_i32 = arith.constant 0 : i32
    %c0_i32_0 = arith.constant 0 : i32
    %c0_i32_1 = arith.constant 0 : i32
    %c0_i32_2 = arith.constant 0 : i32
    return %c0_i32, %c0_i32_0, %c0_i32_1 : i32, i32, i32
  }
  func.func @transform_5(%arg0: i32) -> (i32, i32) {
    %c0_i32 = arith.constant 0 : i32
    %c0_i32_0 = arith.constant 0 : i32
    %c0_i32_1 = arith.constant 0 : i32
    return %c0_i32, %c0_i32_0 : i32, i32
  }
  func.func @transform_6(%arg0: i32) -> (i32, i32) {
    %c0_i32 = arith.constant 0 : i32
    %c0_i32_0 = arith.constant 0 : i32
    %c0_i32_1 = arith.constant 0 : i32
    return %c0_i32, %c0_i32_0 : i32, i32
  }
  func.func @transform_7(%arg0: i32) -> (i32, i32) {
    %c0_i32 = arith.constant 0 : i32
    %c0_i32_0 = arith.constant 0 : i32
    %c0_i32_1 = arith.constant 0 : i32
    return %c0_i32, %c0_i32_0 : i32, i32
  }
  func.func @transform_8(%arg0: i32) -> (i32, i32) {
    %c0_i32 = arith.constant 0 : i32
    %c0_i32_0 = arith.constant 0 : i32
    %c0_i32_1 = arith.constant 0 : i32
    return %c0_i32, %c0_i32_0 : i32, i32
  }
  func.func @transform_9(%arg0: i32) -> (i32, i32) {
    %c0_i32 = arith.constant 0 : i32
    %c0_i32_0 = arith.constant 0 : i32
    %c0_i32_1 = arith.constant 0 : i32
    return %c0_i32, %c0_i32_0 : i32, i32
  }
  func.func @transform_10(%arg0: i32) -> (i32, i32) {
    %c0_i32 = arith.constant 0 : i32
    %c0_i32_0 = arith.constant 0 : i32
    %c0_i32_1 = arith.constant 0 : i32
    return %c0_i32, %c0_i32_0 : i32, i32
  }
  func.func @transform_11(%arg0: i32) -> (i32, i32) {
    %c0_i32 = arith.constant 0 : i32
    %c0_i32_0 = arith.constant 0 : i32
    %c0_i32_1 = arith.constant 0 : i32
    return %c0_i32, %c0_i32_0 : i32, i32
  }
  func.func @transform_12(%arg0: i32) -> (i32, i32) {
    %c0_i32 = arith.constant 0 : i32
    %c0_i32_0 = arith.constant 0 : i32
    %c0_i32_1 = arith.constant 0 : i32
    return %c0_i32, %c0_i32_0 : i32, i32
  }
  func.func @transform_13(%arg0: i32) -> (i32, i32) {
    %c0_i32 = arith.constant 0 : i32
    %c0_i32_0 = arith.constant 0 : i32
    %c0_i32_1 = arith.constant 0 : i32
    return %c0_i32, %c0_i32_0 : i32, i32
  }
  func.func @transform_14(%arg0: i32) -> (i32, i32, i32) {
    %c0_i32 = arith.constant 0 : i32
    %c0_i32_0 = arith.constant 0 : i32
    %c0_i32_1 = arith.constant 0 : i32
    return %arg0, %c0_i32, %c0_i32_0 : i32, i32, i32
  }
  func.func @transform_15(%arg0: i32) -> (i32, i32, i32, i32) {
    %c0_i32 = arith.constant 0 : i32
    %c0_i32_0 = arith.constant 0 : i32
    %c0_i32_1 = arith.constant 0 : i32
    %c0_i32_2 = arith.constant 0 : i32
    return %arg0, %c0_i32, %c0_i32_0, %c0_i32_1 : i32, i32, i32, i32
  }
}

</mosaic_0001>

<llo_original>
// kernel: tpu_custom_call.1
$region0: #{tpu_custom_call.1}
  #allocation0 [shape = 'u32[]', space=smem, size = 0x4, offset = 0x4, fixed_abs, tag = 'smem constant byte address 0x4 - core index']
  #allocation1 [shape = 'u32[72,128]{1,0:T(1,128)}', space=vmem, size = 0x9000, scoped, tag = 'internal scratch']
  #allocation2 [shape = 'f32[4,8,24]{2,1,0:T(8,128)}', space=vmem, size = 0x4000, scoped, tag = 'scratch operand']
  %s0 = inlined_call_operand.vmem [shape: f32[2,8,32], index: 0, kind: input, shape index: {}]
  %s1 = inlined_call_operand.vmem [shape: f32[2,1,8], index: 1, kind: input, shape index: {}]
  %s2 = inlined_call_operand.vmem [shape: bf16[4,32,24], index: 2, kind: input, shape index: {}]
  %s3 = inlined_call_operand.vmem [shape: f32[4,1,24], index: 3, kind: input, shape index: {}]
  %s4 = inlined_call_operand.vmem [shape: bf16[4,8,32], index: 4, kind: input, shape index: {}]
  %s5 = inlined_call_operand.vmem [shape: f32[1,32], index: 5, kind: input, shape index: {}]
  %s6 = inlined_call_operand.vmem [shape: f32[1,32], index: 6, kind: input, shape index: {}]
  %s7 = inlined_call_operand.vmem [shape: f32[1,32], index: 7, kind: input, shape index: {}]
  %s8 = inlined_call_operand.vmem [shape: f32[1,32], index: 8, kind: input, shape index: {}]
  %s9 = inlined_call_operand.vmem [shape: f32[1,32], index: 9, kind: input, shape index: {}]
  %s10 = inlined_call_operand.vmem [shape: bf16[32,64], index: 10, kind: input, shape index: {}]
  %s11 = inlined_call_operand.vmem [shape: f32[1,64], index: 11, kind: input, shape index: {}]
  %s12 = inlined_call_operand.vmem [shape: bf16[64,32], index: 12, kind: input, shape index: {}]
  %s13 = inlined_call_operand.vmem [shape: f32[1,32], index: 13, kind: input, shape index: {}]
  %s14 = inlined_call_operand.hbm [shape: f32[2,8,32], index: 14, kind: output, shape index: {0}]
  %s15 = inlined_call_operand.hbm [shape: bf16[2,4,8,16], index: 15, kind: output, shape index: {1}]
  %16 = xla_tuple %s14, %s15
  %s17 = sld [smem:[#allocation0]]
  $region97: #{tpu_custom_call.1} parent=0
    _
  %s19 = ssub.s32 1, %s17
  %s20 = scalar_select 0, %s19, %s17
  $region1: #{tpu_custom_call.1} parent=0
    #allocation3 [shape = 'u8[8192]{0}', space=vmem, size = 0x2000, scoped, tag = 'output window, operand 0']
    #allocation4 [shape = 's32[2]{0}', space=sflag, size = 0x8, scoped, tag = 'scoped memory for tpu_custom_call.1']
    #allocation5 [shape = 'u8[16384]{0}', space=vmem, size = 0x4000, scoped, tag = 'output window, operand 1']
    #allocation6 [shape = 's32[2]{0}', space=sflag, size = 0x8, scoped, tag = 'scoped memory for tpu_custom_call.1']
    %21 = vsyncpa [#allocation4], 0
    %s22 = scalar_lea.sflag [#allocation4], 1
    %23 = vsyncpa %s22, 0
    %24 = vsyncpa [#allocation6], 0
    %s25 = scalar_lea.sflag [#allocation6], 1
    %26 = vsyncpa %s25, 0
    loop: start=0, step=1, limit=4
    $region2: #{tpu_custom_call.1} parent=1 // loop_pre_header
      _
    $region3: #{tpu_custom_call.1} parent=1 // loop_header
      %s28 = sphi 0, %s32
      %p29 = scmp.ge.s32.totalorder %s28, 4
      %s38 = sphi 0, %s40
      %s41 = sphi 0, %s38
      %s42 = sphi 0, %s41
      %s58 = sphi 0, %s42
      %s64 = sphi 0, %s66
      %s67 = sphi 0, %s64
      %s68 = sphi 0, %s67
      %s84 = sphi 0, %s68
      %s88 = sphi 0, %s88
      %s90 = sphi 0, %s88
      %s91 = sphi 0, %s90
      %s105 = sphi 0, %s91
      %s109 = sphi 0, %s109
      %s111 = sphi 0, %s109
      %s112 = sphi 0, %s111
      %s126 = sphi 0, %s112
      %s130 = sphi 0, %s130
      %s132 = sphi 0, %s130
      %s133 = sphi 0, %s132
      %s147 = sphi 0, %s133
      %s151 = sphi 0, %s151
      %s153 = sphi 0, %s151
      %s154 = sphi 0, %s153
      %s168 = sphi 0, %s154
      %s172 = sphi 0, %s172
      %s174 = sphi 0, %s172
      %s175 = sphi 0, %s174
      %s189 = sphi 0, %s175
      %s193 = sphi 0, %s193
      %s195 = sphi 0, %s193
      %s196 = sphi 0, %s195
      %s210 = sphi 0, %s196
      %s214 = sphi 0, %s214
      %s216 = sphi 0, %s214
      %s217 = sphi 0, %s216
      %s231 = sphi 0, %s217
      %s235 = sphi 0, %s235
      %s237 = sphi 0, %s235
      %s238 = sphi 0, %s237
      %s252 = sphi 0, %s238
      %s256 = sphi 0, %s256
      %s258 = sphi 0, %s256
      %s259 = sphi 0, %s258
      %s273 = sphi 0, %s259
      %s277 = sphi 0, %s277
      %s279 = sphi 0, %s277
      %s280 = sphi 0, %s279
      %s294 = sphi 0, %s280
      %s298 = sphi 0, %s298
      %s300 = sphi 0, %s298
      %s301 = sphi 0, %s300
      %s315 = sphi 0, %s301
      %s319 = sphi 0, %s319
      %s321 = sphi 0, %s319
      %s322 = sphi 0, %s321
      %s336 = sphi 0, %s322
      %s342 = sphi 0, %s344
      %s345 = sphi 0, %s342
      %s346 = sphi 0, %s345
      %s362 = sphi 0, %s346
      %s368 = sphi 0, %s370
      %s371 = sphi 0, %s368
      %s372 = sphi 0, %s371
      %s388 = sphi 0, %s372
    $region4: #{tpu_custom_call.1} parent=1 // loop_header_branch
      %31 = sbr.rel (%p29) target = $region8
    $region5: #{tpu_custom_call.1} parent=1 // loop_body
      %s33 = ssub.s32 %s28, 1
      %s34 = ssub.s32 %s28, 2
      %s35 = sadd.s32 %s28, 1
      %s36 = ssub.s32 %s28, %s35
      %p37 = scmp.eq.s32.totalorder %s36, 0
      %s39 = sadd.s32 %s38, 1
      %s40 = scalar_select %p37, %s38, %s39
      %p43 = pneg %p37
      %p44 = scmp.eq.s32.totalorder %s28, 1
      %p45 = por %p43, %p44
      %p46 = scmp.ne.s32.totalorder %s38, %s41
      %p47 = scmp.eq.s32.totalorder %s28, 0
      %p48 = por %p46, %p47
      %p49 = scmp.ne.s32.totalorder %s38, %s41
      %p50 = scmp.eq.s32.totalorder %s33, 1
      %p51 = por %p49, %p50
      %p52 = scmp.ne.s32.totalorder %s41, %s42
      %p53 = scmp.eq.s32.totalorder %s33, 0
      %p54 = por %p52, %p53
      %p55 = scmp.ne.s32.totalorder %s41, %s42
      %p56 = scmp.eq.s32.totalorder %s34, 1
      %p57 = por %p55, %p56
      %p59 = scmp.ne.s32.totalorder %s42, %s58
      %p60 = scmp.eq.s32.totalorder %s34, 0
      %p61 = por %p59, %p60
      %s62 = ssub.s32 %s28, %s35
      %p63 = scmp.eq.s32.totalorder %s62, 0
      %s65 = sadd.s32 %s64, 1
      %s66 = scalar_select %p63, %s64, %s65
      %p69 = pneg %p63
      %p70 = scmp.eq.s32.totalorder %s28, 1
      %p71 = por %p69, %p70
      %p72 = scmp.ne.s32.totalorder %s64, %s67
      %p73 = scmp.eq.s32.totalorder %s28, 0
      %p74 = por %p72, %p73
      %p75 = scmp.ne.s32.totalorder %s64, %s67
      %p76 = scmp.eq.s32.totalorder %s33, 1
      %p77 = por %p75, %p76
      %p78 = scmp.ne.s32.totalorder %s67, %s68
      %p79 = scmp.eq.s32.totalorder %s33, 0
      %p80 = por %p78, %p79
      %p81 = scmp.ne.s32.totalorder %s67, %s68
      %p82 = scmp.eq.s32.totalorder %s34, 1
      %p83 = por %p81, %p82
      %p85 = scmp.ne.s32.totalorder %s68, %s84
      %p86 = scmp.eq.s32.totalorder %s34, 0
      %p87 = por %p85, %p86
      %s89 = sadd.s32 %s88, 1
      %p92 = scmp.eq.s32.totalorder %s28, 1
      %p93 = scmp.ne.s32.totalorder %s88, %s90
      %p94 = scmp.eq.s32.totalorder %s28, 0
      %p95 = por %p93, %p94
      %p96 = scmp.ne.s32.totalorder %s88, %s90
      %p97 = scmp.eq.s32.totalorder %s33, 1
      %p98 = por %p96, %p97
      %p99 = scmp.ne.s32.totalorder %s90, %s91
      %p100 = scmp.eq.s32.totalorder %s33, 0
      %p101 = por %p99, %p100
      %p102 = scmp.ne.s32.totalorder %s90, %s91
      %p103 = scmp.eq.s32.totalorder %s34, 1
      %p104 = por %p102, %p103
      %p106 = scmp.ne.s32.totalorder %s91, %s105
      %p107 = scmp.eq.s32.totalorder %s34, 0
      %p108 = por %p106, %p107
      %s110 = sadd.s32 %s109, 1
      %p113 = scmp.eq.s32.totalorder %s28, 1
      %p114 = scmp.ne.s32.totalorder %s109, %s111
      %p115 = scmp.eq.s32.totalorder %s28, 0
      %p116 = por %p114, %p115
      %p117 = scmp.ne.s32.totalorder %s109, %s111
      %p118 = scmp.eq.s32.totalorder %s33, 1
      %p119 = por %p117, %p118
      %p120 = scmp.ne.s32.totalorder %s111, %s112
      %p121 = scmp.eq.s32.totalorder %s33, 0
      %p122 = por %p120, %p121
      %p123 = scmp.ne.s32.totalorder %s111, %s112
      %p124 = scmp.eq.s32.totalorder %s34, 1
      %p125 = por %p123, %p124
      %p127 = scmp.ne.s32.totalorder %s112, %s126
      %p128 = scmp.eq.s32.totalorder %s34, 0
      %p129 = por %p127, %p128
      %s131 = sadd.s32 %s130, 1
      %p134 = scmp.eq.s32.totalorder %s28, 1
      %p135 = scmp.ne.s32.totalorder %s130, %s132
      %p136 = scmp.eq.s32.totalorder %s28, 0
      %p137 = por %p135, %p136
      %p138 = scmp.ne.s32.totalorder %s130, %s132
      %p139 = scmp.eq.s32.totalorder %s33, 1
      %p140 = por %p138, %p139
      %p141 = scmp.ne.s32.totalorder %s132, %s133
      %p142 = scmp.eq.s32.totalorder %s33, 0
      %p143 = por %p141, %p142
      %p144 = scmp.ne.s32.totalorder %s132, %s133
      %p145 = scmp.eq.s32.totalorder %s34, 1
      %p146 = por %p144, %p145
      %p148 = scmp.ne.s32.totalorder %s133, %s147
      %p149 = scmp.eq.s32.totalorder %s34, 0
      %p150 = por %p148, %p149
      %s152 = sadd.s32 %s151, 1
      %p155 = scmp.eq.s32.totalorder %s28, 1
      %p156 = scmp.ne.s32.totalorder %s151, %s153
      %p157 = scmp.eq.s32.totalorder %s28, 0
      %p158 = por %p156, %p157
      %p159 = scmp.ne.s32.totalorder %s151, %s153
      %p160 = scmp.eq.s32.totalorder %s33, 1
      %p161 = por %p159, %p160
      %p162 = scmp.ne.s32.totalorder %s153, %s154
      %p163 = scmp.eq.s32.totalorder %s33, 0
      %p164 = por %p162, %p163
      %p165 = scmp.ne.s32.totalorder %s153, %s154
      %p166 = scmp.eq.s32.totalorder %s34, 1
      %p167 = por %p165, %p166
      %p169 = scmp.ne.s32.totalorder %s154, %s168
      %p170 = scmp.eq.s32.totalorder %s34, 0
      %p171 = por %p169, %p170
      %s173 = sadd.s32 %s172, 1
      %p176 = scmp.eq.s32.totalorder %s28, 1
      %p177 = scmp.ne.s32.totalorder %s172, %s174
      %p178 = scmp.eq.s32.totalorder %s28, 0
      %p179 = por %p177, %p178
      %p180 = scmp.ne.s32.totalorder %s172, %s174
      %p181 = scmp.eq.s32.totalorder %s33, 1
      %p182 = por %p180, %p181
      %p183 = scmp.ne.s32.totalorder %s174, %s175
      %p184 = scmp.eq.s32.totalorder %s33, 0
      %p185 = por %p183, %p184
      %p186 = scmp.ne.s32.totalorder %s174, %s175
      %p187 = scmp.eq.s32.totalorder %s34, 1
      %p188 = por %p186, %p187
      %p190 = scmp.ne.s32.totalorder %s175, %s189
      %p191 = scmp.eq.s32.totalorder %s34, 0
      %p192 = por %p190, %p191
      %s194 = sadd.s32 %s193, 1
      %p197 = scmp.eq.s32.totalorder %s28, 1
      %p198 = scmp.ne.s32.totalorder %s193, %s195
      %p199 = scmp.eq.s32.totalorder %s28, 0
      %p200 = por %p198, %p199
      %p201 = scmp.ne.s32.totalorder %s193, %s195
      %p202 = scmp.eq.s32.totalorder %s33, 1
      %p203 = por %p201, %p202
      %p204 = scmp.ne.s32.totalorder %s195, %s196
      %p205 = scmp.eq.s32.totalorder %s33, 0
      %p206 = por %p204, %p205
      %p207 = scmp.ne.s32.totalorder %s195, %s196
      %p208 = scmp.eq.s32.totalorder %s34, 1
      %p209 = por %p207, %p208
      %p211 = scmp.ne.s32.totalorder %s196, %s210
      %p212 = scmp.eq.s32.totalorder %s34, 0
      %p213 = por %p211, %p212
      %s215 = sadd.s32 %s214, 1
      %p218 = scmp.eq.s32.totalorder %s28, 1
      %p219 = scmp.ne.s32.totalorder %s214, %s216
      %p220 = scmp.eq.s32.totalorder %s28, 0
      %p221 = por %p219, %p220
      %p222 = scmp.ne.s32.totalorder %s214, %s216
      %p223 = scmp.eq.s32.totalorder %s33, 1
      %p224 = por %p222, %p223
      %p225 = scmp.ne.s32.totalorder %s216, %s217
      %p226 = scmp.eq.s32.totalorder %s33, 0
      %p227 = por %p225, %p226
      %p228 = scmp.ne.s32.totalorder %s216, %s217
      %p229 = scmp.eq.s32.totalorder %s34, 1
      %p230 = por %p228, %p229
      %p232 = scmp.ne.s32.totalorder %s217, %s231
      %p233 = scmp.eq.s32.totalorder %s34, 0
      %p234 = por %p232, %p233
      %s236 = sadd.s32 %s235, 1
      %p239 = scmp.eq.s32.totalorder %s28, 1
      %p240 = scmp.ne.s32.totalorder %s235, %s237
      %p241 = scmp.eq.s32.totalorder %s28, 0
      %p242 = por %p240, %p241
      %p243 = scmp.ne.s32.totalorder %s235, %s237
      %p244 = scmp.eq.s32.totalorder %s33, 1
      %p245 = por %p243, %p244
      %p246 = scmp.ne.s32.totalorder %s237, %s238
      %p247 = scmp.eq.s32.totalorder %s33, 0
      %p248 = por %p246, %p247
      %p249 = scmp.ne.s32.totalorder %s237, %s238
      %p250 = scmp.eq.s32.totalorder %s34, 1
      %p251 = por %p249, %p250
      %p253 = scmp.ne.s32.totalorder %s238, %s252
      %p254 = scmp.eq.s32.totalorder %s34, 0
      %p255 = por %p253, %p254
      %s257 = sadd.s32 %s256, 1
      %p260 = scmp.eq.s32.totalorder %s28, 1
      %p261 = scmp.ne.s32.totalorder %s256, %s258
      %p262 = scmp.eq.s32.totalorder %s28, 0
      %p263 = por %p261, %p262
      %p264 = scmp.ne.s32.totalorder %s256, %s258
      %p265 = scmp.eq.s32.totalorder %s33, 1
      %p266 = por %p264, %p265
      %p267 = scmp.ne.s32.totalorder %s258, %s259
      %p268 = scmp.eq.s32.totalorder %s33, 0
      %p269 = por %p267, %p268
      %p270 = scmp.ne.s32.totalorder %s258, %s259
      %p271 = scmp.eq.s32.totalorder %s34, 1
      %p272 = por %p270, %p271
      %p274 = scmp.ne.s32.totalorder %s259, %s273
      %p275 = scmp.eq.s32.totalorder %s34, 0
      %p276 = por %p274, %p275
      %s278 = sadd.s32 %s277, 1
      %p281 = scmp.eq.s32.totalorder %s28, 1
      %p282 = scmp.ne.s32.totalorder %s277, %s279
      %p283 = scmp.eq.s32.totalorder %s28, 0
      %p284 = por %p282, %p283
      %p285 = scmp.ne.s32.totalorder %s277, %s279
      %p286 = scmp.eq.s32.totalorder %s33, 1
      %p287 = por %p285, %p286
      %p288 = scmp.ne.s32.totalorder %s279, %s280
      %p289 = scmp.eq.s32.totalorder %s33, 0
      %p290 = por %p288, %p289
      %p291 = scmp.ne.s32.totalorder %s279, %s280
      %p292 = scmp.eq.s32.totalorder %s34, 1
      %p293 = por %p291, %p292
      %p295 = scmp.ne.s32.totalorder %s280, %s294
      %p296 = scmp.eq.s32.totalorder %s34, 0
      %p297 = por %p295, %p296
      %s299 = sadd.s32 %s298, 1
      %p302 = scmp.eq.s32.totalorder %s28, 1
      %p303 = scmp.ne.s32.totalorder %s298, %s300
      %p304 = scmp.eq.s32.totalorder %s28, 0
      %p305 = por %p303, %p304
      %p306 = scmp.ne.s32.totalorder %s298, %s300
      %p307 = scmp.eq.s32.totalorder %s33, 1
      %p308 = por %p306, %p307
      %p309 = scmp.ne.s32.totalorder %s300, %s301
      %p310 = scmp.eq.s32.totalorder %s33, 0
      %p311 = por %p309, %p310
      %p312 = scmp.ne.s32.totalorder %s300, %s301
      %p313 = scmp.eq.s32.totalorder %s34, 1
      %p314 = por %p312, %p313
      %p316 = scmp.ne.s32.totalorder %s301, %s315
      %p317 = scmp.eq.s32.totalorder %s34, 0
      %p318 = por %p316, %p317
      %s320 = sadd.s32 %s319, 1
      %p323 = scmp.eq.s32.totalorder %s28, 1
      %p324 = scmp.ne.s32.totalorder %s319, %s321
      %p325 = scmp.eq.s32.totalorder %s28, 0
      %p326 = por %p324, %p325
      %p327 = scmp.ne.s32.totalorder %s319, %s321
      %p328 = scmp.eq.s32.totalorder %s33, 1
      %p329 = por %p327, %p328
      %p330 = scmp.ne.s32.totalorder %s321, %s322
      %p331 = scmp.eq.s32.totalorder %s33, 0
      %p332 = por %p330, %p331
      %p333 = scmp.ne.s32.totalorder %s321, %s322
      %p334 = scmp.eq.s32.totalorder %s34, 1
      %p335 = por %p333, %p334
      %p337 = scmp.ne.s32.totalorder %s322, %s336
      %p338 = scmp.eq.s32.totalorder %s34, 0
      %p339 = por %p337, %p338
      %s340 = ssub.s32 %s28, %s35
      %p341 = scmp.eq.s32.totalorder %s340, 0
      %s343 = sadd.s32 %s342, 1
      %s344 = scalar_select %p341, %s342, %s343
      %p347 = pneg %p341
      %p348 = scmp.eq.s32.totalorder %s28, 1
      %p349 = por %p347, %p348
      %p350 = scmp.ne.s32.totalorder %s342, %s345
      %p351 = scmp.eq.s32.totalorder %s28, 0
      %p352 = por %p350, %p351
      %p353 = scmp.ne.s32.totalorder %s342, %s345
      %p354 = scmp.eq.s32.totalorder %s33, 1
      %p355 = por %p353, %p354
      %p356 = scmp.ne.s32.totalorder %s345, %s346
      %p357 = scmp.eq.s32.totalorder %s33, 0
      %p358 = por %p356, %p357
      %p359 = scmp.ne.s32.totalorder %s345, %s346
      %p360 = scmp.eq.s32.totalorder %s34, 1
      %p361 = por %p359, %p360
      %p363 = scmp.ne.s32.totalorder %s346, %s362
      %p364 = scmp.eq.s32.totalorder %s34, 0
      %p365 = por %p363, %p364
      %s366 = ssub.s32 %s28, %s35
      %p367 = scmp.eq.s32.totalorder %s366, 0
      %s369 = sadd.s32 %s368, 1
      %s370 = scalar_select %p367, %s368, %s369
      %p373 = pneg %p367
      %p374 = scmp.eq.s32.totalorder %s28, 1
      %p375 = por %p373, %p374
      %p376 = scmp.ne.s32.totalorder %s368, %s371
      %p377 = scmp.eq.s32.totalorder %s28, 0
      %p378 = por %p376, %p377
      %p379 = scmp.ne.s32.totalorder %s368, %s371
      %p380 = scmp.eq.s32.totalorder %s33, 1
      %p381 = por %p379, %p380
      %p382 = scmp.ne.s32.totalorder %s371, %s372
      %p383 = scmp.eq.s32.totalorder %s33, 0
      %p384 = por %p382, %p383
      %p385 = scmp.ne.s32.totalorder %s371, %s372
      %p386 = scmp.eq.s32.totalorder %s34, 1
      %p387 = por %p385, %p386
      %p389 = scmp.ne.s32.totalorder %s372, %s388
      %p390 = scmp.eq.s32.totalorder %s34, 0
      %p391 = por %p389, %p390
      %p392 = scmp.le.s32.totalorder 1, %s28
      %p393 = scmp.lt.s32.totalorder %s28, 3
      %p394 = pnand %p392, %p393
      %p395 = pneg %p394
      // Predicated region
      $region9: #{tpu_custom_call.1} parent=5 // pred_check
        _
      $region10: #{tpu_custom_call.1} parent=5 // pred_check_branch
        %397 = sbr.rel (%p394) target = $region12
      $region11: #{tpu_custom_call.1} parent=5 // pred_region
        %s398 = ssub.s32 %s28, 1
        // Predicated region
        $region13: #{tpu_custom_call.1} parent=11 // pred_check
          %p399 = pneg %p101
        $region14: #{tpu_custom_call.1} parent=11 // pred_check_branch
          %401 = sbr.rel (%p399) target = $region16
        $region15: #{tpu_custom_call.1} parent=11 // pred_region
          _
        $region16: #{tpu_custom_call.1} parent=11 // pred_fallthru
          _
        // Predicated region
        $region17: #{tpu_custom_call.1} parent=11 // pred_check
          %p402 = pneg %p122
        $region18: #{tpu_custom_call.1} parent=11 // pred_check_branch
          %404 = sbr.rel (%p402) target = $region20
        $region19: #{tpu_custom_call.1} parent=11 // pred_region
          _
        $region20: #{tpu_custom_call.1} parent=11 // pred_fallthru
          _
        // Predicated region
        $region21: #{tpu_custom_call.1} parent=11 // pred_check
          %p405 = pneg %p143
        $region22: #{tpu_custom_call.1} parent=11 // pred_check_branch
          %407 = sbr.rel (%p405) target = $region24
        $region23: #{tpu_custom_call.1} parent=11 // pred_region
          _
        $region24: #{tpu_custom_call.1} parent=11 // pred_fallthru
          _
        // Predicated region
        $region25: #{tpu_custom_call.1} parent=11 // pred_check
          %p408 = pneg %p164
        $region26: #{tpu_custom_call.1} parent=11 // pred_check_branch
          %410 = sbr.rel (%p408) target = $region28
        $region27: #{tpu_custom_call.1} parent=11 // pred_region
          _
        $region28: #{tpu_custom_call.1} parent=11 // pred_fallthru
          _
        // Predicated region
        $region29: #{tpu_custom_call.1} parent=11 // pred_check
          %p411 = pneg %p185
        $region30: #{tpu_custom_call.1} parent=11 // pred_check_branch
          %413 = sbr.rel (%p411) target = $region32
        $region31: #{tpu_custom_call.1} parent=11 // pred_region
          _
        $region32: #{tpu_custom_call.1} parent=11 // pred_fallthru
          _
        // Predicated region
        $region33: #{tpu_custom_call.1} parent=11 // pred_check
          %p414 = pneg %p206
        $region34: #{tpu_custom_call.1} parent=11 // pred_check_branch
          %416 = sbr.rel (%p414) target = $region36
        $region35: #{tpu_custom_call.1} parent=11 // pred_region
          _
        $region36: #{tpu_custom_call.1} parent=11 // pred_fallthru
          _
        // Predicated region
        $region37: #{tpu_custom_call.1} parent=11 // pred_check
          %p417 = pneg %p227
        $region38: #{tpu_custom_call.1} parent=11 // pred_check_branch
          %419 = sbr.rel (%p417) target = $region40
        $region39: #{tpu_custom_call.1} parent=11 // pred_region
          _
        $region40: #{tpu_custom_call.1} parent=11 // pred_fallthru
          _
        // Predicated region
        $region41: #{tpu_custom_call.1} parent=11 // pred_check
          %p420 = pneg %p248
        $region42: #{tpu_custom_call.1} parent=11 // pred_check_branch
          %422 = sbr.rel (%p420) target = $region44
        $region43: #{tpu_custom_call.1} parent=11 // pred_region
          _
        $region44: #{tpu_custom_call.1} parent=11 // pred_fallthru
          _
        // Predicated region
        $region45: #{tpu_custom_call.1} parent=11 // pred_check
          %p423 = pneg %p269
        $region46: #{tpu_custom_call.1} parent=11 // pred_check_branch
          %425 = sbr.rel (%p423) target = $region48
        $region47: #{tpu_custom_call.1} parent=11 // pred_region
          _
        $region48: #{tpu_custom_call.1} parent=11 // pred_fallthru
          _
        // Predicated region
        $region49: #{tpu_custom_call.1} parent=11 // pred_check
          %p426 = pneg %p290
        $region50: #{tpu_custom_call.1} parent=11 // pred_check_branch
          %428 = sbr.rel (%p426) target = $region52
        $region51: #{tpu_custom_call.1} parent=11 // pred_region
          _
        $region52: #{tpu_custom_call.1} parent=11 // pred_fallthru
          _
        // Predicated region
        $region53: #{tpu_custom_call.1} parent=11 // pred_check
          %p429 = pneg %p311
        $region54: #{tpu_custom_call.1} parent=11 // pred_check_branch
          %431 = sbr.rel (%p429) target = $region56
        $region55: #{tpu_custom_call.1} parent=11 // pred_region
          _
        $region56: #{tpu_custom_call.1} parent=11 // pred_fallthru
          _
        // Predicated region
        $region57: #{tpu_custom_call.1} parent=11 // pred_check
          %p432 = pneg %p332
        $region58: #{tpu_custom_call.1} parent=11 // pred_check_branch
          %434 = sbr.rel (%p432) target = $region60
        $region59: #{tpu_custom_call.1} parent=11 // pred_region
          _
        $region60: #{tpu_custom_call.1} parent=11 // pred_fallthru
          _
      $region12: #{tpu_custom_call.1} parent=5 // pred_fallthru
        _
      %p435 = scmp.lt.s32.totalorder %s28, 2
      // Predicated region
      $region61: #{tpu_custom_call.1} parent=5 // pred_check
        %p436 = pneg %p435
      $region62: #{tpu_custom_call.1} parent=5 // pred_check_branch
        %438 = sbr.rel (%p436) target = $region64
      $region63: #{tpu_custom_call.1} parent=5 // pred_region
        // Predicated region
        $region65: #{tpu_custom_call.1} parent=63 // pred_check
          %p439 = pneg %p48
        $region66: #{tpu_custom_call.1} parent=63 // pred_check_branch
          %441 = sbr.rel (%p439) target = $region68
        $region67: #{tpu_custom_call.1} parent=63 // pred_region
          %p442 = scmp.lt.s32.totalorder %s28, 1
          %s443 = scalar_select %p442, %s28, 1
          %s444 = smul.addr %s443, 8
          %s445 = scalar_lea.vmem %s0, %s444
        $region68: #{tpu_custom_call.1} parent=63 // pred_fallthru
          _
        // Predicated region
        $region69: #{tpu_custom_call.1} parent=63 // pred_check
          %p446 = pneg %p74
        $region70: #{tpu_custom_call.1} parent=63 // pred_check_branch
          %448 = sbr.rel (%p446) target = $region72
        $region71: #{tpu_custom_call.1} parent=63 // pred_region
          %p449 = scmp.lt.s32.totalorder %s28, 1
          %s450 = scalar_select %p449, %s28, 1
          %s451 = scalar_lea.vmem %s1, %s450
        $region72: #{tpu_custom_call.1} parent=63 // pred_fallthru
          _
      $region64: #{tpu_custom_call.1} parent=5 // pred_fallthru
        _
      %p452 = scmp.le.s32.totalorder 1, %s28
      %p453 = scmp.lt.s32.totalorder %s28, 3
      %p454 = pnand %p452, %p453
      %p455 = pneg %p454
      // Predicated region
      $region73: #{tpu_custom_call.1} parent=5 // pred_check
        _
      $region74: #{tpu_custom_call.1} parent=5 // pred_check_branch
        %457 = sbr.rel (%p454) target = $region76
      $region75: #{tpu_custom_call.1} parent=5 // pred_region
        %s458 = ssub.s32 %s28, 1
        %p459 = scmp.lt.s32.totalorder %s33, 1
        %s460 = scalar_select %p459, %s33, 1
        %s461 = smul.addr %s460, 8
        %s462 = scalar_lea.vmem %s0, %s461
        %p463 = pneg %p54
        %p464 = pneg %p51
        %p465 = scmp.lt.s32.totalorder %s33, 1
        %s466 = scalar_select %p465, %s33, 1
        %s467 = scalar_lea.vmem %s1, %s466
        %p468 = pneg %p80
        %p469 = pneg %p77
        %p470 = pneg %p101
        %p471 = pneg %p98
        %p472 = pneg %p122
        %p473 = pneg %p119
        %p474 = pneg %p143
        %p475 = pneg %p140
        %p476 = pneg %p164
        %p477 = pneg %p161
        %p478 = pneg %p185
        %p479 = pneg %p182
        %p480 = pneg %p206
        %p481 = pneg %p203
        %p482 = pneg %p227
        %p483 = pneg %p224
        %p484 = pneg %p248
        %p485 = pneg %p245
        %p486 = pneg %p269
        %p487 = pneg %p266
        %p488 = pneg %p290
        %p489 = pneg %p287
        %p490 = pneg %p311
        %p491 = pneg %p308
        %p492 = pneg %p332
        %p493 = pneg %p329
        %p494 = pneg %p358
        %p495 = pneg %p355
        %s496 = sand.u32 %s345, 1
        %s497 = scalar_lea.sflag [#allocation4], %s496
        %s498 = sand.u32 %s345, 1
        %s499 = smul.addr %s498, 8
        %s500 = scalar_lea.vmem [#allocation3], %s499
        %p501 = pneg %p384
        %p502 = pneg %p381
        %s503 = sand.u32 %s371, 1
        %s504 = scalar_lea.sflag [#allocation6], %s503
        %s505 = sand.u32 %s371, 1
        %s506 = smul.addr %s505, 16
        %s507 = scalar_lea.vmem [#allocation5], %s506
        %p508 = scmp.lt.s32.totalorder %s33, 1
        %s509 = scalar_select %p508, %s33, 1
        %s510 = smul.addr %s509, 8
        %s511 = scalar_lea.vmem %s0, %s510
        %p512 = scmp.lt.s32.totalorder %s33, 1
        %s513 = scalar_select %p512, %s33, 1
        %s514 = scalar_lea.vmem %s1, %s513
        %v516 = vld [vmem:[%s511] sm:$0xff]
        %v517 = vld [vmem:[%s514] sm:$0x1]
        %vm518 = vcmp.gt.f32.partialorder %v517, 0.0
        %v519 = vsel %vm518, 0.0, -1e+30
        %v520 = vsel %vm518, 1, 0
        %v521 = vcvt.s32.f32 %v520
        %v522 = vld [vmem:[%s6] sm:$0x1]
        %v523 = vld [vmem:[%s7] sm:$0x1]
        %vm524 = vcmask 261120
        %v525 = vsel %vm524, %v516, 0.0
        %526 = vadd.xlane.f32.xlu0 %v525
        %v527 = vpop.xlane.xlu0 %526
        %v528 = vrcp.pop 32.0
        %v529 = vmul.f32 32.0, %v528
        %v530 = vsub.f32 1.0, %v529
        %v531 = vmul.f32 %v528, %v530
        %v532 = vadd.f32 %v528, %v531
        %vm533 = vweird.f32 %v528
        %v534 = vsel %vm533, %v528, %v532
        %v535 = vmul.f32 %v527, %v534
        %v536 = vsub.f32 %v516, %v535
        %v537 = vmul.f32 %v536, %v536
        %v538 = vsel %vm524, %v537, 0.0
        %539 = vadd.xlane.f32.xlu0 %v538
        %v540 = vpop.xlane.xlu0 %539
        %v541 = vmul.f32 %v540, %v534
        %v542 = vadd.f32 %v541, 1e-12
        %v543 = vrsqrt.pop %v542
        %v544 = vmul.f32 %v543, %v542
        %v545 = vmul.f32 %v544, %v543
        %v546 = vmul.f32 0.5, %v545
        %v547 = vsub.f32 1.5, %v546
        %v548 = vmul.f32 %v543, %v547
        %vm549 = vweird.f32 %v542
        %vm550 = vweird.f32 %v543
        %vm551 = vmor %vm549, %vm550
        %v552 = vsel %vm551, %v543, %v548
        %v553 = vmul.f32 %v536, %v552
        %v555 = vperm.slane %v522, 0
        %v557 = vmul.f32 %v553, %v555
        %v559 = vperm.slane %v523, 0
        %v561 = vadd.f32 %v557, %v559
        %v562 = vpack.c.bf16 %v561, %v561
        %v563 = vld [vmem:[%s2] sm:$0xf]
        %v564 = vld [vmem:[%s2 + $0x4] sm:$0xf]
        %v565 = vld [vmem:[%s2 + $0x8] sm:$0xf]
        %v566 = vld [vmem:[%s2 + $0xc] sm:$0xf]
        %v567 = vld [vmem:[%s3] sm:$0x1]
        %v569 = vperm.slane %v567, 0
        %v575 = vunpack.c.l.b16 %v563
        %v576 = vunpack.c.l.b16 %v564
        %v577 = vunpack.c.l.b16 %v565
        %v578 = vunpack.c.l.b16 %v566
        %v579 = vpack.c.b16 %v576, %v575
        %v580 = vpack.c.b16 %v578, %v577
        %v584 = vsel %vm524, %v562, 0
        %586 = vmatpush.bf16.msra.mxu0 0
        %587 = vmatpush.bf16.msra.mxu0 0
        %588 = vmatpush.bf16.msra.mxu0 0
        %589 = vmatpush.bf16.msra.mxu0 0
        %590 = vmatpush.bf16.msra.mxu0 0
        %591 = vmatpush.bf16.msra.mxu0 0
        %592 = vmatpush.bf16.msra.mxu0 %v580
        %593 = vmatpush.bf16.msra.mxu0 %v579
        %594 = vmatmul.bf16.gmra.mxu0 %v584
        %v595 = vpop.f32.mrf.mxu0
        %v596 = vadd.f32 %v569, %v595
        %v597 = vpop.f32.mrf.mxu0
        %598 = vdwg.mxu0
        %vm599 = vcmask 195584
        %600 = vst.msk [vmem:[#allocation2] sm:$0xff] %vm599, %v596
        %s601 = scalar_lea.vmem %s2, 16
        %v602 = vld [vmem:[%s601] sm:$0xf]
        %v603 = vld [vmem:[%s601 + $0x4] sm:$0xf]
        %v604 = vld [vmem:[%s601 + $0x8] sm:$0xf]
        %v605 = vld [vmem:[%s601 + $0xc] sm:$0xf]
        %s606 = scalar_lea.vmem %s3, 1
        %v607 = vld [vmem:[%s606] sm:$0x1]
        %v609 = vperm.slane %v607, 0
        %v615 = vunpack.c.l.b16 %v602
        %v616 = vunpack.c.l.b16 %v603
        %v617 = vunpack.c.l.b16 %v604
        %v618 = vunpack.c.l.b16 %v605
        %v619 = vpack.c.b16 %v616, %v615
        %v620 = vpack.c.b16 %v618, %v617
        %623 = vmatpush.bf16.msra.mxu0 0
        %624 = vmatpush.bf16.msra.mxu0 0
        %625 = vmatpush.bf16.msra.mxu0 0
        %626 = vmatpush.bf16.msra.mxu0 0
        %627 = vmatpush.bf16.msra.mxu0 0
        %628 = vmatpush.bf16.msra.mxu0 0
        %629 = vmatpush.bf16.msra.mxu0 %v620
        %630 = vmatpush.bf16.msra.mxu0 %v619
        %631 = vmatmul.bf16.gmra.mxu0 %v584
        %v632 = vpop.f32.mrf.mxu0
        %v633 = vadd.f32 %v609, %v632
        %v634 = vpop.f32.mrf.mxu0
        %635 = vdwg.mxu0
        %s636 = scalar_lea.vmem [#allocation2], 8
        %637 = vst.msk [vmem:[%s636] sm:$0xff] %vm599, %v633
        %s638 = scalar_lea.vmem %s2, 32
        %v639 = vld [vmem:[%s638] sm:$0xf]
        %v640 = vld [vmem:[%s638 + $0x4] sm:$0xf]
        %v641 = vld [vmem:[%s638 + $0x8] sm:$0xf]
        %v642 = vld [vmem:[%s638 + $0xc] sm:$0xf]
        %s643 = scalar_lea.vmem %s3, 2
        %v644 = vld [vmem:[%s643] sm:$0x1]
        %v646 = vperm.slane %v644, 0
        %v652 = vunpack.c.l.b16 %v639
        %v653 = vunpack.c.l.b16 %v640
        %v654 = vunpack.c.l.b16 %v641
        %v655 = vunpack.c.l.b16 %v642
        %v656 = vpack.c.b16 %v653, %v652
        %v657 = vpack.c.b16 %v655, %v654
        %660 = vmatpush.bf16.msra.mxu0 0
        %661 = vmatpush.bf16.msra.mxu0 0
        %662 = vmatpush.bf16.msra.mxu0 0
        %663 = vmatpush.bf16.msra.mxu0 0
        %664 = vmatpush.bf16.msra.mxu0 0
        %665 = vmatpush.bf16.msra.mxu0 0
        %666 = vmatpush.bf16.msra.mxu0 %v657
        %667 = vmatpush.bf16.msra.mxu0 %v656
        %668 = vmatmul.bf16.gmra.mxu0 %v584
        %v669 = vpop.f32.mrf.mxu0
        %v670 = vadd.f32 %v646, %v669
        %v671 = vpop.f32.mrf.mxu0
        %672 = vdwg.mxu0
        %s673 = scalar_lea.vmem [#allocation2], 16
        %674 = vst.msk [vmem:[%s673] sm:$0xff] %vm599, %v670
        %s675 = scalar_lea.vmem %s2, 48
        %v676 = vld [vmem:[%s675] sm:$0xf]
        %v677 = vld [vmem:[%s675 + $0x4] sm:$0xf]
        %v678 = vld [vmem:[%s675 + $0x8] sm:$0xf]
        %v679 = vld [vmem:[%s675 + $0xc] sm:$0xf]
        %s680 = scalar_lea.vmem %s3, 3
        %v681 = vld [vmem:[%s680] sm:$0x1]
        %v683 = vperm.slane %v681, 0
        %v689 = vunpack.c.l.b16 %v676
        %v690 = vunpack.c.l.b16 %v677
        %v691 = vunpack.c.l.b16 %v678
        %v692 = vunpack.c.l.b16 %v679
        %v693 = vpack.c.b16 %v690, %v689
        %v694 = vpack.c.b16 %v692, %v691
        %697 = vmatpush.bf16.msra.mxu0 0
        %698 = vmatpush.bf16.msra.mxu0 0
        %699 = vmatpush.bf16.msra.mxu0 0
        %700 = vmatpush.bf16.msra.mxu0 0
        %701 = vmatpush.bf16.msra.mxu0 0
        %702 = vmatpush.bf16.msra.mxu0 0
        %703 = vmatpush.bf16.msra.mxu0 %v694
        %704 = vmatpush.bf16.msra.mxu0 %v693
        %705 = vmatmul.bf16.gmra.mxu0 %v584
        %v706 = vpop.f32.mrf.mxu0
        %v707 = vadd.f32 %v683, %v706
        %v708 = vpop.f32.mrf.mxu0
        %709 = vdwg.mxu0
        %s710 = scalar_lea.vmem [#allocation2], 24
        %711 = vst.msk [vmem:[%s710] sm:$0xff] %vm599, %v707
        %v712 = vld [vmem:[#allocation2] sm:$0xff]
        %v713 = vld [vmem:[#allocation2 + $0x8] sm:$0xff]
        %v714 = vld [vmem:[#allocation2 + $0x10] sm:$0xff]
        %v715 = vld [vmem:[#allocation2 + $0x18] sm:$0xff]
        %v716 = vpack.c.bf16 %v712, %v712
        %v717 = vpack.c.bf16 %v713, %v713
        %v718 = vpack.c.bf16 %v714, %v714
        %v719 = vpack.c.bf16 %v715, %v715
        %724 = vrot.lane.b32.xlu0 %v716, 120
        %v725 = vpop.permute.xlu0 %724
        %726 = vrot.lane.b32.xlu0 %v717, 120
        %v727 = vpop.permute.xlu0 %726
        %728 = vrot.lane.b32.xlu0 %v718, 120
        %v729 = vpop.permute.xlu0 %728
        %730 = vrot.lane.b32.xlu0 %v719, 120
        %v731 = vpop.permute.xlu0 %730
        %vm736 = vcmask 125952
        %737 = vst.msk [vmem:[%s507] sm:$0xf] %vm736, %v725
        %738 = vst.msk [vmem:[%s507 + $0x4] sm:$0xf] %vm736, %v727
        %739 = vst.msk [vmem:[%s507 + $0x8] sm:$0xf] %vm736, %v729
        %740 = vst.msk [vmem:[%s507 + $0xc] sm:$0xf] %vm736, %v731
        %v741 = vmul.f32 %v712, 0.35355338
        %v742 = vmul.f32 %v713, 0.35355338
        %v743 = vmul.f32 %v714, 0.35355338
        %v744 = vmul.f32 %v715, 0.35355338
        %v745 = vpack.c.bf16 %v741, %v741
        %v746 = vpack.c.bf16 %v742, %v742
        %v747 = vpack.c.bf16 %v743, %v743
        %v748 = vpack.c.bf16 %v744, %v744
        %v750 = vperm.slane %v519, 0
        %v752 = vunpack.c.l.b16 %v716
        %v753 = vpack.c.b16 %v752, %v752
        %754 = vrot.lane.b32.xlu0 %v753, 120
        %v755 = vpop.permute.xlu0 %754
        %vm756 = vcmask 64512
        %v758 = vsel %vm756, %v745, 0
        %v761 = vsel %vm756, %v755, 0
        %763 = vmatpush.bf16.xpose.msra.mxu0 0
        %764 = vmatpush.bf16.xpose.msra.mxu0 0
        %765 = vmatpush.bf16.xpose.msra.mxu0 0
        %766 = vmatpush.bf16.xpose.msra.mxu0 0
        %767 = vmatpush.bf16.xpose.msra.mxu0 0
        %768 = vmatpush.bf16.xpose.msra.mxu0 0
        %769 = vmatpush.bf16.xpose.msra.mxu0 0
        %770 = vmatpush.bf16.xpose.msra.mxu0 %v761
        %771 = vmatmul.bf16.gmra.mxu0 %v758
        %v772 = vpop.f32.mrf.mxu0
        %v773 = vadd.f32 %v750, %v772
        %v774 = vpop.f32.mrf.mxu0
        %775 = vdwg.mxu0
        %v776 = vunpack.c.l.b16 %v717
        %v777 = vpack.c.b16 %v776, %v776
        %778 = vrot.lane.b32.xlu0 %v777, 120
        %v779 = vpop.permute.xlu0 %778
        %v781 = vsel %vm756, %v746, 0
        %v784 = vsel %vm756, %v779, 0
        %786 = vmatpush.bf16.xpose.msra.mxu0 0
        %787 = vmatpush.bf16.xpose.msra.mxu0 0
        %788 = vmatpush.bf16.xpose.msra.mxu0 0
        %789 = vmatpush.bf16.xpose.msra.mxu0 0
        %790 = vmatpush.bf16.xpose.msra.mxu0 0
        %791 = vmatpush.bf16.xpose.msra.mxu0 0
        %792 = vmatpush.bf16.xpose.msra.mxu0 0
        %793 = vmatpush.bf16.xpose.msra.mxu0 %v784
        %794 = vmatmul.bf16.gmra.mxu0 %v781
        %v795 = vpop.f32.mrf.mxu0
        %v796 = vadd.f32 %v750, %v795
        %v797 = vpop.f32.mrf.mxu0
        %798 = vdwg.mxu0
        %v799 = vunpack.c.l.b16 %v718
        %v800 = vpack.c.b16 %v799, %v799
        %801 = vrot.lane.b32.xlu0 %v800, 120
        %v802 = vpop.permute.xlu0 %801
        %v804 = vsel %vm756, %v747, 0
        %v807 = vsel %vm756, %v802, 0
        %809 = vmatpush.bf16.xpose.msra.mxu0 0
        %810 = vmatpush.bf16.xpose.msra.mxu0 0
        %811 = vmatpush.bf16.xpose.msra.mxu0 0
        %812 = vmatpush.bf16.xpose.msra.mxu0 0
        %813 = vmatpush.bf16.xpose.msra.mxu0 0
        %814 = vmatpush.bf16.xpose.msra.mxu0 0
        %815 = vmatpush.bf16.xpose.msra.mxu0 0
        %816 = vmatpush.bf16.xpose.msra.mxu0 %v807
        %817 = vmatmul.bf16.gmra.mxu0 %v804
        %v818 = vpop.f32.mrf.mxu0
        %v819 = vadd.f32 %v750, %v818
        %v820 = vpop.f32.mrf.mxu0
        %821 = vdwg.mxu0
        %v822 = vunpack.c.l.b16 %v719
        %v823 = vpack.c.b16 %v822, %v822
        %824 = vrot.lane.b32.xlu0 %v823, 120
        %v825 = vpop.permute.xlu0 %824
        %v827 = vsel %vm756, %v748, 0
        %v830 = vsel %vm756, %v825, 0
        %832 = vmatpush.bf16.xpose.msra.mxu0 0
        %833 = vmatpush.bf16.xpose.msra.mxu0 0
        %834 = vmatpush.bf16.xpose.msra.mxu0 0
        %835 = vmatpush.bf16.xpose.msra.mxu0 0
        %836 = vmatpush.bf16.xpose.msra.mxu0 0
        %837 = vmatpush.bf16.xpose.msra.mxu0 0
        %838 = vmatpush.bf16.xpose.msra.mxu0 0
        %839 = vmatpush.bf16.xpose.msra.mxu0 %v830
        %840 = vmatmul.bf16.gmra.mxu0 %v827
        %v841 = vpop.f32.mrf.mxu0
        %v842 = vadd.f32 %v750, %v841
        %v843 = vpop.f32.mrf.mxu0
        %844 = vdwg.mxu0
        %v845 = vsel %vm756, %v773, -inf
        %846 = vmax.xlane.f32.xlu0 %v845
        %v847 = vpop.xlane.xlu0 %846
        %v848 = vsel %vm756, %v796, -inf
        %849 = vmax.xlane.f32.xlu0 %v848
        %v850 = vpop.xlane.xlu0 %849
        %v851 = vsel %vm756, %v819, -inf
        %852 = vmax.xlane.f32.xlu0 %v851
        %v853 = vpop.xlane.xlu0 %852
        %v854 = vsel %vm756, %v842, -inf
        %855 = vmax.xlane.f32.xlu0 %v854
        %v856 = vpop.xlane.xlu0 %855
        %v857 = vmax.f32 %v847, -1e+30
        %v858 = vmax.f32 %v850, -1e+30
        %v859 = vmax.f32 %v853, -1e+30
        %v860 = vmax.f32 %v856, -1e+30
        %v861 = vsub.f32 -1e+30, %v857
        %v862 = vsub.f32 -1e+30, %v858
        %v863 = vsub.f32 -1e+30, %v859
        %v864 = vsub.f32 -1e+30, %v860
        %v865 = vmul.f32 %v861, 1.442695
        %v866 = vpow.pop %v865
        %v867 = vmul.f32 %v862, 1.442695
        %v868 = vpow.pop %v867
        %v869 = vmul.f32 %v863, 1.442695
        %v870 = vpow.pop %v869
        %v871 = vmul.f32 %v864, 1.442695
        %v872 = vpow.pop %v871
        %v873 = vsub.f32 %v773, %v857
        %v874 = vsub.f32 %v796, %v858
        %v875 = vsub.f32 %v819, %v859
        %v876 = vsub.f32 %v842, %v860
        %v877 = vmul.f32 %v873, 1.442695
        %v878 = vpow.pop %v877
        %v879 = vmul.f32 %v874, 1.442695
        %v880 = vpow.pop %v879
        %v881 = vmul.f32 %v875, 1.442695
        %v882 = vpow.pop %v881
        %v883 = vmul.f32 %v876, 1.442695
        %v884 = vpow.pop %v883
        %v885 = vmul.f32 %v866, 0.0
        %v886 = vmul.f32 %v868, 0.0
        %v887 = vmul.f32 %v870, 0.0
        %v888 = vmul.f32 %v872, 0.0
        %v889 = vsel %vm756, %v878, 0.0
        %890 = vadd.xlane.f32.xlu0 %v889
        %v891 = vpop.xlane.xlu0 %890
        %v892 = vsel %vm756, %v880, 0.0
        %893 = vadd.xlane.f32.xlu0 %v892
        %v894 = vpop.xlane.xlu0 %893
        %v895 = vsel %vm756, %v882, 0.0
        %896 = vadd.xlane.f32.xlu0 %v895
        %v897 = vpop.xlane.xlu0 %896
        %v898 = vsel %vm756, %v884, 0.0
        %899 = vadd.xlane.f32.xlu0 %v898
        %v900 = vpop.xlane.xlu0 %899
        %v901 = vadd.f32 %v885, %v891
        %v902 = vadd.f32 %v886, %v894
        %v903 = vadd.f32 %v887, %v897
        %v904 = vadd.f32 %v888, %v900
        %v906 = vperm.slane %v521, 0
        %v908 = vmul.f32 %v878, %v906
        %v909 = vmul.f32 %v880, %v906
        %v910 = vmul.f32 %v882, %v906
        %v911 = vmul.f32 %v884, %v906
        %v912 = vpack.c.bf16 %v908, %v908
        %v913 = vpack.c.bf16 %v909, %v909
        %v914 = vpack.c.bf16 %v910, %v910
        %v915 = vpack.c.bf16 %v911, %v911
        %916 = vrot.lane.b32.xlu0 %v753, 112
        %v917 = vpop.permute.xlu0 %916
        %v919 = vsel %vm756, %v912, 0
        %vm921 = vcmask 1043456
        %v923 = vsel %vm921, %v917, 0
        %925 = vmatpush.bf16.msra.mxu0 0
        %926 = vmatpush.bf16.msra.mxu0 0
        %927 = vmatpush.bf16.msra.mxu0 0
        %928 = vmatpush.bf16.msra.mxu0 0
        %929 = vmatpush.bf16.msra.mxu0 0
        %930 = vmatpush.bf16.msra.mxu0 0
        %931 = vmatpush.bf16.msra.mxu0 0
        %932 = vmatpush.bf16.msra.mxu0 %v923
        %933 = vmatmul.bf16.gmra.mxu0 %v919
        %v934 = vpop.f32.mrf.mxu0
        %v935 = vadd.f32 0.0, %v934
        %v936 = vpop.f32.mrf.mxu0
        %937 = vdwg.mxu0
        %938 = vrot.lane.b32.xlu0 %v777, 112
        %v939 = vpop.permute.xlu0 %938
        %v941 = vsel %vm756, %v913, 0
        %v944 = vsel %vm921, %v939, 0
        %946 = vmatpush.bf16.msra.mxu0 0
        %947 = vmatpush.bf16.msra.mxu0 0
        %948 = vmatpush.bf16.msra.mxu0 0
        %949 = vmatpush.bf16.msra.mxu0 0
        %950 = vmatpush.bf16.msra.mxu0 0
        %951 = vmatpush.bf16.msra.mxu0 0
        %952 = vmatpush.bf16.msra.mxu0 0
        %953 = vmatpush.bf16.msra.mxu0 %v944
        %954 = vmatmul.bf16.gmra.mxu0 %v941
        %v955 = vpop.f32.mrf.mxu0
        %v956 = vadd.f32 0.0, %v955
        %v957 = vpop.f32.mrf.mxu0
        %958 = vdwg.mxu0
        %959 = vrot.lane.b32.xlu0 %v800, 112
        %v960 = vpop.permute.xlu0 %959
        %v962 = vsel %vm756, %v914, 0
        %v965 = vsel %vm921, %v960, 0
        %967 = vmatpush.bf16.msra.mxu0 0
        %968 = vmatpush.bf16.msra.mxu0 0
        %969 = vmatpush.bf16.msra.mxu0 0
        %970 = vmatpush.bf16.msra.mxu0 0
        %971 = vmatpush.bf16.msra.mxu0 0
        %972 = vmatpush.bf16.msra.mxu0 0
        %973 = vmatpush.bf16.msra.mxu0 0
        %974 = vmatpush.bf16.msra.mxu0 %v965
        %975 = vmatmul.bf16.gmra.mxu0 %v962
        %v976 = vpop.f32.mrf.mxu0
        %v977 = vadd.f32 0.0, %v976
        %v978 = vpop.f32.mrf.mxu0
        %979 = vdwg.mxu0
        %980 = vrot.lane.b32.xlu0 %v823, 112
        %v981 = vpop.permute.xlu0 %980
        %v983 = vsel %vm756, %v915, 0
        %v986 = vsel %vm921, %v981, 0
        %988 = vmatpush.bf16.msra.mxu0 0
        %989 = vmatpush.bf16.msra.mxu0 0
        %990 = vmatpush.bf16.msra.mxu0 0
        %991 = vmatpush.bf16.msra.mxu0 0
        %992 = vmatpush.bf16.msra.mxu0 0
        %993 = vmatpush.bf16.msra.mxu0 0
        %994 = vmatpush.bf16.msra.mxu0 0
        %995 = vmatpush.bf16.msra.mxu0 %v986
        %996 = vmatmul.bf16.gmra.mxu0 %v983
        %v997 = vpop.f32.mrf.mxu0
        %v998 = vadd.f32 0.0, %v997
        %v999 = vpop.f32.mrf.mxu0
        %1000 = vdwg.mxu0
        %v1001 = vadd.f32 %v885, %v935
        %v1002 = vadd.f32 %v886, %v956
        %v1003 = vadd.f32 %v887, %v977
        %v1004 = vadd.f32 %v888, %v998
        %v1005 = vrcp.pop %v901
        %v1006 = vrcp.pop %v902
        %v1007 = vrcp.pop %v903
        %v1008 = vrcp.pop %v904
        %v1009 = vmul.f32 %v1001, %v1005
        %v1010 = vmul.f32 %v1002, %v1006
        %v1011 = vmul.f32 %v1003, %v1007
        %v1012 = vmul.f32 %v1004, %v1008
        %v1013 = vpack.c.bf16 %v1009, %v1009
        %v1014 = vld [vmem:[%s4] sm:$0xf]
        %v1015 = vpack.c.bf16 %v1010, %v1010
        %s1016 = scalar_lea.vmem %s4, 4
        %v1017 = vld [vmem:[%s1016] sm:$0xf]
        %v1019 = vsel %vm756, %v1015, 0
        %v1022 = vsel %vm921, %v1017, 0
        %1024 = vmatpush.bf16.msra.mxu0 0
        %1025 = vmatpush.bf16.msra.mxu0 0
        %1026 = vmatpush.bf16.msra.mxu0 0
        %1027 = vmatpush.bf16.msra.mxu0 0
        %1028 = vmatpush.bf16.msra.mxu0 0
        %1029 = vmatpush.bf16.msra.mxu0 0
        %1030 = vmatpush.bf16.msra.mxu0 0
        %1031 = vmatpush.bf16.msra.mxu0 %v1022
        %1032 = vmatmul.bf16.gmra.mxu0 %v1019
        %v1033 = vpop.f32.mrf.mxu0
        %v1034 = vadd.f32 0.0, %v1033
        %v1035 = vpop.f32.mrf.mxu0
        %1036 = vdwg.mxu0
        %v1038 = vsel %vm756, %v1013, 0
        %v1041 = vsel %vm921, %v1014, 0
        %1043 = vmatpush.bf16.msra.mxu0 0
        %1044 = vmatpush.bf16.msra.mxu0 0
        %1045 = vmatpush.bf16.msra.mxu0 0
        %1046 = vmatpush.bf16.msra.mxu0 0
        %1047 = vmatpush.bf16.msra.mxu0 0
        %1048 = vmatpush.bf16.msra.mxu0 0
        %1049 = vmatpush.bf16.msra.mxu0 0
        %1050 = vmatpush.bf16.msra.mxu0 %v1041
        %1051 = vmatmul.bf16.gmra.mxu0 %v1038
        %v1052 = vpop.f32.mrf.mxu0
        %v1053 = vadd.f32 %v1034, %v1052
        %v1054 = vpop.f32.mrf.mxu0
        %1055 = vdwg.mxu0
        %v1056 = vpack.c.bf16 %v1011, %v1011
        %s1057 = scalar_lea.vmem %s4, 8
        %v1058 = vld [vmem:[%s1057] sm:$0xf]
        %v1060 = vsel %vm756, %v1056, 0
        %v1063 = vsel %vm921, %v1058, 0
        %1065 = vmatpush.bf16.msra.mxu0 0
        %1066 = vmatpush.bf16.msra.mxu0 0
        %1067 = vmatpush.bf16.msra.mxu0 0
        %1068 = vmatpush.bf16.msra.mxu0 0
        %1069 = vmatpush.bf16.msra.mxu0 0
        %1070 = vmatpush.bf16.msra.mxu0 0
        %1071 = vmatpush.bf16.msra.mxu0 0
        %1072 = vmatpush.bf16.msra.mxu0 %v1063
        %1073 = vmatmul.bf16.gmra.mxu0 %v1060
        %v1074 = vpop.f32.mrf.mxu0
        %v1075 = vadd.f32 0.0, %v1074
        %v1076 = vpop.f32.mrf.mxu0
        %1077 = vdwg.mxu0
        %v1078 = vadd.f32 %v1053, %v1075
        %v1079 = vpack.c.bf16 %v1012, %v1012
        %s1080 = scalar_lea.vmem %s4, 12
        %v1081 = vld [vmem:[%s1080] sm:$0xf]
        %v1083 = vsel %vm756, %v1079, 0
        %v1086 = vsel %vm921, %v1081, 0
        %1088 = vmatpush.bf16.msra.mxu0 0
        %1089 = vmatpush.bf16.msra.mxu0 0
        %1090 = vmatpush.bf16.msra.mxu0 0
        %1091 = vmatpush.bf16.msra.mxu0 0
        %1092 = vmatpush.bf16.msra.mxu0 0
        %1093 = vmatpush.bf16.msra.mxu0 0
        %1094 = vmatpush.bf16.msra.mxu0 0
        %1095 = vmatpush.bf16.msra.mxu0 %v1086
        %1096 = vmatmul.bf16.gmra.mxu0 %v1083
        %v1097 = vpop.f32.mrf.mxu0
        %v1098 = vadd.f32 0.0, %v1097
        %v1099 = vpop.f32.mrf.mxu0
        %1100 = vdwg.mxu0
        %v1101 = vadd.f32 %v1078, %v1098
        %v1102 = vadd.f32 %v516, %v1101
        %v1103 = vld [vmem:[%s5] sm:$0x1]
        %v1105 = vperm.slane %v1103, 0
        %v1107 = vadd.f32 %v1102, %v1105
        %v1108 = vld [vmem:[%s8] sm:$0x1]
        %v1109 = vld [vmem:[%s9] sm:$0x1]
        %v1110 = vsel %vm524, %v1107, 0.0
        %1111 = vadd.xlane.f32.xlu0 %v1110
        %v1112 = vpop.xlane.xlu0 %1111
        %v1113 = vmul.f32 %v1112, %v534
        %v1114 = vsub.f32 %v1107, %v1113
        %v1115 = vmul.f32 %v1114, %v1114
        %v1116 = vsel %vm524, %v1115, 0.0
        %1117 = vadd.xlane.f32.xlu0 %v1116
        %v1118 = vpop.xlane.xlu0 %1117
        %v1119 = vmul.f32 %v1118, %v534
        %v1120 = vadd.f32 %v1119, 1e-12
        %v1121 = vrsqrt.pop %v1120
        %v1122 = vmul.f32 %v1121, %v1120
        %v1123 = vmul.f32 %v1122, %v1121
        %v1124 = vmul.f32 0.5, %v1123
        %v1125 = vsub.f32 1.5, %v1124
        %v1126 = vmul.f32 %v1121, %v1125
        %vm1127 = vweird.f32 %v1120
        %vm1128 = vweird.f32 %v1121
        %vm1129 = vmor %vm1127, %vm1128
        %v1130 = vsel %vm1129, %v1121, %v1126
        %v1131 = vmul.f32 %v1114, %v1130
        %v1133 = vperm.slane %v1108, 0
        %v1135 = vmul.f32 %v1131, %v1133
        %v1137 = vperm.slane %v1109, 0
        %v1139 = vadd.f32 %v1135, %v1137
        %v1140 = vpack.c.bf16 %v1139, %v1139
        %v1141 = vld [vmem:[%s10] sm:$0xf]
        %v1142 = vld [vmem:[%s10 + $0x4] sm:$0xf]
        %v1143 = vld [vmem:[%s10 + $0x8] sm:$0xf]
        %v1144 = vld [vmem:[%s10 + $0xc] sm:$0xf]
        %v1145 = vld [vmem:[%s11] sm:$0x1]
        %v1147 = vperm.slane %v1145, 0
        %v1153 = vunpack.c.l.b16 %v1141
        %v1154 = vunpack.c.l.b16 %v1142
        %v1155 = vunpack.c.l.b16 %v1143
        %v1156 = vunpack.c.l.b16 %v1144
        %v1157 = vpack.c.b16 %v1154, %v1153
        %v1158 = vpack.c.b16 %v1156, %v1155
        %v1162 = vsel %vm524, %v1140, 0
        %1164 = vmatpush.bf16.msra.mxu0 0
        %1165 = vmatpush.bf16.msra.mxu0 0
        %1166 = vmatpush.bf16.msra.mxu0 0
        %1167 = vmatpush.bf16.msra.mxu0 0
        %1168 = vmatpush.bf16.msra.mxu0 0
        %1169 = vmatpush.bf16.msra.mxu0 0
        %1170 = vmatpush.bf16.msra.mxu0 %v1158
        %1171 = vmatpush.bf16.msra.mxu0 %v1157
        %1172 = vmatmul.bf16.gmra.mxu0 %v1162
        %v1173 = vpop.f32.mrf.mxu0
        %v1174 = vadd.f32 %v1147, %v1173
        %v1175 = vpop.f32.mrf.mxu0
        %1176 = vdwg.mxu0
        %v1177 = vmax.f32 %v1174, 0.0
        %v1178 = vpack.c.bf16 %v1177, %v1177
        %v1179 = vld [vmem:[%s12] sm:$0xf]
        %v1180 = vld [vmem:[%s12 + $0x4] sm:$0xf]
        %v1181 = vld [vmem:[%s12 + $0x8] sm:$0xf]
        %v1182 = vld [vmem:[%s12 + $0xc] sm:$0xf]
        %v1183 = vld [vmem:[%s12 + $0x10] sm:$0xf]
        %v1184 = vld [vmem:[%s12 + $0x14] sm:$0xf]
        %v1185 = vld [vmem:[%s12 + $0x18] sm:$0xf]
        %v1186 = vld [vmem:[%s12 + $0x1c] sm:$0xf]
        %v1195 = vunpack.c.l.b16 %v1179
        %v1196 = vunpack.c.l.b16 %v1180
        %v1197 = vunpack.c.l.b16 %v1181
        %v1198 = vunpack.c.l.b16 %v1182
        %v1199 = vunpack.c.l.b16 %v1183
        %v1200 = vunpack.c.l.b16 %v1184
        %v1201 = vunpack.c.l.b16 %v1185
        %v1202 = vunpack.c.l.b16 %v1186
        %v1203 = vpack.c.b16 %v1196, %v1195
        %v1204 = vpack.c.b16 %v1198, %v1197
        %v1205 = vpack.c.b16 %v1200, %v1199
        %v1206 = vpack.c.b16 %v1202, %v1201
        %vm1211 = vcmask 523264
        %v1213 = vsel %vm1211, %v1178, 0
        %1215 = vmatpush.bf16.msra.mxu0 0
        %1216 = vmatpush.bf16.msra.mxu0 0
        %1217 = vmatpush.bf16.msra.mxu0 0
        %1218 = vmatpush.bf16.msra.mxu0 0
        %1219 = vmatpush.bf16.msra.mxu0 %v1206
        %1220 = vmatpush.bf16.msra.mxu0 %v1205
        %1221 = vmatpush.bf16.msra.mxu0 %v1204
        %1222 = vmatpush.bf16.msra.mxu0 %v1203
        %1223 = vmatmul.bf16.gmra.mxu0 %v1213
        %v1224 = vpop.f32.mrf.mxu0
        %v1225 = vadd.f32 0.0, %v1224
        %v1226 = vpop.f32.mrf.mxu0
        %1227 = vdwg.mxu0
        %v1228 = vadd.f32 %v1107, %v1225
        %v1229 = vld [vmem:[%s13] sm:$0x1]
        %v1231 = vperm.slane %v1229, 0
        %v1233 = vadd.f32 %v1228, %v1231
        %1234 = vst.msk [vmem:[%s500] sm:$0xff] %vm524, %v1233
        %s1235 = sand.u32 %s345, 1
        %s1236 = scalar_lea.sflag [#allocation4], %s1235
        %s1237 = sand.u32 %s345, 1
        %s1238 = smul.addr %s1237, 8
        %s1239 = scalar_lea.vmem [#allocation3], %s1238
        %s1240 = sand.u32 %s371, 1
        %s1241 = scalar_lea.sflag [#allocation6], %s1240
        %s1242 = sand.u32 %s371, 1
        %s1243 = smul.addr %s1242, 16
        %s1244 = scalar_lea.vmem [#allocation5], %s1243
        // Predicated region
        $region77: #{tpu_custom_call.1} parent=75 // pred_check
          %p1245 = pneg %p355
        $region78: #{tpu_custom_call.1} parent=75 // pred_check_branch
          %1247 = sbr.rel (%p1245) target = $region80
        $region79: #{tpu_custom_call.1} parent=75 // pred_region
          %1249 = vsyncadd %s1236, 0
          %s1250 = smul.addr %s33, 8
          %s1251 = scalar_lea.hbm %s14, %s1250
          %s1253 = sshll.u32 %s1239, 4
          %s1254 = int_to_ptr.vmem [resolvable:$true] %s1253
          %s1255 = sshll.u32 %s1251, 4
          %s1256 = int_to_ptr.hbm [resolvable:$true] %s1255
          %1258 = dma.vmem_to_hbm [thread:$0]  %s1254, 128, %s1256, %s1236
        $region80: #{tpu_custom_call.1} parent=75 // pred_fallthru
          _
        // Predicated region
        $region81: #{tpu_custom_call.1} parent=75 // pred_check
          %p1259 = pneg %p381
        $region82: #{tpu_custom_call.1} parent=75 // pred_check_branch
          %1261 = sbr.rel (%p1259) target = $region84
        $region83: #{tpu_custom_call.1} parent=75 // pred_region
          %1263 = vsyncadd %s1241, 0
          %s1264 = smul.addr %s33, 4
          %s1265 = smul.addr %s1264, 4
          %s1266 = scalar_lea.hbm %s15, %s1265
          %s1267 = sshll.u32 %s1244, 4
          %s1268 = int_to_ptr.vmem [resolvable:$true] %s1267
          %s1269 = sshll.u32 %s1266, 4
          %s1270 = int_to_ptr.hbm [resolvable:$true] %s1269
          %1275 = dma.vmem_to_hbm [thread:$0]  %s1268, 256, %s1270, %s1241, 64, 64, 4
        $region84: #{tpu_custom_call.1} parent=75 // pred_fallthru
          _
      $region76: #{tpu_custom_call.1} parent=5 // pred_fallthru
        _
      %p1276 = scmp.le.s32.totalorder 2, %s28
      // Predicated region
      $region85: #{tpu_custom_call.1} parent=5 // pred_check
        %p1277 = pneg %p1276
      $region86: #{tpu_custom_call.1} parent=5 // pred_check_branch
        %1279 = sbr.rel (%p1277) target = $region88
      $region87: #{tpu_custom_call.1} parent=5 // pred_region
        %s1280 = ssub.s32 %s28, 2
        // Predicated region
        $region89: #{tpu_custom_call.1} parent=87 // pred_check
          %p1281 = pneg %p361
        $region90: #{tpu_custom_call.1} parent=87 // pred_check_branch
          %1283 = sbr.rel (%p1281) target = $region92
        $region91: #{tpu_custom_call.1} parent=87 // pred_region
          %s1284 = sand.u32 %s346, 1
          %s1285 = scalar_lea.sflag [#allocation4], %s1284
          %s1286 = sand.u32 %s346, 1
          %s1287 = smul.addr %s1286, 8
          %s1288 = scalar_lea.vmem [#allocation3], %s1287
          %1290 = dma.done %s1285, 128
        $region92: #{tpu_custom_call.1} parent=87 // pred_fallthru
          _
        // Predicated region
        $region93: #{tpu_custom_call.1} parent=87 // pred_check
          %p1291 = pneg %p387
        $region94: #{tpu_custom_call.1} parent=87 // pred_check_branch
          %1293 = sbr.rel (%p1291) target = $region96
        $region95: #{tpu_custom_call.1} parent=87 // pred_region
          %s1294 = sand.u32 %s372, 1
          %s1295 = scalar_lea.sflag [#allocation6], %s1294
          %s1296 = sand.u32 %s372, 1
          %s1297 = smul.addr %s1296, 16
          %s1298 = scalar_lea.vmem [#allocation5], %s1297
          %1300 = dma.done %s1295, 256
        $region96: #{tpu_custom_call.1} parent=87 // pred_fallthru
          _
      $region88: #{tpu_custom_call.1} parent=5 // pred_fallthru
        _
    $region6: #{tpu_custom_call.1} parent=1 // loop_footer
      %s32 = sadd.s32 1, %s28
    $region7: #{tpu_custom_call.1} parent=1 // loop_footer_branch
      %27 = sbr.rel target = $region3
    $region8: #{tpu_custom_call.1} parent=1 // loop_exit
      _
    %1301 = vsyncpa [#allocation4], 1
    %s1302 = scalar_lea.sflag [#allocation4], 1
    %1303 = vsyncpa %s1302, 1
    %1304 = vsyncpa [#allocation6], 1
    %s1305 = scalar_lea.sflag [#allocation6], 1
    %1306 = vsyncpa %s1305, 1

// kernel: tpu_custom_call.1
$region0: #{tpu_custom_call.1}
  #allocation0 [shape = 'u32[]', space=smem, size = 0x4, offset = 0x4, fixed_abs, tag = 'smem constant byte address 0x4 - core index']
  #allocation1 [shape = 'u32[72,128]{1,0:T(1,128)}', space=vmem, size = 0x9000, scoped, tag = 'internal scratch']
  #allocation2 [shape = 'f32[4,8,24]{2,1,0:T(8,128)}', space=vmem, size = 0x4000, scoped, tag = 'scratch operand']
  %s0 = inlined_call_operand.vmem [shape: f32[2,8,32], index: 0, kind: input, shape index: {}]
  %s1 = inlined_call_operand.vmem [shape: f32[2,1,8], index: 1, kind: input, shape index: {}]
  %s2 = inlined_call_operand.vmem [shape: bf16[4,32,24], index: 2, kind: input, shape index: {}]
  %s3 = inlined_call_operand.vmem [shape: f32[4,1,24], index: 3, kind: input, shape index: {}]
  %s4 = inlined_call_operand.vmem [shape: bf16[4,8,32], index: 4, kind: input, shape index: {}]
  %s5 = inlined_call_operand.vmem [shape: f32[1,32], index: 5, kind: input, shape index: {}]
  %s6 = inlined_call_operand.vmem [shape: f32[1,32], index: 6, kind: input, shape index: {}]
  %s7 = inlined_call_operand.vmem [shape: f32[1,32], index: 7, kind: input, shape index: {}]
  %s8 = inlined_call_operand.vmem [shape: f32[1,32], index: 8, kind: input, shape index: {}]
  %s9 = inlined_call_operand.vmem [shape: f32[1,32], index: 9, kind: input, shape index: {}]
  %s10 = inlined_call_operand.vmem [shape: bf16[32,64], index: 10, kind: input, shape index: {}]
  %s11 = inlined_call_operand.vmem [shape: f32[1,64], index: 11, kind: input, shape index: {}]
  %s12 = inlined_call_operand.vmem [shape: bf16[64,32], index: 12, kind: input, shape index: {}]
  %s13 = inlined_call_operand.vmem [shape: f32[1,32], index: 13, kind: input, shape index: {}]
  %s14 = inlined_call_operand.hbm [shape: f32[2,8,32], index: 14, kind: output, shape index: {0}]
  %s15 = inlined_call_operand.hbm [shape: bf16[2,4,8,16], index: 15, kind: output, shape index: {1}]
  %16 = xla_tuple %s14, %s15
  %s17 = sld [smem:[#allocation0]]
  $region97: #{tpu_custom_call.1} parent=0
    _
  %s19 = ssub.s32 1, %s17
  %s20 = scalar_select 0, %s19, %s17
  $region1: #{tpu_custom_call.1} parent=0
    #allocation3 [shape = 'u8[8192]{0}', space=vmem, size = 0x2000, scoped, tag = 'output window, operand 0']
    #allocation4 [shape = 's32[2]{0}', space=sflag, size = 0x8, scoped, tag = 'scoped memory for tpu_custom_call.1']
    #allocation5 [shape = 'u8[16384]{0}', space=vmem, size = 0x4000, scoped, tag = 'output window, operand 1']
    #allocation6 [shape = 's32[2]{0}', space=sflag, size = 0x8, scoped, tag = 'scoped memory for tpu_custom_call.1']
    %21 = vsyncpa [#allocation4], 0
    %s22 = scalar_lea.sflag [#allocation4], 1
    %23 = vsyncpa %s22, 0
    %24 = vsyncpa [#allocation6], 0
    %s25 = scalar_lea.sflag [#allocation6], 1
    %26 = vsyncpa %s25, 0
    loop: start=0, step=1, limit=4
    $region2: #{tpu_custom_call.1} parent=1 // loop_pre_header
      _
    $region3: #{tpu_custom_call.1} parent=1 // loop_header
      %s28 = sphi 0, %s32
      %p29 = scmp.ge.s32.totalorder %s28, 4
      %s38 = sphi 0, %s40
      %s41 = sphi 0, %s38
      %s42 = sphi 0, %s41
      %s58 = sphi 0, %s42
      %s64 = sphi 0, %s66
      %s67 = sphi 0, %s64
      %s68 = sphi 0, %s67
      %s84 = sphi 0, %s68
      %s88 = sphi 0, %s88
      %s90 = sphi 0, %s88
      %s91 = sphi 0, %s90
      %s105 = sphi 0, %s91
      %s109 = sphi 0, %s109
      %s111 = sphi 0, %s109
      %s112 = sphi 0, %s111
      %s126 = sphi 0, %s112
      %s130 = sphi 0, %s130
      %s132 = sphi 0, %s130
      %s133 = sphi 0, %s132
      %s147 = sphi 0, %s133
      %s151 = sphi 0, %s151
      %s153 = sphi 0, %s151
      %s154 = sphi 0, %s153
      %s168 = sphi 0, %s154
      %s172 = sphi 0, %s172
      %s174 = sphi 0, %s172
      %s175 = sphi 0, %s174
      %s189 = sphi 0, %s175
      %s193 = sphi 0, %s193
      %s195 = sphi 0, %s193
      %s196 = sphi 0, %s195
      %s210 = sphi 0, %s196
      %s214 = sphi 0, %s214
      %s216 = sphi 0, %s214
      %s217 = sphi 0, %s216
      %s231 = sphi 0, %s217
      %s235 = sphi 0, %s235
      %s237 = sphi 0, %s235
      %s238 = sphi 0, %s237
      %s252 = sphi 0, %s238
      %s256 = sphi 0, %s256
      %s258 = sphi 0, %s256
      %s259 = sphi 0, %s258
      %s273 = sphi 0, %s259
      %s277 = sphi 0, %s277
      %s279 = sphi 0, %s277
      %s280 = sphi 0, %s279
      %s294 = sphi 0, %s280
      %s298 = sphi 0, %s298
      %s300 = sphi 0, %s298
      %s301 = sphi 0, %s300
      %s315 = sphi 0, %s301
      %s319 = sphi 0, %s319
      %s321 = sphi 0, %s319
      %s322 = sphi 0, %s321
      %s336 = sphi 0, %s322
      %s342 = sphi 0, %s344
      %s345 = sphi 0, %s342
      %s346 = sphi 0, %s345
      %s362 = sphi 0, %s346
      %s368 = sphi 0, %s370
      %s371 = sphi 0, %s368
      %s372 = sphi 0, %s371
      %s388 = sphi 0, %s372
    $region4: #{tpu_custom_call.1} parent=1 // loop_header_branch
      %31 = sbr.rel (%p29) target = $region8
    $region5: #{tpu_custom_call.1} parent=1 // loop_body
      %s33 = ssub.s32 %s28, 1
      %s34 = ssub.s32 %s28, 2
      %s35 = sadd.s32 %s28, 1
      %s36 = ssub.s32 %s28, %s35
      %p37 = scmp.eq.s32.totalorder %s36, 0
      %s39 = sadd.s32 %s38, 1
      %s40 = scalar_select %p37, %s38, %s39
      %p43 = pneg %p37
      %p44 = scmp.eq.s32.totalorder %s28, 1
      %p45 = por %p43, %p44
      %p46 = scmp.ne.s32.totalorder %s38, %s41
      %p47 = scmp.eq.s32.totalorder %s28, 0
      %p48 = por %p46, %p47
      %p49 = scmp.ne.s32.totalorder %s38, %s41
      %p50 = scmp.eq.s32.totalorder %s33, 1
      %p51 = por %p49, %p50
      %p52 = scmp.ne.s32.totalorder %s41, %s42
      %p53 = scmp.eq.s32.totalorder %s33, 0
      %p54 = por %p52, %p53
      %p55 = scmp.ne.s32.totalorder %s41, %s42
      %p56 = scmp.eq.s32.totalorder %s34, 1
      %p57 = por %p55, %p56
      %p59 = scmp.ne.s32.totalorder %s42, %s58
      %p60 = scmp.eq.s32.totalorder %s34, 0
      %p61 = por %p59, %p60
      %s62 = ssub.s32 %s28, %s35
      %p63 = scmp.eq.s32.totalorder %s62, 0
      %s65 = sadd.s32 %s64, 1
      %s66 = scalar_select %p63, %s64, %s65
      %p69 = pneg %p63
      %p70 = scmp.eq.s32.totalorder %s28, 1
      %p71 = por %p69, %p70
      %p72 = scmp.ne.s32.totalorder %s64, %s67
      %p73 = scmp.eq.s32.totalorder %s28, 0
      %p74 = por %p72, %p73
      %p75 = scmp.ne.s32.totalorder %s64, %s67
      %p76 = scmp.eq.s32.totalorder %s33, 1
      %p77 = por %p75, %p76
      %p78 = scmp.ne.s32.totalorder %s67, %s68
      %p79 = scmp.eq.s32.totalorder %s33, 0
      %p80 = por %p78, %p79
      %p81 = scmp.ne.s32.totalorder %s67, %s68
      %p82 = scmp.eq.s32.totalorder %s34, 1
      %p83 = por %p81, %p82
      %p85 = scmp.ne.s32.totalorder %s68, %s84
      %p86 = scmp.eq.s32.totalorder %s34, 0
      %p87 = por %p85, %p86
      %s89 = sadd.s32 %s88, 1
      %p92 = scmp.eq.s32.totalorder %s28, 1
      %p93 = scmp.ne.s32.totalorder %s88, %s90
      %p94 = scmp.eq.s32.totalorder %s28, 0
      %p95 = por %p93, %p94
      %p96 = scmp.ne.s32.totalorder %s88, %s90
      %p97 = scmp.eq.s32.totalorder %s33, 1
      %p98 = por %p96, %p97
      %p99 = scmp.ne.s32.totalorder %s90, %s91
      %p100 = scmp.eq.s32.totalorder %s33, 0
      %p101 = por %p99, %p100
      %p102 = scmp.ne.s32.totalorder %s90, %s91
      %p103 = scmp.eq.s32.totalorder %s34, 1
      %p104 = por %p102, %p103
      %p106 = scmp.ne.s32.totalorder %s91, %s105
      %p107 = scmp.eq.s32.totalorder %s34, 0
      %p108 = por %p106, %p107
      %s110 = sadd.s32 %s109, 1
      %p113 = scmp.eq.s32.totalorder %s28, 1
      %p114 = scmp.ne.s32.totalorder %s109, %s111
      %p115 = scmp.eq.s32.totalorder %s28, 0
      %p116 = por %p114, %p115
      %p117 = scmp.ne.s32.totalorder %s109, %s111
      %p118 = scmp.eq.s32.totalorder %s33, 1
      %p119 = por %p117, %p118
      %p120 = scmp.ne.s32.totalorder %s111, %s112
      %p121 = scmp.eq.s32.totalorder %s33, 0
      %p122 = por %p120, %p121
      %p123 = scmp.ne.s32.totalorder %s111, %s112
      %p124 = scmp.eq.s32.totalorder %s34, 1
      %p125 = por %p123, %p124
      %p127 = scmp.ne.s32.totalorder %s112, %s126
      %p128 = scmp.eq.s32.totalorder %s34, 0
      %p129 = por %p127, %p128
      %s131 = sadd.s32 %s130, 1
      %p134 = scmp.eq.s32.totalorder %s28, 1
      %p135 = scmp.ne.s32.totalorder %s130, %s132
      %p136 = scmp.eq.s32.totalorder %s28, 0
      %p137 = por %p135, %p136
      %p138 = scmp.ne.s32.totalorder %s130, %s132
      %p139 = scmp.eq.s32.totalorder %s33, 1
      %p140 = por %p138, %p139
      %p141 = scmp.ne.s32.totalorder %s132, %s133
      %p142 = scmp.eq.s32.totalorder %s33, 0
      %p143 = por %p141, %p142
      %p144 = scmp.ne.s32.totalorder %s132, %s133
      %p145 = scmp.eq.s32.totalorder %s34, 1
      %p146 = por %p144, %p145
      %p148 = scmp.ne.s32.totalorder %s133, %s147
      %p149 = scmp.eq.s32.totalorder %s34, 0
      %p150 = por %p148, %p149
      %s152 = sadd.s32 %s151, 1
      %p155 = scmp.eq.s32.totalorder %s28, 1
      %p156 = scmp.ne.s32.totalorder %s151, %s153
      %p157 = scmp.eq.s32.totalorder %s28, 0
      %p158 = por %p156, %p157
      %p159 = scmp.ne.s32.totalorder %s151, %s153
      %p160 = scmp.eq.s32.totalorder %s33, 1
      %p161 = por %p159, %p160
      %p162 = scmp.ne.s32.totalorder %s153, %s154
      %p163 = scmp.eq.s32.totalorder %s33, 0
      %p164 = por %p162, %p163
      %p165 = scmp.ne.s32.totalorder %s153, %s154
      %p166 = scmp.eq.s32.totalorder %s34, 1
      %p167 = por %p165, %p166
      %p169 = scmp.ne.s32.totalorder %s154, %s168
      %p170 = scmp.eq.s32.totalorder %s34, 0
      %p171 = por %p169, %p170
      %s173 = sadd.s32 %s172, 1
      %p176 = scmp.eq.s32.totalorder %s28, 1
      %p177 = scmp.ne.s32.totalorder %s172, %s174
      %p178 = scmp.eq.s32.totalorder %s28, 0
      %p179 = por %p177, %p178
      %p180 = scmp.ne.s32.totalorder %s172, %s174
      %p181 = scmp.eq.s32.totalorder %s33, 1
      %p182 = por %p180, %p181
      %p183 = scmp.ne.s32.totalorder %s174, %s175
      %p184 = scmp.eq.s32.totalorder %s33, 0
      %p185 = por %p183, %p184
      %p186 = scmp.ne.s32.totalorder %s174, %s175
      %p187 = scmp.eq.s32.totalorder %s34, 1
      %p188 = por %p186, %p187
      %p190 = scmp.ne.s32.totalorder %s175, %s189
      %p191 = scmp.eq.s32.totalorder %s34, 0
      %p192 = por %p190, %p191
      %s194 = sadd.s32 %s193, 1
      %p197 = scmp.eq.s32.totalorder %s28, 1
      %p198 = scmp.ne.s32.totalorder %s193, %s195
      %p199 = scmp.eq.s32.totalorder %s28, 0
      %p200 = por %p198, %p199
      %p201 = scmp.ne.s32.totalorder %s193, %s195
      %p202 = scmp.eq.s32.totalorder %s33, 1
      %p203 = por %p201, %p202
      %p204 = scmp.ne.s32.totalorder %s195, %s196
      %p205 = scmp.eq.s32.totalorder %s33, 0
      %p206 = por %p204, %p205
      %p207 = scmp.ne.s32.totalorder %s195, %s196
      %p208 = scmp.eq.s32.totalorder %s34, 1
      %p209 = por %p207, %p208
      %p211 = scmp.ne.s32.totalorder %s196, %s210
      %p212 = scmp.eq.s32.totalorder %s34, 0
      %p213 = por %p211, %p212
      %s215 = sadd.s32 %s214, 1
      %p218 = scmp.eq.s32.totalorder %s28, 1
      %p219 = scmp.ne.s32.totalorder %s214, %s216
      %p220 = scmp.eq.s32.totalorder %s28, 0
      %p221 = por %p219, %p220
      %p222 = scmp.ne.s32.totalorder %s214, %s216
      %p223 = scmp.eq.s32.totalorder %s33, 1
      %p224 = por %p222, %p223
      %p225 = scmp.ne.s32.totalorder %s216, %s217
      %p226 = scmp.eq.s32.totalorder %s33, 0
      %p227 = por %p225, %p226
      %p228 = scmp.ne.s32.totalorder %s216, %s217
      %p229 = scmp.eq.s32.totalorder %s34, 1
      %p230 = por %p228, %p229
      %p232 = scmp.ne.s32.totalorder %s217, %s231
      %p233 = scmp.eq.s32.totalorder %s34, 0
      %p234 = por %p232, %p233
      %s236 = sadd.s32 %s235, 1
      %p239 = scmp.eq.s32.totalorder %s28, 1
      %p240 = scmp.ne.s32.totalorder %s235, %s237
      %p241 = scmp.eq.s32.totalorder %s28, 0
      %p242 = por %p240, %p241
      %p243 = scmp.ne.s32.totalorder %s235, %s237
      %p244 = scmp.eq.s32.totalorder %s33, 1
      %p245 = por %p243, %p244
      %p246 = scmp.ne.s32.totalorder %s237, %s238
      %p247 = scmp.eq.s32.totalorder %s33, 0
      %p248 = por %p246, %p247
      %p249 = scmp.ne.s32.totalorder %s237, %s238
      %p250 = scmp.eq.s32.totalorder %s34, 1
      %p251 = por %p249, %p250
      %p253 = scmp.ne.s32.totalorder %s238, %s252
      %p254 = scmp.eq.s32.totalorder %s34, 0
      %p255 = por %p253, %p254
      %s257 = sadd.s32 %s256, 1
      %p260 = scmp.eq.s32.totalorder %s28, 1
      %p261 = scmp.ne.s32.totalorder %s256, %s258
      %p262 = scmp.eq.s32.totalorder %s28, 0
      %p263 = por %p261, %p262
      %p264 = scmp.ne.s32.totalorder %s256, %s258
      %p265 = scmp.eq.s32.totalorder %s33, 1
      %p266 = por %p264, %p265
      %p267 = scmp.ne.s32.totalorder %s258, %s259
      %p268 = scmp.eq.s32.totalorder %s33, 0
      %p269 = por %p267, %p268
      %p270 = scmp.ne.s32.totalorder %s258, %s259
      %p271 = scmp.eq.s32.totalorder %s34, 1
      %p272 = por %p270, %p271
      %p274 = scmp.ne.s32.totalorder %s259, %s273
      %p275 = scmp.eq.s32.totalorder %s34, 0
      %p276 = por %p274, %p275
      %s278 = sadd.s32 %s277, 1
      %p281 = scmp.eq.s32.totalorder %s28, 1
      %p282 = scmp.ne.s32.totalorder %s277, %s279
      %p283 = scmp.eq.s32.totalorder %s28, 0
      %p284 = por %p282, %p283
      %p285 = scmp.ne.s32.totalorder %s277, %s279
      %p286 = scmp.eq.s32.totalorder %s33, 1
      %p287 = por %p285, %p286
      %p288 = scmp.ne.s32.totalorder %s279, %s280
      %p289 = scmp.eq.s32.totalorder %s33, 0
      %p290 = por %p288, %p289
      %p291 = scmp.ne.s32.totalorder %s279, %s280
      %p292 = scmp.eq.s32.totalorder %s34, 1
      %p293 = por %p291, %p292
      %p295 = scmp.ne.s32.totalorder %s280, %s294
      %p296 = scmp.eq.s32.totalorder %s34, 0
      %p297 = por %p295, %p296
      %s299 = sadd.s32 %s298, 1
      %p302 = scmp.eq.s32.totalorder %s28, 1
      %p303 = scmp.ne.s32.totalorder %s298, %s300
      %p304 = scmp.eq.s32.totalorder %s28, 0
      %p305 = por %p303, %p304
      %p306 = scmp.ne.s32.totalorder %s298, %s300
      %p307 = scmp.eq.s32.totalorder %s33, 1
      %p308 = por %p306, %p307
      %p309 = scmp.ne.s32.totalorder %s300, %s301
      %p310 = scmp.eq.s32.totalorder %s33, 0
      %p311 = por %p309, %p310
      %p312 = scmp.ne.s32.totalorder %s300, %s301
      %p313 = scmp.eq.s32.totalorder %s34, 1
      %p314 = por %p312, %p313
      %p316 = scmp.ne.s32.totalorder %s301, %s315
      %p317 = scmp.eq.s32.totalorder %s34, 0
      %p318 = por %p316, %p317
      %s320 = sadd.s32 %s319, 1
      %p323 = scmp.eq.s32.totalorder %s28, 1
      %p324 = scmp.ne.s32.totalorder %s319, %s321
      %p325 = scmp.eq.s32.totalorder %s28, 0
      %p326 = por %p324, %p325
      %p327 = scmp.ne.s32.totalorder %s319, %s321
      %p328 = scmp.eq.s32.totalorder %s33, 1
      %p329 = por %p327, %p328
      %p330 = scmp.ne.s32.totalorder %s321, %s322
      %p331 = scmp.eq.s32.totalorder %s33, 0
      %p332 = por %p330, %p331
      %p333 = scmp.ne.s32.totalorder %s321, %s322
      %p334 = scmp.eq.s32.totalorder %s34, 1
      %p335 = por %p333, %p334
      %p337 = scmp.ne.s32.totalorder %s322, %s336
      %p338 = scmp.eq.s32.totalorder %s34, 0
      %p339 = por %p337, %p338
      %s340 = ssub.s32 %s28, %s35
      %p341 = scmp.eq.s32.totalorder %s340, 0
      %s343 = sadd.s32 %s342, 1
      %s344 = scalar_select %p341, %s342, %s343
      %p347 = pneg %p341
      %p348 = scmp.eq.s32.totalorder %s28, 1
      %p349 = por %p347, %p348
      %p350 = scmp.ne.s32.totalorder %s342, %s345
      %p351 = scmp.eq.s32.totalorder %s28, 0
      %p352 = por %p350, %p351
      %p353 = scmp.ne.s32.totalorder %s342, %s345
      %p354 = scmp.eq.s32.totalorder %s33, 1
      %p355 = por %p353, %p354
      %p356 = scmp.ne.s32.totalorder %s345, %s346
      %p357 = scmp.eq.s32.totalorder %s33, 0
      %p358 = por %p356, %p357
      %p359 = scmp.ne.s32.totalorder %s345, %s346
      %p360 = scmp.eq.s32.totalorder %s34, 1
      %p361 = por %p359, %p360
      %p363 = scmp.ne.s32.totalorder %s346, %s362
      %p364 = scmp.eq.s32.totalorder %s34, 0
      %p365 = por %p363, %p364
      %s366 = ssub.s32 %s28, %s35
      %p367 = scmp.eq.s32.totalorder %s366, 0
      %s369 = sadd.s32 %s368, 1
      %s370 = scalar_select %p367, %s368, %s369
      %p373 = pneg %p367
      %p374 = scmp.eq.s32.totalorder %s28, 1
      %p375 = por %p373, %p374
      %p376 = scmp.ne.s32.totalorder %s368, %s371
      %p377 = scmp.eq.s32.totalorder %s28, 0
      %p378 = por %p376, %p377
      %p379 = scmp.ne.s32.totalorder %s368, %s371
      %p380 = scmp.eq.s32.totalorder %s33, 1
      %p381 = por %p379, %p380
      %p382 = scmp.ne.s32.totalorder %s371, %s372
      %p383 = scmp.eq.s32.totalorder %s33, 0
      %p384 = por %p382, %p383
      %p385 = scmp.ne.s32.totalorder %s371, %s372
      %p386 = scmp.eq.s32.totalorder %s34, 1
      %p387 = por %p385, %p386
      %p389 = scmp.ne.s32.totalorder %s372, %s388
      %p390 = scmp.eq.s32.totalorder %s34, 0
      %p391 = por %p389, %p390
      %p392 = scmp.le.s32.totalorder 1, %s28
      %p393 = scmp.lt.s32.totalorder %s28, 3
      %p394 = pnand %p392, %p393
      %p395 = pneg %p394
      // Predicated region
      $region9: #{tpu_custom_call.1} parent=5 // pred_check
        _
      $region10: #{tpu_custom_call.1} parent=5 // pred_check_branch
        %397 = sbr.rel (%p394) target = $region12
      $region11: #{tpu_custom_call.1} parent=5 // pred_region
        %s398 = ssub.s32 %s28, 1
        // Predicated region
        $region13: #{tpu_custom_call.1} parent=11 // pred_check
          %p399 = pneg %p101
        $region14: #{tpu_custom_call.1} parent=11 // pred_check_branch
          %401 = sbr.rel (%p399) target = $region16
        $region15: #{tpu_custom_call.1} parent=11 // pred_region
          _
        $region16: #{tpu_custom_call.1} parent=11 // pred_fallthru
          _
        // Predicated region
        $region17: #{tpu_custom_call.1} parent=11 // pred_check
          %p402 = pneg %p122
        $region18: #{tpu_custom_call.1} parent=11 // pred_check_branch
          %404 = sbr.rel (%p402) target = $region20
        $region19: #{tpu_custom_call.1} parent=11 // pred_region
          _
        $region20: #{tpu_custom_call.1} parent=11 // pred_fallthru
          _
        // Predicated region
        $region21: #{tpu_custom_call.1} parent=11 // pred_check
          %p405 = pneg %p143
        $region22: #{tpu_custom_call.1} parent=11 // pred_check_branch
          %407 = sbr.rel (%p405) target = $region24
        $region23: #{tpu_custom_call.1} parent=11 // pred_region
          _
        $region24: #{tpu_custom_call.1} parent=11 // pred_fallthru
          _
        // Predicated region
        $region25: #{tpu_custom_call.1} parent=11 // pred_check
          %p408 = pneg %p164
        $region26: #{tpu_custom_call.1} parent=11 // pred_check_branch
          %410 = sbr.rel (%p408) target = $region28
        $region27: #{tpu_custom_call.1} parent=11 // pred_region
          _
        $region28: #{tpu_custom_call.1} parent=11 // pred_fallthru
          _
        // Predicated region
        $region29: #{tpu_custom_call.1} parent=11 // pred_check
          %p411 = pneg %p185
        $region30: #{tpu_custom_call.1} parent=11 // pred_check_branch
          %413 = sbr.rel (%p411) target = $region32
        $region31: #{tpu_custom_call.1} parent=11 // pred_region
          _
        $region32: #{tpu_custom_call.1} parent=11 // pred_fallthru
          _
        // Predicated region
        $region33: #{tpu_custom_call.1} parent=11 // pred_check
          %p414 = pneg %p206
        $region34: #{tpu_custom_call.1} parent=11 // pred_check_branch
          %416 = sbr.rel (%p414) target = $region36
        $region35: #{tpu_custom_call.1} parent=11 // pred_region
          _
        $region36: #{tpu_custom_call.1} parent=11 // pred_fallthru
          _
        // Predicated region
        $region37: #{tpu_custom_call.1} parent=11 // pred_check
          %p417 = pneg %p227
        $region38: #{tpu_custom_call.1} parent=11 // pred_check_branch
          %419 = sbr.rel (%p417) target = $region40
        $region39: #{tpu_custom_call.1} parent=11 // pred_region
          _
        $region40: #{tpu_custom_call.1} parent=11 // pred_fallthru
          _
        // Predicated region
        $region41: #{tpu_custom_call.1} parent=11 // pred_check
          %p420 = pneg %p248
        $region42: #{tpu_custom_call.1} parent=11 // pred_check_branch
          %422 = sbr.rel (%p420) target = $region44
        $region43: #{tpu_custom_call.1} parent=11 // pred_region
          _
        $region44: #{tpu_custom_call.1} parent=11 // pred_fallthru
          _
        // Predicated region
        $region45: #{tpu_custom_call.1} parent=11 // pred_check
          %p423 = pneg %p269
        $region46: #{tpu_custom_call.1} parent=11 // pred_check_branch
          %425 = sbr.rel (%p423) target = $region48
        $region47: #{tpu_custom_call.1} parent=11 // pred_region
          _
        $region48: #{tpu_custom_call.1} parent=11 // pred_fallthru
          _
        // Predicated region
        $region49: #{tpu_custom_call.1} parent=11 // pred_check
          %p426 = pneg %p290
        $region50: #{tpu_custom_call.1} parent=11 // pred_check_branch
          %428 = sbr.rel (%p426) target = $region52
        $region51: #{tpu_custom_call.1} parent=11 // pred_region
          _
        $region52: #{tpu_custom_call.1} parent=11 // pred_fallthru
          _
        // Predicated region
        $region53: #{tpu_custom_call.1} parent=11 // pred_check
          %p429 = pneg %p311
        $region54: #{tpu_custom_call.1} parent=11 // pred_check_branch
          %431 = sbr.rel (%p429) target = $region56
        $region55: #{tpu_custom_call.1} parent=11 // pred_region
          _
        $region56: #{tpu_custom_call.1} parent=11 // pred_fallthru
          _
        // Predicated region
        $region57: #{tpu_custom_call.1} parent=11 // pred_check
          %p432 = pneg %p332
        $region58: #{tpu_custom_call.1} parent=11 // pred_check_branch
          %434 = sbr.rel (%p432) target = $region60
        $region59: #{tpu_custom_call.1} parent=11 // pred_region
          _
        $region60: #{tpu_custom_call.1} parent=11 // pred_fallthru
          _
      $region12: #{tpu_custom_call.1} parent=5 // pred_fallthru
        _
      %p435 = scmp.lt.s32.totalorder %s28, 2
      // Predicated region
      $region61: #{tpu_custom_call.1} parent=5 // pred_check
        %p436 = pneg %p435
      $region62: #{tpu_custom_call.1} parent=5 // pred_check_branch
        %438 = sbr.rel (%p436) target = $region64
      $region63: #{tpu_custom_call.1} parent=5 // pred_region
        // Predicated region
        $region65: #{tpu_custom_call.1} parent=63 // pred_check
          %p439 = pneg %p48
        $region66: #{tpu_custom_call.1} parent=63 // pred_check_branch
          %441 = sbr.rel (%p439) target = $region68
        $region67: #{tpu_custom_call.1} parent=63 // pred_region
          %p442 = scmp.lt.s32.totalorder %s28, 1
          %s443 = scalar_select %p442, %s28, 1
          %s444 = smul.addr %s443, 8
          %s445 = scalar_lea.vmem %s0, %s444
        $region68: #{tpu_custom_call.1} parent=63 // pred_fallthru
          _
        // Predicated region
        $region69: #{tpu_custom_call.1} parent=63 // pred_check
          %p446 = pneg %p74
        $region70: #{tpu_custom_call.1} parent=63 // pred_check_branch
          %448 = sbr.rel (%p446) target = $region72
        $region71: #{tpu_custom_call.1} parent=63 // pred_region
          %p449 = scmp.lt.s32.totalorder %s28, 1
          %s450 = scalar_select %p449, %s28, 1
          %s451 = scalar_lea.vmem %s1, %s450
        $region72: #{tpu_custom_call.1} parent=63 // pred_fallthru
          _
      $region64: #{tpu_custom_call.1} parent=5 // pred_fallthru
        _
      %p452 = scmp.le.s32.totalorder 1, %s28
      %p453 = scmp.lt.s32.totalorder %s28, 3
      %p454 = pnand %p452, %p453
      %p455 = pneg %p454
      // Predicated region
      $region73: #{tpu_custom_call.1} parent=5 // pred_check
        _
      $region74: #{tpu_custom_call.1} parent=5 // pred_check_branch
        %457 = sbr.rel (%p454) target = $region76
      $region75: #{tpu_custom_call.1} parent=5 // pred_region
        %s458 = ssub.s32 %s28, 1
        %p459 = scmp.lt.s32.totalorder %s33, 1
        %s460 = scalar_select %p459, %s33, 1
        %s461 = smul.addr %s460, 8
        %s462 = scalar_lea.vmem %s0, %s461
        %p463 = pneg %p54
        %p464 = pneg %p51
        %p465 = scmp.lt.s32.totalorder %s33, 1
        %s466 = scalar_select %p465, %s33, 1
        %s467 = scalar_lea.vmem %s1, %s466
        %p468 = pneg %p80
        %p469 = pneg %p77
        %p470 = pneg %p101
        %p471 = pneg %p98
        %p472 = pneg %p122
        %p473 = pneg %p119
        %p474 = pneg %p143
        %p475 = pneg %p140
        %p476 = pneg %p164
        %p477 = pneg %p161
        %p478 = pneg %p185
        %p479 = pneg %p182
        %p480 = pneg %p206
        %p481 = pneg %p203
        %p482 = pneg %p227
        %p483 = pneg %p224
        %p484 = pneg %p248
        %p485 = pneg %p245
        %p486 = pneg %p269
        %p487 = pneg %p266
        %p488 = pneg %p290
        %p489 = pneg %p287
        %p490 = pneg %p311
        %p491 = pneg %p308
        %p492 = pneg %p332
        %p493 = pneg %p329
        %p494 = pneg %p358
        %p495 = pneg %p355
        %s496 = sand.u32 %s345, 1
        %s497 = scalar_lea.sflag [#allocation4], %s496
        %s498 = sand.u32 %s345, 1
        %s499 = smul.addr %s498, 8
        %s500 = scalar_lea.vmem [#allocation3], %s499
        %p501 = pneg %p384
        %p502 = pneg %p381
        %s503 = sand.u32 %s371, 1
        %s504 = scalar_lea.sflag [#allocation6], %s503
        %s505 = sand.u32 %s371, 1
        %s506 = smul.addr %s505, 16
        %s507 = scalar_lea.vmem [#allocation5], %s506
        %p508 = scmp.lt.s32.totalorder %s33, 1
        %s509 = scalar_select %p508, %s33, 1
        %s510 = smul.addr %s509, 8
        %s511 = scalar_lea.vmem %s0, %s510
        %p512 = scmp.lt.s32.totalorder %s33, 1
        %s513 = scalar_select %p512, %s33, 1
        %s514 = scalar_lea.vmem %s1, %s513
        %v516 = vld [vmem:[%s511] sm:$0xff]
        %v517 = vld [vmem:[%s514] sm:$0x1]
        %vm518 = vcmp.gt.f32.partialorder %v517, 0.0
        %v519 = vsel %vm518, 0.0, -1e+30
        %v520 = vsel %vm518, 1, 0
        %v521 = vcvt.s32.f32 %v520
        %v522 = vld [vmem:[%s6] sm:$0x1]
        %v523 = vld [vmem:[%s7] sm:$0x1]
        %vm524 = vcmask 261120
        %v525 = vsel %vm524, %v516, 0.0
        %526 = vadd.xlane.f32.xlu0 %v525
        %v527 = vpop.xlane.xlu0 %526
        %v528 = vrcp.pop 32.0
        %v529 = vmul.f32 32.0, %v528
        %v530 = vsub.f32 1.0, %v529
        %v531 = vmul.f32 %v528, %v530
        %v532 = vadd.f32 %v528, %v531
        %vm533 = vweird.f32 %v528
        %v534 = vsel %vm533, %v528, %v532
        %v535 = vmul.f32 %v527, %v534
        %v536 = vsub.f32 %v516, %v535
        %v537 = vmul.f32 %v536, %v536
        %v538 = vsel %vm524, %v537, 0.0
        %539 = vadd.xlane.f32.xlu0 %v538
        %v540 = vpop.xlane.xlu0 %539
        %v541 = vmul.f32 %v540, %v534
        %v542 = vadd.f32 %v541, 1e-12
        %v543 = vrsqrt.pop %v542
        %v544 = vmul.f32 %v543, %v542
        %v545 = vmul.f32 %v544, %v543
        %v546 = vmul.f32 0.5, %v545
        %v547 = vsub.f32 1.5, %v546
        %v548 = vmul.f32 %v543, %v547
        %vm549 = vweird.f32 %v542
        %vm550 = vweird.f32 %v543
        %vm551 = vmor %vm549, %vm550
        %v552 = vsel %vm551, %v543, %v548
        %v553 = vmul.f32 %v536, %v552
        %v555 = vperm.slane %v522, 0
        %v557 = vmul.f32 %v553, %v555
        %v559 = vperm.slane %v523, 0
        %v561 = vadd.f32 %v557, %v559
        %v562 = vpack.c.bf16 %v561, %v561
        %v563 = vld [vmem:[%s2] sm:$0xf]
        %v564 = vld [vmem:[%s2 + $0x4] sm:$0xf]
        %v565 = vld [vmem:[%s2 + $0x8] sm:$0xf]
        %v566 = vld [vmem:[%s2 + $0xc] sm:$0xf]
        %v567 = vld [vmem:[%s3] sm:$0x1]
        %v569 = vperm.slane %v567, 0
        %v575 = vunpack.c.l.b16 %v563
        %v576 = vunpack.c.l.b16 %v564
        %v577 = vunpack.c.l.b16 %v565
        %v578 = vunpack.c.l.b16 %v566
        %v579 = vpack.c.b16 %v576, %v575
        %v580 = vpack.c.b16 %v578, %v577
        %v584 = vsel %vm524, %v562, 0
        %586 = vmatpush.bf16.msra.mxu0 0
        %587 = vmatpush.bf16.msra.mxu0 0
        %588 = vmatpush.bf16.msra.mxu0 0
        %589 = vmatpush.bf16.msra.mxu0 0
        %590 = vmatpush.bf16.msra.mxu0 0
        %591 = vmatpush.bf16.msra.mxu0 0
        %592 = vmatpush.bf16.msra.mxu0 %v580
        %593 = vmatpush.bf16.msra.mxu0 %v579
        %594 = vmatmul.bf16.gmra.mxu0 %v584
        %v595 = vpop.f32.mrf.mxu0
        %v596 = vadd.f32 %v569, %v595
        %v597 = vpop.f32.mrf.mxu0
        %598 = vdwg.mxu0
        %vm599 = vcmask 195584
        %600 = vst.msk [vmem:[#allocation2] sm:$0xff] %vm599, %v596
        %s601 = scalar_lea.vmem %s2, 16
        %v602 = vld [vmem:[%s601] sm:$0xf]
        %v603 = vld [vmem:[%s601 + $0x4] sm:$0xf]
        %v604 = vld [vmem:[%s601 + $0x8] sm:$0xf]
        %v605 = vld [vmem:[%s601 + $0xc] sm:$0xf]
        %s606 = scalar_lea.vmem %s3, 1
        %v607 = vld [vmem:[%s606] sm:$0x1]
        %v609 = vperm.slane %v607, 0
        %v615 = vunpack.c.l.b16 %v602
        %v616 = vunpack.c.l.b16 %v603
        %v617 = vunpack.c.l.b16 %v604
        %v618 = vunpack.c.l.b16 %v605
        %v619 = vpack.c.b16 %v616, %v615
        %v620 = vpack.c.b16 %v618, %v617
        %623 = vmatpush.bf16.msra.mxu0 0
        %624 = vmatpush.bf16.msra.mxu0 0
        %625 = vmatpush.bf16.msra.mxu0 0
        %626 = vmatpush.bf16.msra.mxu0 0
        %627 = vmatpush.bf16.msra.mxu0 0
        %628 = vmatpush.bf16.msra.mxu0 0
        %629 = vmatpush.bf16.msra.mxu0 %v620
        %630 = vmatpush.bf16.msra.mxu0 %v619
        %631 = vmatmul.bf16.gmra.mxu0 %v584
        %v632 = vpop.f32.mrf.mxu0
        %v633 = vadd.f32 %v609, %v632
        %v634 = vpop.f32.mrf.mxu0
        %635 = vdwg.mxu0
        %s636 = scalar_lea.vmem [#allocation2], 8
        %637 = vst.msk [vmem:[%s636] sm:$0xff] %vm599, %v633
        %s638 = scalar_lea.vmem %s2, 32
        %v639 = vld [vmem:[%s638] sm:$0xf]
        %v640 = vld [vmem:[%s638 + $0x4] sm:$0xf]
        %v641 = vld [vmem:[%s638 + $0x8] sm:$0xf]
        %v642 = vld [vmem:[%s638 + $0xc] sm:$0xf]
        %s643 = scalar_lea.vmem %s3, 2
        %v644 = vld [vmem:[%s643] sm:$0x1]
        %v646 = vperm.slane %v644, 0
        %v652 = vunpack.c.l.b16 %v639
        %v653 = vunpack.c.l.b16 %v640
        %v654 = vunpack.c.l.b16 %v641
        %v655 = vunpack.c.l.b16 %v642
        %v656 = vpack.c.b16 %v653, %v652
        %v657 = vpack.c.b16 %v655, %v654
        %660 = vmatpush.bf16.msra.mxu0 0
        %661 = vmatpush.bf16.msra.mxu0 0
        %662 = vmatpush.bf16.msra.mxu0 0
        %663 = vmatpush.bf16.msra.mxu0 0
        %664 = vmatpush.bf16.msra.mxu0 0
        %665 = vmatpush.bf16.msra.mxu0 0
        %666 = vmatpush.bf16.msra.mxu0 %v657
        %667 = vmatpush.bf16.msra.mxu0 %v656
        %668 = vmatmul.bf16.gmra.mxu0 %v584
        %v669 = vpop.f32.mrf.mxu0
        %v670 = vadd.f32 %v646, %v669
        %v671 = vpop.f32.mrf.mxu0
        %672 = vdwg.mxu0
        %s673 = scalar_lea.vmem [#allocation2], 16
        %674 = vst.msk [vmem:[%s673] sm:$0xff] %vm599, %v670
        %s675 = scalar_lea.vmem %s2, 48
        %v676 = vld [vmem:[%s675] sm:$0xf]
        %v677 = vld [vmem:[%s675 + $0x4] sm:$0xf]
        %v678 = vld [vmem:[%s675 + $0x8] sm:$0xf]
        %v679 = vld [vmem:[%s675 + $0xc] sm:$0xf]
        %s680 = scalar_lea.vmem %s3, 3
        %v681 = vld [vmem:[%s680] sm:$0x1]
        %v683 = vperm.slane %v681, 0
        %v689 = vunpack.c.l.b16 %v676
        %v690 = vunpack.c.l.b16 %v677
        %v691 = vunpack.c.l.b16 %v678
        %v692 = vunpack.c.l.b16 %v679
        %v693 = vpack.c.b16 %v690, %v689
        %v694 = vpack.c.b16 %v692, %v691
        %697 = vmatpush.bf16.msra.mxu0 0
        %698 = vmatpush.bf16.msra.mxu0 0
        %699 = vmatpush.bf16.msra.mxu0 0
        %700 = vmatpush.bf16.msra.mxu0 0
        %701 = vmatpush.bf16.msra.mxu0 0
        %702 = vmatpush.bf16.msra.mxu0 0
        %703 = vmatpush.bf16.msra.mxu0 %v694
        %704 = vmatpush.bf16.msra.mxu0 %v693
        %705 = vmatmul.bf16.gmra.mxu0 %v584
        %v706 = vpop.f32.mrf.mxu0
        %v707 = vadd.f32 %v683, %v706
        %v708 = vpop.f32.mrf.mxu0
        %709 = vdwg.mxu0
        %s710 = scalar_lea.vmem [#allocation2], 24
        %711 = vst.msk [vmem:[%s710] sm:$0xff] %vm599, %v707
        %v712 = vld [vmem:[#allocation2] sm:$0xff]
        %v713 = vld [vmem:[#allocation2 + $0x8] sm:$0xff]
        %v714 = vld [vmem:[#allocation2 + $0x10] sm:$0xff]
        %v715 = vld [vmem:[#allocation2 + $0x18] sm:$0xff]
        %v716 = vpack.c.bf16 %v712, %v712
        %v717 = vpack.c.bf16 %v713, %v713
        %v718 = vpack.c.bf16 %v714, %v714
        %v719 = vpack.c.bf16 %v715, %v715
        %724 = vrot.lane.b32.xlu0 %v716, 120
        %v725 = vpop.permute.xlu0 %724
        %726 = vrot.lane.b32.xlu0 %v717, 120
        %v727 = vpop.permute.xlu0 %726
        %728 = vrot.lane.b32.xlu0 %v718, 120
        %v729 = vpop.permute.xlu0 %728
        %730 = vrot.lane.b32.xlu0 %v719, 120
        %v731 = vpop.permute.xlu0 %730
        %vm736 = vcmask 125952
        %737 = vst.msk [vmem:[%s507] sm:$0xf] %vm736, %v725
        %738 = vst.msk [vmem:[%s507 + $0x4] sm:$0xf] %vm736, %v727
        %739 = vst.msk [vmem:[%s507 + $0x8] sm:$0xf] %vm736, %v729
        %740 = vst.msk [vmem:[%s507 + $0xc] sm:$0xf] %vm736, %v731
        %v741 = vmul.f32 %v712, 0.35355338
        %v742 = vmul.f32 %v713, 0.35355338
        %v743 = vmul.f32 %v714, 0.35355338
        %v744 = vmul.f32 %v715, 0.35355338
        %v745 = vpack.c.bf16 %v741, %v741
        %v746 = vpack.c.bf16 %v742, %v742
        %v747 = vpack.c.bf16 %v743, %v743
        %v748 = vpack.c.bf16 %v744, %v744
        %v750 = vperm.slane %v519, 0
        %v752 = vunpack.c.l.b16 %v716
        %v753 = vpack.c.b16 %v752, %v752
        %754 = vrot.lane.b32.xlu0 %v753, 120
        %v755 = vpop.permute.xlu0 %754
        %vm756 = vcmask 64512
        %v758 = vsel %vm756, %v745, 0
        %v761 = vsel %vm756, %v755, 0
        %763 = vmatpush.bf16.xpose.msra.mxu0 0
        %764 = vmatpush.bf16.xpose.msra.mxu0 0
        %765 = vmatpush.bf16.xpose.msra.mxu0 0
        %766 = vmatpush.bf16.xpose.msra.mxu0 0
        %767 = vmatpush.bf16.xpose.msra.mxu0 0
        %768 = vmatpush.bf16.xpose.msra.mxu0 0
        %769 = vmatpush.bf16.xpose.msra.mxu0 0
        %770 = vmatpush.bf16.xpose.msra.mxu0 %v761
        %771 = vmatmul.bf16.gmra.mxu0 %v758
        %v772 = vpop.f32.mrf.mxu0
        %v773 = vadd.f32 %v750, %v772
        %v774 = vpop.f32.mrf.mxu0
        %775 = vdwg.mxu0
        %v776 = vunpack.c.l.b16 %v717
        %v777 = vpack.c.b16 %v776, %v776
        %778 = vrot.lane.b32.xlu0 %v777, 120
        %v779 = vpop.permute.xlu0 %778
        %v781 = vsel %vm756, %v746, 0
        %v784 = vsel %vm756, %v779, 0
        %786 = vmatpush.bf16.xpose.msra.mxu0 0
        %787 = vmatpush.bf16.xpose.msra.mxu0 0
        %788 = vmatpush.bf16.xpose.msra.mxu0 0
        %789 = vmatpush.bf16.xpose.msra.mxu0 0
        %790 = vmatpush.bf16.xpose.msra.mxu0 0
        %791 = vmatpush.bf16.xpose.msra.mxu0 0
        %792 = vmatpush.bf16.xpose.msra.mxu0 0
        %793 = vmatpush.bf16.xpose.msra.mxu0 %v784
        %794 = vmatmul.bf16.gmra.mxu0 %v781
        %v795 = vpop.f32.mrf.mxu0
        %v796 = vadd.f32 %v750, %v795
        %v797 = vpop.f32.mrf.mxu0
        %798 = vdwg.mxu0
        %v799 = vunpack.c.l.b16 %v718
        %v800 = vpack.c.b16 %v799, %v799
        %801 = vrot.lane.b32.xlu0 %v800, 120
        %v802 = vpop.permute.xlu0 %801
        %v804 = vsel %vm756, %v747, 0
        %v807 = vsel %vm756, %v802, 0
        %809 = vmatpush.bf16.xpose.msra.mxu0 0
        %810 = vmatpush.bf16.xpose.msra.mxu0 0
        %811 = vmatpush.bf16.xpose.msra.mxu0 0
        %812 = vmatpush.bf16.xpose.msra.mxu0 0
        %813 = vmatpush.bf16.xpose.msra.mxu0 0
        %814 = vmatpush.bf16.xpose.msra.mxu0 0
        %815 = vmatpush.bf16.xpose.msra.mxu0 0
        %816 = vmatpush.bf16.xpose.msra.mxu0 %v807
        %817 = vmatmul.bf16.gmra.mxu0 %v804
        %v818 = vpop.f32.mrf.mxu0
        %v819 = vadd.f32 %v750, %v818
        %v820 = vpop.f32.mrf.mxu0
        %821 = vdwg.mxu0
        %v822 = vunpack.c.l.b16 %v719
        %v823 = vpack.c.b16 %v822, %v822
        %824 = vrot.lane.b32.xlu0 %v823, 120
        %v825 = vpop.permute.xlu0 %824
        %v827 = vsel %vm756, %v748, 0
        %v830 = vsel %vm756, %v825, 0
        %832 = vmatpush.bf16.xpose.msra.mxu0 0
        %833 = vmatpush.bf16.xpose.msra.mxu0 0
        %834 = vmatpush.bf16.xpose.msra.mxu0 0
        %835 = vmatpush.bf16.xpose.msra.mxu0 0
        %836 = vmatpush.bf16.xpose.msra.mxu0 0
        %837 = vmatpush.bf16.xpose.msra.mxu0 0
        %838 = vmatpush.bf16.xpose.msra.mxu0 0
        %839 = vmatpush.bf16.xpose.msra.mxu0 %v830
        %840 = vmatmul.bf16.gmra.mxu0 %v827
        %v841 = vpop.f32.mrf.mxu0
        %v842 = vadd.f32 %v750, %v841
        %v843 = vpop.f32.mrf.mxu0
        %844 = vdwg.mxu0
        %v845 = vsel %vm756, %v773, -inf
        %846 = vmax.xlane.f32.xlu0 %v845
        %v847 = vpop.xlane.xlu0 %846
        %v848 = vsel %vm756, %v796, -inf
        %849 = vmax.xlane.f32.xlu0 %v848
        %v850 = vpop.xlane.xlu0 %849
        %v851 = vsel %vm756, %v819, -inf
        %852 = vmax.xlane.f32.xlu0 %v851
        %v853 = vpop.xlane.xlu0 %852
        %v854 = vsel %vm756, %v842, -inf
        %855 = vmax.xlane.f32.xlu0 %v854
        %v856 = vpop.xlane.xlu0 %855
        %v857 = vmax.f32 %v847, -1e+30
        %v858 = vmax.f32 %v850, -1e+30
        %v859 = vmax.f32 %v853, -1e+30
        %v860 = vmax.f32 %v856, -1e+30
        %v861 = vsub.f32 -1e+30, %v857
        %v862 = vsub.f32 -1e+30, %v858
        %v863 = vsub.f32 -1e+30, %v859
        %v864 = vsub.f32 -1e+30, %v860
        %v865 = vmul.f32 %v861, 1.442695
        %v866 = vpow.pop %v865
        %v867 = vmul.f32 %v862, 1.442695
        %v868 = vpow.pop %v867
        %v869 = vmul.f32 %v863, 1.442695
        %v870 = vpow.pop %v869
        %v871 = vmul.f32 %v864, 1.442695
        %v872 = vpow.pop %v871
        %v873 = vsub.f32 %v773, %v857
        %v874 = vsub.f32 %v796, %v858
        %v875 = vsub.f32 %v819, %v859
        %v876 = vsub.f32 %v842, %v860
        %v877 = vmul.f32 %v873, 1.442695
        %v878 = vpow.pop %v877
        %v879 = vmul.f32 %v874, 1.442695
        %v880 = vpow.pop %v879
        %v881 = vmul.f32 %v875, 1.442695
        %v882 = vpow.pop %v881
        %v883 = vmul.f32 %v876, 1.442695
        %v884 = vpow.pop %v883
        %v885 = vmul.f32 %v866, 0.0
        %v886 = vmul.f32 %v868, 0.0
        %v887 = vmul.f32 %v870, 0.0
        %v888 = vmul.f32 %v872, 0.0
        %v889 = vsel %vm756, %v878, 0.0
        %890 = vadd.xlane.f32.xlu0 %v889
        %v891 = vpop.xlane.xlu0 %890
        %v892 = vsel %vm756, %v880, 0.0
        %893 = vadd.xlane.f32.xlu0 %v892
        %v894 = vpop.xlane.xlu0 %893
        %v895 = vsel %vm756, %v882, 0.0
        %896 = vadd.xlane.f32.xlu0 %v895
        %v897 = vpop.xlane.xlu0 %896
        %v898 = vsel %vm756, %v884, 0.0
        %899 = vadd.xlane.f32.xlu0 %v898
        %v900 = vpop.xlane.xlu0 %899
        %v901 = vadd.f32 %v885, %v891
        %v902 = vadd.f32 %v886, %v894
        %v903 = vadd.f32 %v887, %v897
        %v904 = vadd.f32 %v888, %v900
        %v906 = vperm.slane %v521, 0
        %v908 = vmul.f32 %v878, %v906
        %v909 = vmul.f32 %v880, %v906
        %v910 = vmul.f32 %v882, %v906
        %v911 = vmul.f32 %v884, %v906
        %v912 = vpack.c.bf16 %v908, %v908
        %v913 = vpack.c.bf16 %v909, %v909
        %v914 = vpack.c.bf16 %v910, %v910
        %v915 = vpack.c.bf16 %v911, %v911
        %916 = vrot.lane.b32.xlu0 %v753, 112
        %v917 = vpop.permute.xlu0 %916
        %v919 = vsel %vm756, %v912, 0
        %vm921 = vcmask 1043456
        %v923 = vsel %vm921, %v917, 0
        %925 = vmatpush.bf16.msra.mxu0 0
        %926 = vmatpush.bf16.msra.mxu0 0
        %927 = vmatpush.bf16.msra.mxu0 0
        %928 = vmatpush.bf16.msra.mxu0 0
        %929 = vmatpush.bf16.msra.mxu0 0
        %930 = vmatpush.bf16.msra.mxu0 0
        %931 = vmatpush.bf16.msra.mxu0 0
        %932 = vmatpush.bf16.msra.mxu0 %v923
        %933 = vmatmul.bf16.gmra.mxu0 %v919
        %v934 = vpop.f32.mrf.mxu0
        %v935 = vadd.f32 0.0, %v934
        %v936 = vpop.f32.mrf.mxu0
        %937 = vdwg.mxu0
        %938 = vrot.lane.b32.xlu0 %v777, 112
        %v939 = vpop.permute.xlu0 %938
        %v941 = vsel %vm756, %v913, 0
        %v944 = vsel %vm921, %v939, 0
        %946 = vmatpush.bf16.msra.mxu0 0
        %947 = vmatpush.bf16.msra.mxu0 0
        %948 = vmatpush.bf16.msra.mxu0 0
        %949 = vmatpush.bf16.msra.mxu0 0
        %950 = vmatpush.bf16.msra.mxu0 0
        %951 = vmatpush.bf16.msra.mxu0 0
        %952 = vmatpush.bf16.msra.mxu0 0
        %953 = vmatpush.bf16.msra.mxu0 %v944
        %954 = vmatmul.bf16.gmra.mxu0 %v941
        %v955 = vpop.f32.mrf.mxu0
        %v956 = vadd.f32 0.0, %v955
        %v957 = vpop.f32.mrf.mxu0
        %958 = vdwg.mxu0
        %959 = vrot.lane.b32.xlu0 %v800, 112
        %v960 = vpop.permute.xlu0 %959
        %v962 = vsel %vm756, %v914, 0
        %v965 = vsel %vm921, %v960, 0
        %967 = vmatpush.bf16.msra.mxu0 0
        %968 = vmatpush.bf16.msra.mxu0 0
        %969 = vmatpush.bf16.msra.mxu0 0
        %970 = vmatpush.bf16.msra.mxu0 0
        %971 = vmatpush.bf16.msra.mxu0 0
        %972 = vmatpush.bf16.msra.mxu0 0
        %973 = vmatpush.bf16.msra.mxu0 0
        %974 = vmatpush.bf16.msra.mxu0 %v965
        %975 = vmatmul.bf16.gmra.mxu0 %v962
        %v976 = vpop.f32.mrf.mxu0
        %v977 = vadd.f32 0.0, %v976
        %v978 = vpop.f32.mrf.mxu0
        %979 = vdwg.mxu0
        %980 = vrot.lane.b32.xlu0 %v823, 112
        %v981 = vpop.permute.xlu0 %980
        %v983 = vsel %vm756, %v915, 0
        %v986 = vsel %vm921, %v981, 0
        %988 = vmatpush.bf16.msra.mxu0 0
        %989 = vmatpush.bf16.msra.mxu0 0
        %990 = vmatpush.bf16.msra.mxu0 0
        %991 = vmatpush.bf16.msra.mxu0 0
        %992 = vmatpush.bf16.msra.mxu0 0
        %993 = vmatpush.bf16.msra.mxu0 0
        %994 = vmatpush.bf16.msra.mxu0 0
        %995 = vmatpush.bf16.msra.mxu0 %v986
        %996 = vmatmul.bf16.gmra.mxu0 %v983
        %v997 = vpop.f32.mrf.mxu0
        %v998 = vadd.f32 0.0, %v997
        %v999 = vpop.f32.mrf.mxu0
        %1000 = vdwg.mxu0
        %v1001 = vadd.f32 %v885, %v935
        %v1002 = vadd.f32 %v886, %v956
        %v1003 = vadd.f32 %v887, %v977
        %v1004 = vadd.f32 %v888, %v998
        %v1005 = vrcp.pop %v901
        %v1006 = vrcp.pop %v902
        %v1007 = vrcp.pop %v903
        %v1008 = vrcp.pop %v904
        %v1009 = vmul.f32 %v1001, %v1005
        %v1010 = vmul.f32 %v1002, %v1006
        %v1011 = vmul.f32 %v1003, %v1007
        %v1012 = vmul.f32 %v1004, %v1008
        %v1013 = vpack.c.bf16 %v1009, %v1009
        %v1014 = vld [vmem:[%s4] sm:$0xf]
        %v1015 = vpack.c.bf16 %v1010, %v1010
        %s1016 = scalar_lea.vmem %s4, 4
        %v1017 = vld [vmem:[%s1016] sm:$0xf]
        %v1019 = vsel %vm756, %v1015, 0
        %v1022 = vsel %vm921, %v1017, 0
        %1024 = vmatpush.bf16.msra.mxu0 0
        %1025 = vmatpush.bf16.msra.mxu0 0
        %1026 = vmatpush.bf16.msra.mxu0 0
        %1027 = vmatpush.bf16.msra.mxu0 0
        %1028 = vmatpush.bf16.msra.mxu0 0
        %1029 = vmatpush.bf16.msra.mxu0 0
        %1030 = vmatpush.bf16.msra.mxu0 0
        %1031 = vmatpush.bf16.msra.mxu0 %v1022
        %1032 = vmatmul.bf16.gmra.mxu0 %v1019
        %v1033 = vpop.f32.mrf.mxu0
        %v1034 = vadd.f32 0.0, %v1033
        %v1035 = vpop.f32.mrf.mxu0
        %1036 = vdwg.mxu0
        %v1038 = vsel %vm756, %v1013, 0
        %v1041 = vsel %vm921, %v1014, 0
        %1043 = vmatpush.bf16.msra.mxu0 0
        %1044 = vmatpush.bf16.msra.mxu0 0
        %1045 = vmatpush.bf16.msra.mxu0 0
        %1046 = vmatpush.bf16.msra.mxu0 0
        %1047 = vmatpush.bf16.msra.mxu0 0
        %1048 = vmatpush.bf16.msra.mxu0 0
        %1049 = vmatpush.bf16.msra.mxu0 0
        %1050 = vmatpush.bf16.msra.mxu0 %v1041
        %1051 = vmatmul.bf16.gmra.mxu0 %v1038
        %v1052 = vpop.f32.mrf.mxu0
        %v1053 = vadd.f32 %v1034, %v1052
        %v1054 = vpop.f32.mrf.mxu0
        %1055 = vdwg.mxu0
        %v1056 = vpack.c.bf16 %v1011, %v1011
        %s1057 = scalar_lea.vmem %s4, 8
        %v1058 = vld [vmem:[%s1057] sm:$0xf]
        %v1060 = vsel %vm756, %v1056, 0
        %v1063 = vsel %vm921, %v1058, 0
        %1065 = vmatpush.bf16.msra.mxu0 0
        %1066 = vmatpush.bf16.msra.mxu0 0
        %1067 = vmatpush.bf16.msra.mxu0 0
        %1068 = vmatpush.bf16.msra.mxu0 0
        %1069 = vmatpush.bf16.msra.mxu0 0
        %1070 = vmatpush.bf16.msra.mxu0 0
        %1071 = vmatpush.bf16.msra.mxu0 0
        %1072 = vmatpush.bf16.msra.mxu0 %v1063
        %1073 = vmatmul.bf16.gmra.mxu0 %v1060
        %v1074 = vpop.f32.mrf.mxu0
        %v1075 = vadd.f32 0.0, %v1074
        %v1076 = vpop.f32.mrf.mxu0
        %1077 = vdwg.mxu0
        %v1078 = vadd.f32 %v1053, %v1075
        %v1079 = vpack.c.bf16 %v1012, %v1012
        %s1080 = scalar_lea.vmem %s4, 12
        %v1081 = vld [vmem:[%s1080] sm:$0xf]
        %v1083 = vsel %vm756, %v1079, 0
        %v1086 = vsel %vm921, %v1081, 0
        %1088 = vmatpush.bf16.msra.mxu0 0
        %1089 = vmatpush.bf16.msra.mxu0 0
        %1090 = vmatpush.bf16.msra.mxu0 0
        %1091 = vmatpush.bf16.msra.mxu0 0
        %1092 = vmatpush.bf16.msra.mxu0 0
        %1093 = vmatpush.bf16.msra.mxu0 0
        %1094 = vmatpush.bf16.msra.mxu0 0
        %1095 = vmatpush.bf16.msra.mxu0 %v1086
        %1096 = vmatmul.bf16.gmra.mxu0 %v1083
        %v1097 = vpop.f32.mrf.mxu0
        %v1098 = vadd.f32 0.0, %v1097
        %v1099 = vpop.f32.mrf.mxu0
        %1100 = vdwg.mxu0
        %v1101 = vadd.f32 %v1078, %v1098
        %v1102 = vadd.f32 %v516, %v1101
        %v1103 = vld [vmem:[%s5] sm:$0x1]
        %v1105 = vperm.slane %v1103, 0
        %v1107 = vadd.f32 %v1102, %v1105
        %v1108 = vld [vmem:[%s8] sm:$0x1]
        %v1109 = vld [vmem:[%s9] sm:$0x1]
        %v1110 = vsel %vm524, %v1107, 0.0
        %1111 = vadd.xlane.f32.xlu0 %v1110
        %v1112 = vpop.xlane.xlu0 %1111
        %v1113 = vmul.f32 %v1112, %v534
        %v1114 = vsub.f32 %v1107, %v1113
        %v1115 = vmul.f32 %v1114, %v1114
        %v1116 = vsel %vm524, %v1115, 0.0
        %1117 = vadd.xlane.f32.xlu0 %v1116
        %v1118 = vpop.xlane.xlu0 %1117
        %v1119 = vmul.f32 %v1118, %v534
        %v1120 = vadd.f32 %v1119, 1e-12
        %v1121 = vrsqrt.pop %v1120
        %v1122 = vmul.f32 %v1121, %v1120
        %v1123 = vmul.f32 %v1122, %v1121
        %v1124 = vmul.f32 0.5, %v1123
        %v1125 = vsub.f32 1.5, %v1124
        %v1126 = vmul.f32 %v1121, %v1125
        %vm1127 = vweird.f32 %v1120
        %vm1128 = vweird.f32 %v1121
        %vm1129 = vmor %vm1127, %vm1128
        %v1130 = vsel %vm1129, %v1121, %v1126
        %v1131 = vmul.f32 %v1114, %v1130
        %v1133 = vperm.slane %v1108, 0
        %v1135 = vmul.f32 %v1131, %v1133
        %v1137 = vperm.slane %v1109, 0
        %v1139 = vadd.f32 %v1135, %v1137
        %v1140 = vpack.c.bf16 %v1139, %v1139
        %v1141 = vld [vmem:[%s10] sm:$0xf]
        %v1142 = vld [vmem:[%s10 + $0x4] sm:$0xf]
        %v1143 = vld [vmem:[%s10 + $0x8] sm:$0xf]
        %v1144 = vld [vmem:[%s10 + $0xc] sm:$0xf]
        %v1145 = vld [vmem:[%s11] sm:$0x1]
        %v1147 = vperm.slane %v1145, 0
        %v1153 = vunpack.c.l.b16 %v1141
        %v1154 = vunpack.c.l.b16 %v1142
        %v1155 = vunpack.c.l.b16 %v1143
        %v1156 = vunpack.c.l.b16 %v1144
        %v1157 = vpack.c.b16 %v1154, %v1153
        %v1158 = vpack.c.b16 %v1156, %v1155
        %v1162 = vsel %vm524, %v1140, 0
        %1164 = vmatpush.bf16.msra.mxu0 0
        %1165 = vmatpush.bf16.msra.mxu0 0
        %1166 = vmatpush.bf16.msra.mxu0 0
        %1167 = vmatpush.bf16.msra.mxu0 0
        %1168 = vmatpush.bf16.msra.mxu0 0
        %1169 = vmatpush.bf16.msra.mxu0 0
        %1170 = vmatpush.bf16.msra.mxu0 %v1158
        %1171 = vmatpush.bf16.msra.mxu0 %v1157
        %1172 = vmatmul.bf16.gmra.mxu0 %v1162
        %v1173 = vpop.f32.mrf.mxu0
        %v1174 = vadd.f32 %v1147, %v1173
        %v1175 = vpop.f32.mrf.mxu0
        %1176 = vdwg.mxu0
        %v1177 = vmax.f32 %v1174, 0.0
        %v1178 = vpack.c.bf16 %v1177, %v1177
        %v1179 = vld [vmem:[%s12] sm:$0xf]
        %v1180 = vld [vmem:[%s12 + $0x4] sm:$0xf]
        %v1181 = vld [vmem:[%s12 + $0x8] sm:$0xf]
        %v1182 = vld [vmem:[%s12 + $0xc] sm:$0xf]
        %v1183 = vld [vmem:[%s12 + $0x10] sm:$0xf]
        %v1184 = vld [vmem:[%s12 + $0x14] sm:$0xf]
        %v1185 = vld [vmem:[%s12 + $0x18] sm:$0xf]
        %v1186 = vld [vmem:[%s12 + $0x1c] sm:$0xf]
        %v1195 = vunpack.c.l.b16 %v1179
        %v1196 = vunpack.c.l.b16 %v1180
        %v1197 = vunpack.c.l.b16 %v1181
        %v1198 = vunpack.c.l.b16 %v1182
        %v1199 = vunpack.c.l.b16 %v1183
        %v1200 = vunpack.c.l.b16 %v1184
        %v1201 = vunpack.c.l.b16 %v1185
        %v1202 = vunpack.c.l.b16 %v1186
        %v1203 = vpack.c.b16 %v1196, %v1195
        %v1204 = vpack.c.b16 %v1198, %v1197
        %v1205 = vpack.c.b16 %v1200, %v1199
        %v1206 = vpack.c.b16 %v1202, %v1201
        %vm1211 = vcmask 523264
        %v1213 = vsel %vm1211, %v1178, 0
        %1215 = vmatpush.bf16.msra.mxu0 0
        %1216 = vmatpush.bf16.msra.mxu0 0
        %1217 = vmatpush.bf16.msra.mxu0 0
        %1218 = vmatpush.bf16.msra.mxu0 0
        %1219 = vmatpush.bf16.msra.mxu0 %v1206
        %1220 = vmatpush.bf16.msra.mxu0 %v1205
        %1221 = vmatpush.bf16.msra.mxu0 %v1204
        %1222 = vmatpush.bf16.msra.mxu0 %v1203
        %1223 = vmatmul.bf16.gmra.mxu0 %v1213
        %v1224 = vpop.f32.mrf.mxu0
        %v1225 = vadd.f32 0.0, %v1224
        %v1226 = vpop.f32.mrf.mxu0
        %1227 = vdwg.mxu0
        %v1228 = vadd.f32 %v1107, %v1225
        %v1229 = vld [vmem:[%s13] sm:$0x1]
        %v1231 = vperm.slane %v1229, 0
        %v1233 = vadd.f32 %v1228, %v1231
        %1234 = vst.msk [vmem:[%s500] sm:$0xff] %vm524, %v1233
        %s1235 = sand.u32 %s345, 1
        %s1236 = scalar_lea.sflag [#allocation4], %s1235
        %s1237 = sand.u32 %s345, 1
        %s1238 = smul.addr %s1237, 8
        %s1239 = scalar_lea.vmem [#allocation3], %s1238
        %s1240 = sand.u32 %s371, 1
        %s1241 = scalar_lea.sflag [#allocation6], %s1240
        %s1242 = sand.u32 %s371, 1
        %s1243 = smul.addr %s1242, 16
        %s1244 = scalar_lea.vmem [#allocation5], %s1243
        // Predicated region
        $region77: #{tpu_custom_call.1} parent=75 // pred_check
          %p1245 = pneg %p355
        $region78: #{tpu_custom_call.1} parent=75 // pred_check_branch
          %1247 = sbr.rel (%p1245) target = $region80
        $region79: #{tpu_custom_call.1} parent=75 // pred_region
          %1249 = vsyncadd %s1236, 0
          %s1250 = smul.addr %s33, 8
          %s1251 = scalar_lea.hbm %s14, %s1250
          %s1253 = sshll.u32 %s1239, 4
          %s1254 = int_to_ptr.vmem [resolvable:$true] %s1253
          %s1255 = sshll.u32 %s1251, 4
          %s1256 = int_to_ptr.hbm [resolvable:$true] %s1255
          %1258 = dma.vmem_to_hbm [thread:$0]  %s1254, 128, %s1256, %s1236
        $region80: #{tpu_custom_call.1} parent=75 // pred_fallthru
          _
        // Predicated region
        $region81: #{tpu_custom_call.1} parent=75 // pred_check
          %p1259 = pneg %p381
        $region82: #{tpu_custom_call.1} parent=75 // pred_check_branch
          %1261 = sbr.rel (%p1259) target = $region84
        $region83: #{tpu_custom_call.1} parent=75 // pred_region
          %1263 = vsyncadd %s1241, 0
          %s1264 = smul.addr %s33, 4
          %s1265 = smul.addr %s1264, 4
          %s1266 = scalar_lea.hbm %s15, %s1265
          %s1267 = sshll.u32 %s1244, 4
          %s1268 = int_to_ptr.vmem [resolvable:$true] %s1267
          %s1269 = sshll.u32 %s1266, 4
          %s1270 = int_to_ptr.hbm [resolvable:$true] %s1269
          %1275 = dma.vmem_to_hbm [thread:$0]  %s1268, 256, %s1270, %s1241, 64, 64, 4
        $region84: #{tpu_custom_call.1} parent=75 // pred_fallthru
          _
      $region76: #{tpu_custom_call.1} parent=5 // pred_fallthru
        _
      %p1276 = scmp.le.s32.totalorder 2, %s28
      // Predicated region
      $region85: #{tpu_custom_call.1} parent=5 // pred_check
        %p1277 = pneg %p1276
      $region86: #{tpu_custom_call.1} parent=5 // pred_check_branch
        %1279 = sbr.rel (%p1277) target = $region88
      $region87: #{tpu_custom_call.1} parent=5 // pred_region
        %s1280 = ssub.s32 %s28, 2
        // Predicated region
        $region89: #{tpu_custom_call.1} parent=87 // pred_check
          %p1281 = pneg %p361
        $region90: #{tpu_custom_call.1} parent=87 // pred_check_branch
          %1283 = sbr.rel (%p1281) target = $region92
        $region91: #{tpu_custom_call.1} parent=87 // pred_region
          %s1284 = sand.u32 %s346, 1
          %s1285 = scalar_lea.sflag [#allocation4], %s1284
          %s1286 = sand.u32 %s346, 1
          %s1287 = smul.addr %s1286, 8
          %s1288 = scalar_lea.vmem [#allocation3], %s1287
          %1290 = dma.done %s1285, 128
        $region92: #{tpu_custom_call.1} parent=87 // pred_fallthru
          _
        // Predicated region
        $region93: #{tpu_custom_call.1} parent=87 // pred_check
          %p1291 = pneg %p387
        $region94: #{tpu_custom_call.1} parent=87 // pred_check_branch
          %1293 = sbr.rel (%p1291) target = $region96
        $region95: #{tpu_custom_call.1} parent=87 // pred_region
          %s1294 = sand.u32 %s372, 1
          %s1295 = scalar_lea.sflag [#allocation6], %s1294
          %s1296 = sand.u32 %s372, 1
          %s1297 = smul.addr %s1296, 16
          %s1298 = scalar_lea.vmem [#allocation5], %s1297
          %1300 = dma.done %s1295, 256
        $region96: #{tpu_custom_call.1} parent=87 // pred_fallthru
          _
      $region88: #{tpu_custom_call.1} parent=5 // pred_fallthru
        _
    $region6: #{tpu_custom_call.1} parent=1 // loop_footer
      %s32 = sadd.s32 1, %s28
    $region7: #{tpu_custom_call.1} parent=1 // loop_footer_branch
      %27 = sbr.rel target = $region3
    $region8: #{tpu_custom_call.1} parent=1 // loop_exit
      _
    %1301 = vsyncpa [#allocation4], 1
    %s1302 = scalar_lea.sflag [#allocation4], 1
    %1303 = vsyncpa %s1302, 1
    %1304 = vsyncpa [#allocation6], 1
    %s1305 = scalar_lea.sflag [#allocation6], 1
    %1306 = vsyncpa %s1305, 1

</llo_original>
